<compile_context>
chip_gen: v7x
topology: tpu7x:2x2x1
jax: 0.10.0
libtpu: 0.0.40
codegen_flags: <defaults>
</compile_context>

<pallas_src>
import functools
import math

import jax
import jax.numpy as jnp
from jax.experimental import pallas as pl
from jax.experimental.pallas import tpu as pltpu


def _round_up(v, m):
    return ((v + m - 1) // m) * m


def _vmem_limit(bytes_needed):
    # Generous margin; clamp below the smallest per-TC VMEM (v7x: 64 MiB).
    return int(min(max(2 * bytes_needed + (4 << 20), 32 << 20), 56 << 20))


def _masked_log_softmax(h, nclass):
    """f32 log_softmax over the first `nclass` columns; padded cols -> 0."""
    col = jax.lax.broadcasted_iota(jnp.int32, h.shape, 1)
    valid = col < nclass
    hm = jnp.where(valid, h, -jnp.inf)
    m = jnp.max(hm, axis=1, keepdims=True)
    e = jnp.exp(hm - m)                       # padded cols -> exp(-inf) = 0
    s = jnp.sum(e, axis=1, keepdims=True)
    res = (hm - m) - jnp.log(s)
    return jnp.where(valid, res, 0.0)


# ----------------------------------------------------------------------------
# Kernel A (small graphs): whole forward fused in a single call.
# adj / x / W / h all VMEM-resident -> adj read from HBM once for ALL layers.
# ----------------------------------------------------------------------------
def _fused_kernel(x_ref, w_ref, adj_ref, b_ref, o_ref, *, nclass, nlayers):
    h32 = jnp.dot(x_ref[...], w_ref[...], preferred_element_type=jnp.float32)
    adjb = adj_ref[...]
    for _ in range(nlayers):
        h32 = jnp.dot(adjb, h32.astype(jnp.bfloat16),
                      preferred_element_type=jnp.float32)
    o_ref[...] = _masked_log_softmax(h32 + b_ref[...], nclass).astype(o_ref.dtype)


# ----------------------------------------------------------------------------
# Kernel B1 (large graphs): feature transform  h0 = x @ W
# ----------------------------------------------------------------------------
def _transform_kernel(x_ref, w_ref, o_ref):
    o_ref[...] = jnp.dot(
        x_ref[...], w_ref[...], preferred_element_type=jnp.float32
    ).astype(o_ref.dtype)


# ----------------------------------------------------------------------------
# Kernel B2 (large graphs): one propagation layer  h_out = adj @ h_in
# (+ fused bias + masked log_softmax on the last layer's final k step).
# Grid: (row tiles [parallel], k reduction tiles [arbitrary]).
# ----------------------------------------------------------------------------
def _prop_kernel(adj_ref, h_ref, b_ref, o_ref, acc_ref, *, nclass, last,
                 h_resident):
    k = pl.program_id(1)
    tk = adj_ref.shape[1]

    @pl.when(k == 0)
    def _init():
        acc_ref[...] = jnp.zeros_like(acc_ref)

    if h_resident:
        # h fully resident in VMEM; take the k-th contraction slice in-kernel.
        off = pl.multiple_of(k * tk, tk)
        hk = h_ref[pl.ds(off, tk), :]
    else:
        # h streamed as (tk, c_pad) k-slices via the BlockSpec.
        hk = h_ref[...]
    acc_ref[...] += jnp.dot(adj_ref[...], hk, preferred_element_type=jnp.float32)

    @pl.when(k == pl.num_programs(1) - 1)
    def _finalize():
        if last:
            o_ref[...] = _masked_log_softmax(
                acc_ref[...] + b_ref[...], nclass).astype(o_ref.dtype)
        else:
            o_ref[...] = acc_ref[...].astype(o_ref.dtype)


# ----------------------------------------------------------------------------
# Wrapper
# ----------------------------------------------------------------------------
@functools.partial(
    jax.jit, static_argnames=("nlayers", "force_path", "tm", "tk", "stream_h"))
def sgc_forward(x, adj, weight, bias, *, nlayers=2, force_path=None,
                tm=None, tk=None, stream_h=None):
    n, nfeat = x.shape
    nclass = weight.shape[1]

    n_pad = _round_up(n, 512)
    f_pad = _round_up(nfeat, 128)
    c_pad = _round_up(max(nclass, 128), 128)   # stays 128 for small nclass

    # Host-side zero padding + bf16 cast of the MXU operands.
    xb = jnp.pad(x.astype(jnp.bfloat16), ((0, n_pad - n), (0, f_pad - nfeat)))
    adjb = jnp.pad(adj.astype(jnp.bfloat16), ((0, n_pad - n), (0, n_pad - n)))
    wb = jnp.pad(weight.astype(jnp.bfloat16),
                 ((0, f_pad - nfeat), (0, c_pad - nclass)))
    b2d = jnp.pad(bias.astype(jnp.float32), (0, c_pad - nclass)).reshape(1, c_pad)

    fits_fused = n_pad * n_pad * 2 <= (8 << 20)          # adj (bf16) <= 8 MiB
    use_fused = (force_path == "fused") or (force_path is None and fits_fused)

    # ------------------------ fused small-graph path -----------------------
    if use_fused:
        kern = functools.partial(_fused_kernel, nclass=nclass, nlayers=nlayers)
        need = (n_pad * f_pad * 2 + f_pad * c_pad * 2 + n_pad * n_pad * 2
                + c_pad * 4 + 3 * n_pad * c_pad * 4)
        out = pl.pallas_call(
            kern,
            out_shape=jax.ShapeDtypeStruct((n_pad, c_pad), jnp.float32),
            compiler_params=pltpu.CompilerParams(
                vmem_limit_bytes=_vmem_limit(need)),
            cost_estimate=pl.CostEstimate(
                flops=2 * n_pad * f_pad * c_pad
                      + 2 * nlayers * n_pad * n_pad * c_pad,
                transcendentals=n_pad * c_pad,
                bytes_accessed=n_pad * f_pad * 2 + f_pad * c_pad * 2
                               + n_pad * n_pad * 2 + n_pad * c_pad * 4),
        )(xb, wb, adjb, b2d)
        return out[:n, :nclass]

    # ------------------------ tiled large-graph path ------------------------
    assert nlayers >= 1
    tm_ = 512 if tm is None else tm
    tk_ = 1024 if tk is None else tk
    while tm_ > 128 and n_pad % tm_ != 0:
        tm_ //= 2
    while tk_ > 128 and n_pad % tk_ != 0:
        tk_ //= 2
    assert tm_ % 128 == 0 and tk_ % 128 == 0
    assert n_pad % tm_ == 0 and n_pad % tk_ == 0
    grid_rows = n_pad // tm_
    grid_k = n_pad // tk_

    # Keep h VMEM-resident while its (double-buffered) footprint is small;
    # otherwise stream (tk, c_pad) k-slices (extra traffic ~ c_pad/tm of adj).
    if stream_h is None:
        h_resident = (2 * n_pad * c_pad * 2) <= (12 << 20)
    else:
        h_resident = not stream_h

    # --- feature transform: h0 = x @ W -------------------------------------
    h = pl.pallas_call(
        _transform_kernel,
        out_shape=jax.ShapeDtypeStruct((n_pad, c_pad), jnp.bfloat16),
        grid=(grid_rows,),
        in_specs=[
            pl.BlockSpec((tm_, f_pad), lambda i: (i, 0)),
            pl.BlockSpec((f_pad, c_pad), lambda i: (0, 0)),
        ],
        out_specs=pl.BlockSpec((tm_, c_pad), lambda i: (i, 0)),
        compiler_params=pltpu.CompilerParams(
            dimension_semantics=("parallel",),
            vmem_limit_bytes=_vmem_limit(
                2 * (tm_ * f_pad * 2 + f_pad * c_pad * 2 + tm_ * c_pad * 2)),
        ),
        cost_estimate=pl.CostEstimate(
            flops=2 * n_pad * f_pad * c_pad,
            transcendentals=0,
            bytes_accessed=n_pad * f_pad * 2 + f_pad * c_pad * 2
                           + n_pad * c_pad * 2,
        ),
    )(xb, wb)

    if h_resident:
        h_spec = pl.BlockSpec((n_pad, c_pad), lambda i, k: (0, 0))
        h_block_bytes = n_pad * c_pad * 2
    else:
        h_spec = pl.BlockSpec((tk_, c_pad), lambda i, k: (k, 0))
        h_block_bytes = tk_ * c_pad * 2

    # --- nlayers tiled propagation passes: h = adj @ h ----------------------
    for layer in range(nlayers):
        last = layer == nlayers - 1
        out_dtype = jnp.float32 if last else jnp.bfloat16
        out_bytes = 4 if last else 2
        kern = functools.partial(_prop_kernel, nclass=nclass, last=last,
                                 h_resident=h_resident)
        need = (2 * tm_ * tk_ * 2 + 2 * h_block_bytes + 2 * c_pad * 4
                + 2 * tm_ * c_pad * out_bytes + tm_ * c_pad * 4)
        h = pl.pallas_call(
            kern,
            out_shape=jax.ShapeDtypeStruct((n_pad, c_pad), out_dtype),
            grid_spec=pltpu.PrefetchScalarGridSpec(
                num_scalar_prefetch=0,
                grid=(grid_rows, grid_k),
                in_specs=[
                    # adj tiles streamed / double-buffered (dominant stream):
                    pl.BlockSpec((tm_, tk_), lambda i, k: (i, k)),
                    # h: resident (constant index) or streamed k-slices:
                    h_spec,
                    pl.BlockSpec((1, c_pad), lambda i, k: (0, 0)),
                ],
                out_specs=pl.BlockSpec((tm_, c_pad), lambda i, k: (i, 0)),
                scratch_shapes=[pltpu.VMEM((tm_, c_pad), jnp.float32)],
            ),
            compiler_params=pltpu.CompilerParams(
                dimension_semantics=("parallel", "arbitrary"),
                vmem_limit_bytes=_vmem_limit(need),
            ),
            cost_estimate=pl.CostEstimate(
                flops=2 * n_pad * n_pad * c_pad,
                transcendentals=(n_pad * c_pad) if last else 0,
                bytes_accessed=(
                    n_pad * n_pad * 2                                # adj bf16
                    + (n_pad * c_pad * 2 if h_resident
                       else grid_rows * n_pad * c_pad * 2)           # h in
                    + n_pad * c_pad * out_bytes                      # h out
                ),
            ),
        )(adjb, h, b2d)

    return h[:n, :nclass]


# ----------------------------------------------------------------------------
# References
# ----------------------------------------------------------------------------
def sgc_reference_f32(x, adj, weight, bias, *, nlayers=2):
    h = x @ weight
    for _ in range(nlayers):
        h = adj @ h
    return jax.nn.log_softmax(h + bias[None, :], axis=1)


def sgc_reference_bf16(x, adj, weight, bias, *, nlayers=2):
    # Mirrors the kernel's precision choices: bf16 MXU inputs, f32 accumulation,
    # bf16 intermediate h, f32 epilogue.
    adjb = adj.astype(jnp.bfloat16)
    h = jnp.dot(
        x.astype(jnp.bfloat16), weight.astype(jnp.bfloat16),
        preferred_element_type=jnp.float32,
    ).astype(jnp.bfloat16)
    h32 = None
    for _ in range(nlayers):
        h32 = jnp.dot(adjb, h, preferred_element_type=jnp.float32)
        h = h32.astype(jnp.bfloat16)
    return jax.nn.log_softmax(h32 + bias[None, :].astype(jnp.float32), axis=1)


if __name__ == "__main__":
    # Small synthetic problem: 500 nodes (exercises N padding), 96 features
    # (exercises feature padding), 10 classes (class padding), 2 layers.
    N, NFEAT, NCLASS, NLAYERS = 500, 96, 10, 2

    key = jax.random.PRNGKey(0)
    kx, kadj, kw, kb = jax.random.split(key, 4)

    # Node features.
    x = jax.random.normal(kx, (N, NFEAT), dtype=jnp.float32)

    # Symmetric row-normalized dense adjacency with self loops.
    a = (jax.random.uniform(kadj, (N, N)) > 0.9).astype(jnp.float32)
    a = jnp.maximum(a, a.T) + jnp.eye(N, dtype=jnp.float32)
    deg = jnp.sum(a, axis=1, keepdims=True)
    adj = a / deg

    # GraphConvolution reset_parameters(): uniform(-stdv, stdv),
    # stdv = 1 / sqrt(in_features).
    stdv = 1.0 / math.sqrt(NFEAT)
    weight = jax.random.uniform(
        kw, (NFEAT, NCLASS), minval=-stdv, maxval=stdv, dtype=jnp.float32
    )
    bias = jax.random.uniform(
        kb, (NCLASS,), minval=-stdv, maxval=stdv, dtype=jnp.float32
    )

    ref_m = sgc_reference_bf16(x, adj, weight, bias, nlayers=NLAYERS)
    ref_f = sgc_reference_f32(x, adj, weight, bias, nlayers=NLAYERS)

    # 1) default (auto -> fused single-call path on this small graph).
    out = jax.block_until_ready(sgc_forward(x, adj, weight, bias, nlayers=NLAYERS))
    assert out.shape == (N, NCLASS)
    assert jnp.allclose(out, ref_m, atol=2e-3, rtol=2e-3), "fused: bf16 ref mismatch"
    assert jnp.allclose(out, ref_f, atol=3e-2, rtol=3e-2), "fused: f32 ref mismatch"

    # 2) tiled path with resident h (small tiles to exercise multi-tile accum).
    out_t = jax.block_until_ready(
        sgc_forward(x, adj, weight, bias, nlayers=NLAYERS,
                    force_path="tiled", tm=128, tk=256))
    assert jnp.allclose(out_t, ref_m, atol=2e-3, rtol=2e-3), "tiled: bf16 ref mismatch"
    assert jnp.allclose(out_t, ref_f, atol=3e-2, rtol=3e-2), "tiled: f32 ref mismatch"

    # 3) tiled path with streamed h k-slices (large-N fallback).
    out_s = jax.block_until_ready(
        sgc_forward(x, adj, weight, bias, nlayers=NLAYERS,
                    force_path="tiled", tm=256, tk=128, stream_h=True))
    assert jnp.allclose(out_s, ref_m, atol=2e-3, rtol=2e-3), "stream: bf16 ref mismatch"
    assert jnp.allclose(out_s, ref_f, atol=3e-2, rtol=3e-2), "stream: f32 ref mismatch"

    print("KERNEL_OK")
</pallas_src>

<mosaic_0001>
module attributes {stable_mosaic.version = 11 : i64} {
  func.func @_fused_kernel(%arg0: memref<512x128xbf16, #tpu.memory_space<vmem>>, %arg1: memref<128x128xbf16, #tpu.memory_space<vmem>>, %arg2: memref<512x512xbf16, #tpu.memory_space<vmem>>, %arg3: memref<1x128xf32, #tpu.memory_space<vmem>>, %arg4: memref<512x128xf32, #tpu.memory_space<vmem>>) attributes {dimension_semantics = [], scalar_prefetch = 0 : i64, scratch_operands = 0 : i64, tpu.core_type = #tpu.core_type<tc>} {
    %c0 = arith.constant 0 : index
    %c0_0 = arith.constant 0 : index
    %0 = vector.load %arg0[%c0, %c0_0] : memref<512x128xbf16, #tpu.memory_space<vmem>>, vector<512x128xbf16>
    %c0_1 = arith.constant 0 : index
    %c0_2 = arith.constant 0 : index
    %1 = vector.load %arg1[%c0_1, %c0_2] : memref<128x128xbf16, #tpu.memory_space<vmem>>, vector<128x128xbf16>
    %cst = arith.constant dense<0.000000e+00> : vector<512x128xf32>
    %2 = tpu.matmul %0, %1, %cst {dimension_numbers = #tpu.dot_dimension_numbers<[1], [0], [0], [1], [0, 0, 1, 1], [], []>} : vector<512x128xbf16>, vector<128x128xbf16>, vector<512x128xf32> -> vector<512x128xf32>
    %c0_3 = arith.constant 0 : index
    %c0_4 = arith.constant 0 : index
    %3 = vector.load %arg2[%c0_3, %c0_4] : memref<512x512xbf16, #tpu.memory_space<vmem>>, vector<512x512xbf16>
    %4 = arith.truncf %2 : vector<512x128xf32> to vector<512x128xbf16>
    %cst_5 = arith.constant dense<0.000000e+00> : vector<512x128xf32>
    %5 = tpu.matmul %3, %4, %cst_5 {dimension_numbers = #tpu.dot_dimension_numbers<[1], [0], [0], [1], [0, 0, 1, 1], [], []>} : vector<512x512xbf16>, vector<512x128xbf16>, vector<512x128xf32> -> vector<512x128xf32>
    %6 = arith.truncf %5 : vector<512x128xf32> to vector<512x128xbf16>
    %cst_6 = arith.constant dense<0.000000e+00> : vector<512x128xf32>
    %7 = tpu.matmul %3, %6, %cst_6 {dimension_numbers = #tpu.dot_dimension_numbers<[1], [0], [0], [1], [0, 0, 1, 1], [], []>} : vector<512x512xbf16>, vector<512x128xbf16>, vector<512x128xf32> -> vector<512x128xf32>
    %c0_7 = arith.constant 0 : index
    %c0_8 = arith.constant 0 : index
    %8 = vector.load %arg3[%c0_7, %c0_8] : memref<1x128xf32, #tpu.memory_space<vmem>>, vector<1x128xf32>
    %9 = vector.broadcast %8 : vector<1x128xf32> to vector<512x128xf32>
    %10 = arith.addf %7, %9 : vector<512x128xf32>
    %11 = tpu.iota {dimensions = array<i32: 1>} : vector<512x128xi32>
    %c10_i32 = arith.constant 10 : i32
    %12 = vector.broadcast %c10_i32 : i32 to vector<512x128xi32>
    %13 = arith.cmpi slt, %11, %12 : vector<512x128xi32>
    %cst_9 = arith.constant 0xFF800000 : f32
    %14 = vector.broadcast %cst_9 : f32 to vector<512x128xf32>
    %15 = arith.select %13, %10, %14 : vector<512x128xi1>, vector<512x128xf32>
    %cst_10 = arith.constant dense<0xFF800000> : vector<512xf32>
    %16 = vector.multi_reduction <maximumf>, %15, %cst_10 [1] : vector<512x128xf32> to vector<512xf32>
    %17 = vector.shape_cast %16 : vector<512xf32> to vector<512x1xf32>
    %18 = vector.broadcast %17 : vector<512x1xf32> to vector<512x128xf32>
    %19 = arith.subf %15, %18 : vector<512x128xf32>
    %20 = math.exp %19 : vector<512x128xf32>
    %cst_11 = arith.constant dense<0.000000e+00> : vector<512xf32>
    %21 = vector.multi_reduction <add>, %20, %cst_11 [1] : vector<512x128xf32> to vector<512xf32>
    %22 = vector.shape_cast %21 : vector<512xf32> to vector<512x1xf32>
    %23 = vector.broadcast %17 : vector<512x1xf32> to vector<512x128xf32>
    %24 = arith.subf %15, %23 : vector<512x128xf32>
    %25 = math.log %22 : vector<512x1xf32>
    %26 = vector.broadcast %25 : vector<512x1xf32> to vector<512x128xf32>
    %27 = arith.subf %24, %26 : vector<512x128xf32>
    %cst_12 = arith.constant 0.000000e+00 : f32
    %28 = vector.broadcast %cst_12 : f32 to vector<512x128xf32>
    %29 = arith.select %13, %27, %28 : vector<512x128xi1>, vector<512x128xf32>
    %c0_13 = arith.constant 0 : index
    %c0_14 = arith.constant 0 : index
    %30 = vector.load %arg4[%c0_13, %c0_14] : memref<512x128xf32, #tpu.memory_space<vmem>>, vector<512x128xf32>
    tpu.vector_store %arg4[%c0_13, %c0_14], %29 {strides = array<i32>} : memref<512x128xf32, #tpu.memory_space<vmem>>, vector<512x128xf32>,
    return
  }
}

</mosaic_0001>

<llo_original>
// kernel: sgc_forward.1
$region0: #{sgc_forward.1}
  #allocation0 [shape = 'u32[]', space=smem, size = 0x4, offset = 0x4, fixed_abs, tag = 'smem constant byte address 0x4 - core index']
  #allocation1 [shape = 'u32[144,128]{1,0:T(1,128)}', space=vmem, size = 0x12000, scoped, tag = 'internal scratch']
  %s0 = inlined_call_operand.vmem [shape: bf16[512,128], index: 0, kind: input, shape index: {}]
  %s1 = inlined_call_operand.vmem [shape: bf16[128,128], index: 1, kind: input, shape index: {}]
  %s2 = inlined_call_operand.vmem [shape: bf16[512,512], index: 2, kind: input, shape index: {}]
  %s3 = inlined_call_operand.vmem [shape: f32[1,128], index: 3, kind: input, shape index: {}]
  %s4 = inlined_call_operand.vmem [shape: f32[512,128], index: 4, kind: output, shape index: {}]
  %s5 = sld [smem:[#allocation0]]
  $region26: #{sgc_forward.1} parent=0
    _
  %s7 = ssub.s32 1, %s5
  %s8 = scalar_select 0, %s7, %s5
  // Predicated region
  $region2: #{sgc_forward.1} parent=0 // pred_check
    _
  $region3: #{sgc_forward.1} parent=0 // pred_check_branch
    %10 = sbr.rel (0) target = $region5
  $region4: #{sgc_forward.1} parent=0 // pred_region
    _
  $region5: #{sgc_forward.1} parent=0 // pred_fallthru
    _
  // Predicated region
  $region6: #{sgc_forward.1} parent=0 // pred_check
    _
  $region7: #{sgc_forward.1} parent=0 // pred_check_branch
    %12 = sbr.rel (0) target = $region9
  $region8: #{sgc_forward.1} parent=0 // pred_region
    _
  $region9: #{sgc_forward.1} parent=0 // pred_fallthru
    _
  // Predicated region
  $region10: #{sgc_forward.1} parent=0 // pred_check
    _
  $region11: #{sgc_forward.1} parent=0 // pred_check_branch
    %14 = sbr.rel (0) target = $region13
  $region12: #{sgc_forward.1} parent=0 // pred_region
    _
  $region13: #{sgc_forward.1} parent=0 // pred_fallthru
    _
  // Predicated region
  $region14: #{sgc_forward.1} parent=0 // pred_check
    _
  $region15: #{sgc_forward.1} parent=0 // pred_check_branch
    %16 = sbr.rel (0) target = $region17
  $region16: #{sgc_forward.1} parent=0 // pred_region
    _
  $region17: #{sgc_forward.1} parent=0 // pred_fallthru
    _
  %v18 = vld [vmem:[%s0] sm:$0xf]
  %v19 = vld [vmem:[%s0 + $0x4] sm:$0xf]
  %v20 = vld [vmem:[%s0 + $0x8] sm:$0xf]
  %v21 = vld [vmem:[%s0 + $0xc] sm:$0xf]
  %v22 = vld [vmem:[%s0 + $0x10] sm:$0xf]
  %v23 = vld [vmem:[%s0 + $0x14] sm:$0xf]
  %v24 = vld [vmem:[%s0 + $0x18] sm:$0xf]
  %v25 = vld [vmem:[%s0 + $0x1c] sm:$0xf]
  %v26 = vld [vmem:[%s0 + $0x20] sm:$0xf]
  %v27 = vld [vmem:[%s0 + $0x24] sm:$0xf]
  %v28 = vld [vmem:[%s0 + $0x28] sm:$0xf]
  %v29 = vld [vmem:[%s0 + $0x2c] sm:$0xf]
  %v30 = vld [vmem:[%s0 + $0x30] sm:$0xf]
  %v31 = vld [vmem:[%s0 + $0x34] sm:$0xf]
  %v32 = vld [vmem:[%s0 + $0x38] sm:$0xf]
  %v33 = vld [vmem:[%s0 + $0x3c] sm:$0xf]
  %v34 = vld [vmem:[%s0 + $0x40] sm:$0xf]
  %v35 = vld [vmem:[%s0 + $0x44] sm:$0xf]
  %v36 = vld [vmem:[%s0 + $0x48] sm:$0xf]
  %v37 = vld [vmem:[%s0 + $0x4c] sm:$0xf]
  %v38 = vld [vmem:[%s0 + $0x50] sm:$0xf]
  %v39 = vld [vmem:[%s0 + $0x54] sm:$0xf]
  %v40 = vld [vmem:[%s0 + $0x58] sm:$0xf]
  %v41 = vld [vmem:[%s0 + $0x5c] sm:$0xf]
  %v42 = vld [vmem:[%s0 + $0x60] sm:$0xf]
  %v43 = vld [vmem:[%s0 + $0x64] sm:$0xf]
  %v44 = vld [vmem:[%s0 + $0x68] sm:$0xf]
  %v45 = vld [vmem:[%s0 + $0x6c] sm:$0xf]
  %v46 = vld [vmem:[%s0 + $0x70] sm:$0xf]
  %v47 = vld [vmem:[%s0 + $0x74] sm:$0xf]
  %v48 = vld [vmem:[%s0 + $0x78] sm:$0xf]
  %v49 = vld [vmem:[%s0 + $0x7c] sm:$0xf]
  %v50 = vld [vmem:[%s0 + $0x80] sm:$0xf]
  %v51 = vld [vmem:[%s0 + $0x84] sm:$0xf]
  %v52 = vld [vmem:[%s0 + $0x88] sm:$0xf]
  %v53 = vld [vmem:[%s0 + $0x8c] sm:$0xf]
  %v54 = vld [vmem:[%s0 + $0x90] sm:$0xf]
  %v55 = vld [vmem:[%s0 + $0x94] sm:$0xf]
  %v56 = vld [vmem:[%s0 + $0x98] sm:$0xf]
  %v57 = vld [vmem:[%s0 + $0x9c] sm:$0xf]
  %v58 = vld [vmem:[%s0 + $0xa0] sm:$0xf]
  %v59 = vld [vmem:[%s0 + $0xa4] sm:$0xf]
  %v60 = vld [vmem:[%s0 + $0xa8] sm:$0xf]
  %v61 = vld [vmem:[%s0 + $0xac] sm:$0xf]
  %v62 = vld [vmem:[%s0 + $0xb0] sm:$0xf]
  %v63 = vld [vmem:[%s0 + $0xb4] sm:$0xf]
  %v64 = vld [vmem:[%s0 + $0xb8] sm:$0xf]
  %v65 = vld [vmem:[%s0 + $0xbc] sm:$0xf]
  %v66 = vld [vmem:[%s0 + $0xc0] sm:$0xf]
  %v67 = vld [vmem:[%s0 + $0xc4] sm:$0xf]
  %v68 = vld [vmem:[%s0 + $0xc8] sm:$0xf]
  %v69 = vld [vmem:[%s0 + $0xcc] sm:$0xf]
  %v70 = vld [vmem:[%s0 + $0xd0] sm:$0xf]
  %v71 = vld [vmem:[%s0 + $0xd4] sm:$0xf]
  %v72 = vld [vmem:[%s0 + $0xd8] sm:$0xf]
  %v73 = vld [vmem:[%s0 + $0xdc] sm:$0xf]
  %v74 = vld [vmem:[%s0 + $0xe0] sm:$0xf]
  %v75 = vld [vmem:[%s0 + $0xe4] sm:$0xf]
  %v76 = vld [vmem:[%s0 + $0xe8] sm:$0xf]
  %v77 = vld [vmem:[%s0 + $0xec] sm:$0xf]
  %v78 = vld [vmem:[%s0 + $0xf0] sm:$0xf]
  %v79 = vld [vmem:[%s0 + $0xf4] sm:$0xf]
  %v80 = vld [vmem:[%s0 + $0xf8] sm:$0xf]
  %v81 = vld [vmem:[%s0 + $0xfc] sm:$0xf]
  %v82 = vld [vmem:[%s1] sm:$0xf]
  %v83 = vld [vmem:[%s1 + $0x4] sm:$0xf]
  %v84 = vld [vmem:[%s1 + $0x8] sm:$0xf]
  %v85 = vld [vmem:[%s1 + $0xc] sm:$0xf]
  %v86 = vld [vmem:[%s1 + $0x10] sm:$0xf]
  %v87 = vld [vmem:[%s1 + $0x14] sm:$0xf]
  %v88 = vld [vmem:[%s1 + $0x18] sm:$0xf]
  %v89 = vld [vmem:[%s1 + $0x1c] sm:$0xf]
  %v90 = vld [vmem:[%s1 + $0x20] sm:$0xf]
  %v91 = vld [vmem:[%s1 + $0x24] sm:$0xf]
  %v92 = vld [vmem:[%s1 + $0x28] sm:$0xf]
  %v93 = vld [vmem:[%s1 + $0x2c] sm:$0xf]
  %v94 = vld [vmem:[%s1 + $0x30] sm:$0xf]
  %v95 = vld [vmem:[%s1 + $0x34] sm:$0xf]
  %v96 = vld [vmem:[%s1 + $0x38] sm:$0xf]
  %v97 = vld [vmem:[%s1 + $0x3c] sm:$0xf]
  %v162 = vunpack.c.l.b16 %v18
  %v163 = vunpack.c.l.b16 %v19
  %v164 = vunpack.c.l.b16 %v20
  %v165 = vunpack.c.l.b16 %v21
  %v166 = vunpack.c.l.b16 %v22
  %v167 = vunpack.c.l.b16 %v23
  %v168 = vunpack.c.l.b16 %v24
  %v169 = vunpack.c.l.b16 %v25
  %v170 = vunpack.c.l.b16 %v26
  %v171 = vunpack.c.l.b16 %v27
  %v172 = vunpack.c.l.b16 %v28
  %v173 = vunpack.c.l.b16 %v29
  %v174 = vunpack.c.l.b16 %v30
  %v175 = vunpack.c.l.b16 %v31
  %v176 = vunpack.c.l.b16 %v32
  %v177 = vunpack.c.l.b16 %v33
  %v178 = vunpack.c.l.b16 %v34
  %v179 = vunpack.c.l.b16 %v35
  %v180 = vunpack.c.l.b16 %v36
  %v181 = vunpack.c.l.b16 %v37
  %v182 = vunpack.c.l.b16 %v38
  %v183 = vunpack.c.l.b16 %v39
  %v184 = vunpack.c.l.b16 %v40
  %v185 = vunpack.c.l.b16 %v41
  %v186 = vunpack.c.l.b16 %v42
  %v187 = vunpack.c.l.b16 %v43
  %v188 = vunpack.c.l.b16 %v44
  %v189 = vunpack.c.l.b16 %v45
  %v190 = vunpack.c.l.b16 %v46
  %v191 = vunpack.c.l.b16 %v47
  %v192 = vunpack.c.l.b16 %v48
  %v193 = vunpack.c.l.b16 %v49
  %v194 = vunpack.c.l.b16 %v50
  %v195 = vunpack.c.l.b16 %v51
  %v196 = vunpack.c.l.b16 %v52
  %v197 = vunpack.c.l.b16 %v53
  %v198 = vunpack.c.l.b16 %v54
  %v199 = vunpack.c.l.b16 %v55
  %v200 = vunpack.c.l.b16 %v56
  %v201 = vunpack.c.l.b16 %v57
  %v202 = vunpack.c.l.b16 %v58
  %v203 = vunpack.c.l.b16 %v59
  %v204 = vunpack.c.l.b16 %v60
  %v205 = vunpack.c.l.b16 %v61
  %v206 = vunpack.c.l.b16 %v62
  %v207 = vunpack.c.l.b16 %v63
  %v208 = vunpack.c.l.b16 %v64
  %v209 = vunpack.c.l.b16 %v65
  %v210 = vunpack.c.l.b16 %v66
  %v211 = vunpack.c.l.b16 %v67
  %v212 = vunpack.c.l.b16 %v68
  %v213 = vunpack.c.l.b16 %v69
  %v214 = vunpack.c.l.b16 %v70
  %v215 = vunpack.c.l.b16 %v71
  %v216 = vunpack.c.l.b16 %v72
  %v217 = vunpack.c.l.b16 %v73
  %v218 = vunpack.c.l.b16 %v74
  %v219 = vunpack.c.l.b16 %v75
  %v220 = vunpack.c.l.b16 %v76
  %v221 = vunpack.c.l.b16 %v77
  %v222 = vunpack.c.l.b16 %v78
  %v223 = vunpack.c.l.b16 %v79
  %v224 = vunpack.c.l.b16 %v80
  %v225 = vunpack.c.l.b16 %v81
  %v226 = vpack.c.b16 %v163, %v162
  %v227 = vpack.c.b16 %v165, %v164
  %v228 = vpack.c.b16 %v167, %v166
  %v229 = vpack.c.b16 %v169, %v168
  %v230 = vpack.c.b16 %v171, %v170
  %v231 = vpack.c.b16 %v173, %v172
  %v232 = vpack.c.b16 %v175, %v174
  %v233 = vpack.c.b16 %v177, %v176
  %v234 = vpack.c.b16 %v179, %v178
  %v235 = vpack.c.b16 %v181, %v180
  %v236 = vpack.c.b16 %v183, %v182
  %v237 = vpack.c.b16 %v185, %v184
  %v238 = vpack.c.b16 %v187, %v186
  %v239 = vpack.c.b16 %v189, %v188
  %v240 = vpack.c.b16 %v191, %v190
  %v241 = vpack.c.b16 %v193, %v192
  %v242 = vpack.c.b16 %v195, %v194
  %v243 = vpack.c.b16 %v197, %v196
  %v244 = vpack.c.b16 %v199, %v198
  %v245 = vpack.c.b16 %v201, %v200
  %v246 = vpack.c.b16 %v203, %v202
  %v247 = vpack.c.b16 %v205, %v204
  %v248 = vpack.c.b16 %v207, %v206
  %v249 = vpack.c.b16 %v209, %v208
  %v250 = vpack.c.b16 %v211, %v210
  %v251 = vpack.c.b16 %v213, %v212
  %v252 = vpack.c.b16 %v215, %v214
  %v253 = vpack.c.b16 %v217, %v216
  %v254 = vpack.c.b16 %v219, %v218
  %v255 = vpack.c.b16 %v221, %v220
  %v256 = vpack.c.b16 %v223, %v222
  %v257 = vpack.c.b16 %v225, %v224
  %v306 = vunpack.c.l.b16 %v82
  %v307 = vunpack.c.l.b16 %v83
  %v308 = vunpack.c.l.b16 %v84
  %v309 = vunpack.c.l.b16 %v85
  %v310 = vunpack.c.l.b16 %v86
  %v311 = vunpack.c.l.b16 %v87
  %v312 = vunpack.c.l.b16 %v88
  %v313 = vunpack.c.l.b16 %v89
  %v314 = vunpack.c.l.b16 %v90
  %v315 = vunpack.c.l.b16 %v91
  %v316 = vunpack.c.l.b16 %v92
  %v317 = vunpack.c.l.b16 %v93
  %v318 = vunpack.c.l.b16 %v94
  %v319 = vunpack.c.l.b16 %v95
  %v320 = vunpack.c.l.b16 %v96
  %v321 = vunpack.c.l.b16 %v97
  %v322 = vpack.c.b16 %v307, %v306
  %v323 = vpack.c.b16 %v309, %v308
  %v324 = vpack.c.b16 %v311, %v310
  %v325 = vpack.c.b16 %v313, %v312
  %v326 = vpack.c.b16 %v315, %v314
  %v327 = vpack.c.b16 %v317, %v316
  %v328 = vpack.c.b16 %v319, %v318
  %v329 = vpack.c.b16 %v321, %v320
  %338 = vmatprep.subr.bf16.mxu0 0
  %339 = vmatpush1.bf16.msra.mxu0 %v322
  %340 = vmatprep.subr.bf16.mxu0 0
  %341 = vmatpush1.bf16.msra.mxu0 %v323
  %342 = vmatprep.subr.bf16.mxu0 0
  %343 = vmatpush1.bf16.msra.mxu0 %v324
  %344 = vmatprep.subr.bf16.mxu0 0
  %345 = vmatpush1.bf16.msra.mxu0 %v325
  %346 = vmatprep.subr.bf16.mxu0 0
  %347 = vmatpush1.bf16.msra.mxu0 %v326
  %348 = vmatprep.subr.bf16.mxu0 0
  %349 = vmatpush1.bf16.msra.mxu0 %v327
  %350 = vmatprep.subr.bf16.mxu0 0
  %351 = vmatpush1.bf16.msra.mxu0 %v328
  %352 = vmatprep.subr.bf16.mxu0 0
  %353 = vmatpush1.bf16.msra.mxu0 %v329
  %354 = vmatprep.subr.bf16.mxu0 0
  %355 = vmatpush1.bf16.msra.mxu0 0
  %356 = vmatprep.subr.bf16.mxu0 0
  %357 = vmatpush1.bf16.msra.mxu0 0
  %358 = vmatprep.subr.bf16.mxu0 0
  %359 = vmatpush1.bf16.msra.mxu0 0
  %360 = vmatprep.subr.bf16.mxu0 0
  %361 = vmatpush1.bf16.msra.mxu0 0
  %362 = vmatprep.subr.bf16.mxu0 0
  %363 = vmatpush1.bf16.msra.mxu0 0
  %364 = vmatprep.subr.bf16.mxu0 0
  %365 = vmatpush1.bf16.msra.mxu0 0
  %366 = vmatprep.subr.bf16.mxu0 0
  %367 = vmatpush1.bf16.msra.mxu0 0
  %368 = vmatprep.subr.bf16.mxu0 0
  %369 = vmatpush1.bf16.msra.mxu0 0
  %370 = vmatprep.mubr.bf16.mxu0 0
  %371 = vmatmul.mubr.bf16.gmra.mrb[0].mxu0 %v226
  %v372 = vpop.f32.mrb[0].mxu0
  %v373 = vadd.f32 0.0, %v372
  %v374 = vpop.f32.mrb[0].mxu0
  %v375 = vpop.f32.mrb[0].mxu0
  %v376 = vadd.f32 0.0, %v375
  %v377 = vpop.f32.mrb[0].mxu0
  %378 = vmatprep.mubr.bf16.mxu0 0
  %379 = vmatmul.mubr.bf16.gmra.mrb[0].mxu0 %v227
  %v380 = vpop.f32.mrb[0].mxu0
  %v381 = vadd.f32 0.0, %v380
  %v382 = vpop.f32.mrb[0].mxu0
  %v383 = vpop.f32.mrb[0].mxu0
  %v384 = vadd.f32 0.0, %v383
  %v385 = vpop.f32.mrb[0].mxu0
  %386 = vmatprep.mubr.bf16.mxu0 0
  %387 = vmatmul.mubr.bf16.gmra.mrb[0].mxu0 %v228
  %v388 = vpop.f32.mrb[0].mxu0
  %v389 = vadd.f32 0.0, %v388
  %v390 = vpop.f32.mrb[0].mxu0
  %v391 = vpop.f32.mrb[0].mxu0
  %v392 = vadd.f32 0.0, %v391
  %v393 = vpop.f32.mrb[0].mxu0
  %394 = vmatprep.mubr.bf16.mxu0 0
  %395 = vmatmul.mubr.bf16.gmra.mrb[0].mxu0 %v229
  %v396 = vpop.f32.mrb[0].mxu0
  %v397 = vadd.f32 0.0, %v396
  %v398 = vpop.f32.mrb[0].mxu0
  %v399 = vpop.f32.mrb[0].mxu0
  %v400 = vadd.f32 0.0, %v399
  %v401 = vpop.f32.mrb[0].mxu0
  %402 = vmatprep.mubr.bf16.mxu0 0
  %403 = vmatmul.mubr.bf16.gmra.mrb[0].mxu0 %v230
  %v404 = vpop.f32.mrb[0].mxu0
  %v405 = vadd.f32 0.0, %v404
  %v406 = vpop.f32.mrb[0].mxu0
  %v407 = vpop.f32.mrb[0].mxu0
  %v408 = vadd.f32 0.0, %v407
  %v409 = vpop.f32.mrb[0].mxu0
  %410 = vmatprep.mubr.bf16.mxu0 0
  %411 = vmatmul.mubr.bf16.gmra.mrb[0].mxu0 %v231
  %v412 = vpop.f32.mrb[0].mxu0
  %v413 = vadd.f32 0.0, %v412
  %v414 = vpop.f32.mrb[0].mxu0
  %v415 = vpop.f32.mrb[0].mxu0
  %v416 = vadd.f32 0.0, %v415
  %v417 = vpop.f32.mrb[0].mxu0
  %418 = vmatprep.mubr.bf16.mxu0 0
  %419 = vmatmul.mubr.bf16.gmra.mrb[0].mxu0 %v232
  %v420 = vpop.f32.mrb[0].mxu0
  %v421 = vadd.f32 0.0, %v420
  %v422 = vpop.f32.mrb[0].mxu0
  %v423 = vpop.f32.mrb[0].mxu0
  %v424 = vadd.f32 0.0, %v423
  %v425 = vpop.f32.mrb[0].mxu0
  %426 = vmatprep.mubr.bf16.mxu0 0
  %427 = vmatmul.mubr.bf16.gmra.mrb[0].mxu0 %v233
  %v428 = vpop.f32.mrb[0].mxu0
  %v429 = vadd.f32 0.0, %v428
  %v430 = vpop.f32.mrb[0].mxu0
  %v431 = vpop.f32.mrb[0].mxu0
  %v432 = vadd.f32 0.0, %v431
  %v433 = vpop.f32.mrb[0].mxu0
  %434 = vmatprep.mubr.bf16.mxu0 0
  %435 = vmatmul.mubr.bf16.gmra.mrb[0].mxu0 %v234
  %v436 = vpop.f32.mrb[0].mxu0
  %v437 = vadd.f32 0.0, %v436
  %v438 = vpop.f32.mrb[0].mxu0
  %v439 = vpop.f32.mrb[0].mxu0
  %v440 = vadd.f32 0.0, %v439
  %v441 = vpop.f32.mrb[0].mxu0
  %442 = vmatprep.mubr.bf16.mxu0 0
  %443 = vmatmul.mubr.bf16.gmra.mrb[0].mxu0 %v235
  %v444 = vpop.f32.mrb[0].mxu0
  %v445 = vadd.f32 0.0, %v444
  %v446 = vpop.f32.mrb[0].mxu0
  %v447 = vpop.f32.mrb[0].mxu0
  %v448 = vadd.f32 0.0, %v447
  %v449 = vpop.f32.mrb[0].mxu0
  %450 = vmatprep.mubr.bf16.mxu0 0
  %451 = vmatmul.mubr.bf16.gmra.mrb[0].mxu0 %v236
  %v452 = vpop.f32.mrb[0].mxu0
  %v453 = vadd.f32 0.0, %v452
  %v454 = vpop.f32.mrb[0].mxu0
  %v455 = vpop.f32.mrb[0].mxu0
  %v456 = vadd.f32 0.0, %v455
  %v457 = vpop.f32.mrb[0].mxu0
  %458 = vmatprep.mubr.bf16.mxu0 0
  %459 = vmatmul.mubr.bf16.gmra.mrb[0].mxu0 %v237
  %v460 = vpop.f32.mrb[0].mxu0
  %v461 = vadd.f32 0.0, %v460
  %v462 = vpop.f32.mrb[0].mxu0
  %v463 = vpop.f32.mrb[0].mxu0
  %v464 = vadd.f32 0.0, %v463
  %v465 = vpop.f32.mrb[0].mxu0
  %466 = vmatprep.mubr.bf16.mxu0 0
  %467 = vmatmul.mubr.bf16.gmra.mrb[0].mxu0 %v238
  %v468 = vpop.f32.mrb[0].mxu0
  %v469 = vadd.f32 0.0, %v468
  %v470 = vpop.f32.mrb[0].mxu0
  %v471 = vpop.f32.mrb[0].mxu0
  %v472 = vadd.f32 0.0, %v471
  %v473 = vpop.f32.mrb[0].mxu0
  %474 = vmatprep.mubr.bf16.mxu0 0
  %475 = vmatmul.mubr.bf16.gmra.mrb[0].mxu0 %v239
  %v476 = vpop.f32.mrb[0].mxu0
  %v477 = vadd.f32 0.0, %v476
  %v478 = vpop.f32.mrb[0].mxu0
  %v479 = vpop.f32.mrb[0].mxu0
  %v480 = vadd.f32 0.0, %v479
  %v481 = vpop.f32.mrb[0].mxu0
  %482 = vmatprep.mubr.bf16.mxu0 0
  %483 = vmatmul.mubr.bf16.gmra.mrb[0].mxu0 %v240
  %v484 = vpop.f32.mrb[0].mxu0
  %v485 = vadd.f32 0.0, %v484
  %v486 = vpop.f32.mrb[0].mxu0
  %v487 = vpop.f32.mrb[0].mxu0
  %v488 = vadd.f32 0.0, %v487
  %v489 = vpop.f32.mrb[0].mxu0
  %490 = vmatprep.mubr.bf16.mxu0 0
  %491 = vmatmul.mubr.bf16.gmra.mrb[0].mxu0 %v241
  %v492 = vpop.f32.mrb[0].mxu0
  %v493 = vadd.f32 0.0, %v492
  %v494 = vpop.f32.mrb[0].mxu0
  %v495 = vpop.f32.mrb[0].mxu0
  %v496 = vadd.f32 0.0, %v495
  %v497 = vpop.f32.mrb[0].mxu0
  %498 = vmatprep.mubr.bf16.mxu0 0
  %499 = vmatmul.mubr.bf16.gmra.mrb[0].mxu0 %v242
  %v500 = vpop.f32.mrb[0].mxu0
  %v501 = vadd.f32 0.0, %v500
  %v502 = vpop.f32.mrb[0].mxu0
  %v503 = vpop.f32.mrb[0].mxu0
  %v504 = vadd.f32 0.0, %v503
  %v505 = vpop.f32.mrb[0].mxu0
  %506 = vmatprep.mubr.bf16.mxu0 0
  %507 = vmatmul.mubr.bf16.gmra.mrb[0].mxu0 %v243
  %v508 = vpop.f32.mrb[0].mxu0
  %v509 = vadd.f32 0.0, %v508
  %v510 = vpop.f32.mrb[0].mxu0
  %v511 = vpop.f32.mrb[0].mxu0
  %v512 = vadd.f32 0.0, %v511
  %v513 = vpop.f32.mrb[0].mxu0
  %514 = vmatprep.mubr.bf16.mxu0 0
  %515 = vmatmul.mubr.bf16.gmra.mrb[0].mxu0 %v244
  %v516 = vpop.f32.mrb[0].mxu0
  %v517 = vadd.f32 0.0, %v516
  %v518 = vpop.f32.mrb[0].mxu0
  %v519 = vpop.f32.mrb[0].mxu0
  %v520 = vadd.f32 0.0, %v519
  %v521 = vpop.f32.mrb[0].mxu0
  %522 = vmatprep.mubr.bf16.mxu0 0
  %523 = vmatmul.mubr.bf16.gmra.mrb[0].mxu0 %v245
  %v524 = vpop.f32.mrb[0].mxu0
  %v525 = vadd.f32 0.0, %v524
  %v526 = vpop.f32.mrb[0].mxu0
  %v527 = vpop.f32.mrb[0].mxu0
  %v528 = vadd.f32 0.0, %v527
  %v529 = vpop.f32.mrb[0].mxu0
  %530 = vmatprep.mubr.bf16.mxu0 0
  %531 = vmatmul.mubr.bf16.gmra.mrb[0].mxu0 %v246
  %v532 = vpop.f32.mrb[0].mxu0
  %v533 = vadd.f32 0.0, %v532
  %v534 = vpop.f32.mrb[0].mxu0
  %v535 = vpop.f32.mrb[0].mxu0
  %v536 = vadd.f32 0.0, %v535
  %v537 = vpop.f32.mrb[0].mxu0
  %538 = vmatprep.mubr.bf16.mxu0 0
  %539 = vmatmul.mubr.bf16.gmra.mrb[0].mxu0 %v247
  %v540 = vpop.f32.mrb[0].mxu0
  %v541 = vadd.f32 0.0, %v540
  %v542 = vpop.f32.mrb[0].mxu0
  %v543 = vpop.f32.mrb[0].mxu0
  %v544 = vadd.f32 0.0, %v543
  %v545 = vpop.f32.mrb[0].mxu0
  %546 = vmatprep.mubr.bf16.mxu0 0
  %547 = vmatmul.mubr.bf16.gmra.mrb[0].mxu0 %v248
  %v548 = vpop.f32.mrb[0].mxu0
  %v549 = vadd.f32 0.0, %v548
  %v550 = vpop.f32.mrb[0].mxu0
  %v551 = vpop.f32.mrb[0].mxu0
  %v552 = vadd.f32 0.0, %v551
  %v553 = vpop.f32.mrb[0].mxu0
  %554 = vmatprep.mubr.bf16.mxu0 0
  %555 = vmatmul.mubr.bf16.gmra.mrb[0].mxu0 %v249
  %v556 = vpop.f32.mrb[0].mxu0
  %v557 = vadd.f32 0.0, %v556
  %v558 = vpop.f32.mrb[0].mxu0
  %v559 = vpop.f32.mrb[0].mxu0
  %v560 = vadd.f32 0.0, %v559
  %v561 = vpop.f32.mrb[0].mxu0
  %562 = vmatprep.mubr.bf16.mxu0 0
  %563 = vmatmul.mubr.bf16.gmra.mrb[0].mxu0 %v250
  %v564 = vpop.f32.mrb[0].mxu0
  %v565 = vadd.f32 0.0, %v564
  %v566 = vpop.f32.mrb[0].mxu0
  %v567 = vpop.f32.mrb[0].mxu0
  %v568 = vadd.f32 0.0, %v567
  %v569 = vpop.f32.mrb[0].mxu0
  %570 = vmatprep.mubr.bf16.mxu0 0
  %571 = vmatmul.mubr.bf16.gmra.mrb[0].mxu0 %v251
  %v572 = vpop.f32.mrb[0].mxu0
  %v573 = vadd.f32 0.0, %v572
  %v574 = vpop.f32.mrb[0].mxu0
  %v575 = vpop.f32.mrb[0].mxu0
  %v576 = vadd.f32 0.0, %v575
  %v577 = vpop.f32.mrb[0].mxu0
  %578 = vmatprep.mubr.bf16.mxu0 0
  %579 = vmatmul.mubr.bf16.gmra.mrb[0].mxu0 %v252
  %v580 = vpop.f32.mrb[0].mxu0
  %v581 = vadd.f32 0.0, %v580
  %v582 = vpop.f32.mrb[0].mxu0
  %v583 = vpop.f32.mrb[0].mxu0
  %v584 = vadd.f32 0.0, %v583
  %v585 = vpop.f32.mrb[0].mxu0
  %586 = vmatprep.mubr.bf16.mxu0 0
  %587 = vmatmul.mubr.bf16.gmra.mrb[0].mxu0 %v253
  %v588 = vpop.f32.mrb[0].mxu0
  %v589 = vadd.f32 0.0, %v588
  %v590 = vpop.f32.mrb[0].mxu0
  %v591 = vpop.f32.mrb[0].mxu0
  %v592 = vadd.f32 0.0, %v591
  %v593 = vpop.f32.mrb[0].mxu0
  %594 = vmatprep.mubr.bf16.mxu0 0
  %595 = vmatmul.mubr.bf16.gmra.mrb[0].mxu0 %v254
  %v596 = vpop.f32.mrb[0].mxu0
  %v597 = vadd.f32 0.0, %v596
  %v598 = vpop.f32.mrb[0].mxu0
  %v599 = vpop.f32.mrb[0].mxu0
  %v600 = vadd.f32 0.0, %v599
  %v601 = vpop.f32.mrb[0].mxu0
  %602 = vmatprep.mubr.bf16.mxu0 0
  %603 = vmatmul.mubr.bf16.gmra.mrb[0].mxu0 %v255
  %v604 = vpop.f32.mrb[0].mxu0
  %v605 = vadd.f32 0.0, %v604
  %v606 = vpop.f32.mrb[0].mxu0
  %v607 = vpop.f32.mrb[0].mxu0
  %v608 = vadd.f32 0.0, %v607
  %v609 = vpop.f32.mrb[0].mxu0
  %610 = vmatprep.mubr.bf16.mxu0 0
  %611 = vmatmul.mubr.bf16.gmra.mrb[0].mxu0 %v256
  %v612 = vpop.f32.mrb[0].mxu0
  %v613 = vadd.f32 0.0, %v612
  %v614 = vpop.f32.mrb[0].mxu0
  %v615 = vpop.f32.mrb[0].mxu0
  %v616 = vadd.f32 0.0, %v615
  %v617 = vpop.f32.mrb[0].mxu0
  %618 = vmatprep.mubr.bf16.mxu0 0
  %619 = vmatmul.mubr.bf16.gmra.mrb[0].mxu0 %v257
  %v620 = vpop.f32.mrb[0].mxu0
  %v621 = vadd.f32 0.0, %v620
  %v622 = vpop.f32.mrb[0].mxu0
  %v623 = vpop.f32.mrb[0].mxu0
  %v624 = vadd.f32 0.0, %v623
  %v625 = vpop.f32.mrb[0].mxu0
  %626 = vdwg.mxu0
  %v627 = vld [vmem:[%s2] sm:$0xff]
  %v628 = vld [vmem:[%s2 + $0x8] sm:$0xff]
  %v629 = vld [vmem:[%s2 + $0x10] sm:$0xff]
  %v630 = vld [vmem:[%s2 + $0x18] sm:$0xff]
  %v631 = vld [vmem:[%s2 + $0x20] sm:$0xff]
  %v632 = vld [vmem:[%s2 + $0x28] sm:$0xff]
  %v633 = vld [vmem:[%s2 + $0x30] sm:$0xff]
  %v634 = vld [vmem:[%s2 + $0x38] sm:$0xff]
  %v635 = vld [vmem:[%s2 + $0x40] sm:$0xff]
  %v636 = vld [vmem:[%s2 + $0x48] sm:$0xff]
  %v637 = vld [vmem:[%s2 + $0x50] sm:$0xff]
  %v638 = vld [vmem:[%s2 + $0x58] sm:$0xff]
  %v639 = vld [vmem:[%s2 + $0x60] sm:$0xff]
  %v640 = vld [vmem:[%s2 + $0x68] sm:$0xff]
  %v641 = vld [vmem:[%s2 + $0x70] sm:$0xff]
  %v642 = vld [vmem:[%s2 + $0x78] sm:$0xff]
  %v643 = vld [vmem:[%s2 + $0x80] sm:$0xff]
  %v644 = vld [vmem:[%s2 + $0x88] sm:$0xff]
  %v645 = vld [vmem:[%s2 + $0x90] sm:$0xff]
  %v646 = vld [vmem:[%s2 + $0x98] sm:$0xff]
  %v647 = vld [vmem:[%s2 + $0xa0] sm:$0xff]
  %v648 = vld [vmem:[%s2 + $0xa8] sm:$0xff]
  %v649 = vld [vmem:[%s2 + $0xb0] sm:$0xff]
  %v650 = vld [vmem:[%s2 + $0xb8] sm:$0xff]
  %v651 = vld [vmem:[%s2 + $0xc0] sm:$0xff]
  %v652 = vld [vmem:[%s2 + $0xc8] sm:$0xff]
  %v653 = vld [vmem:[%s2 + $0xd0] sm:$0xff]
  %v654 = vld [vmem:[%s2 + $0xd8] sm:$0xff]
  %v655 = vld [vmem:[%s2 + $0xe0] sm:$0xff]
  %v656 = vld [vmem:[%s2 + $0xe8] sm:$0xff]
  %v657 = vld [vmem:[%s2 + $0xf0] sm:$0xff]
  %v658 = vld [vmem:[%s2 + $0xf8] sm:$0xff]
  %v659 = vld [vmem:[%s2 + $0x100] sm:$0xff]
  %v660 = vld [vmem:[%s2 + $0x108] sm:$0xff]
  %v661 = vld [vmem:[%s2 + $0x110] sm:$0xff]
  %v662 = vld [vmem:[%s2 + $0x118] sm:$0xff]
  %v663 = vld [vmem:[%s2 + $0x120] sm:$0xff]
  %v664 = vld [vmem:[%s2 + $0x128] sm:$0xff]
  %v665 = vld [vmem:[%s2 + $0x130] sm:$0xff]
  %v666 = vld [vmem:[%s2 + $0x138] sm:$0xff]
  %v667 = vld [vmem:[%s2 + $0x140] sm:$0xff]
  %v668 = vld [vmem:[%s2 + $0x148] sm:$0xff]
  %v669 = vld [vmem:[%s2 + $0x150] sm:$0xff]
  %v670 = vld [vmem:[%s2 + $0x158] sm:$0xff]
  %v671 = vld [vmem:[%s2 + $0x160] sm:$0xff]
  %v672 = vld [vmem:[%s2 + $0x168] sm:$0xff]
  %v673 = vld [vmem:[%s2 + $0x170] sm:$0xff]
  %v674 = vld [vmem:[%s2 + $0x178] sm:$0xff]
  %v675 = vld [vmem:[%s2 + $0x180] sm:$0xff]
  %v676 = vld [vmem:[%s2 + $0x188] sm:$0xff]
  %v677 = vld [vmem:[%s2 + $0x190] sm:$0xff]
  %v678 = vld [vmem:[%s2 + $0x198] sm:$0xff]
  %v679 = vld [vmem:[%s2 + $0x1a0] sm:$0xff]
  %v680 = vld [vmem:[%s2 + $0x1a8] sm:$0xff]
  %v681 = vld [vmem:[%s2 + $0x1b0] sm:$0xff]
  %v682 = vld [vmem:[%s2 + $0x1b8] sm:$0xff]
  %v683 = vld [vmem:[%s2 + $0x1c0] sm:$0xff]
  %v684 = vld [vmem:[%s2 + $0x1c8] sm:$0xff]
  %v685 = vld [vmem:[%s2 + $0x1d0] sm:$0xff]
  %v686 = vld [vmem:[%s2 + $0x1d8] sm:$0xff]
  %v687 = vld [vmem:[%s2 + $0x1e0] sm:$0xff]
  %v688 = vld [vmem:[%s2 + $0x1e8] sm:$0xff]
  %v689 = vld [vmem:[%s2 + $0x1f0] sm:$0xff]
  %v690 = vld [vmem:[%s2 + $0x1f8] sm:$0xff]
  %v691 = vld [vmem:[%s2 + $0x200] sm:$0xff]
  %v692 = vld [vmem:[%s2 + $0x208] sm:$0xff]
  %v693 = vld [vmem:[%s2 + $0x210] sm:$0xff]
  %v694 = vld [vmem:[%s2 + $0x218] sm:$0xff]
  %v695 = vld [vmem:[%s2 + $0x220] sm:$0xff]
  %v696 = vld [vmem:[%s2 + $0x228] sm:$0xff]
  %v697 = vld [vmem:[%s2 + $0x230] sm:$0xff]
  %v698 = vld [vmem:[%s2 + $0x238] sm:$0xff]
  %v699 = vld [vmem:[%s2 + $0x240] sm:$0xff]
  %v700 = vld [vmem:[%s2 + $0x248] sm:$0xff]
  %v701 = vld [vmem:[%s2 + $0x250] sm:$0xff]
  %v702 = vld [vmem:[%s2 + $0x258] sm:$0xff]
  %v703 = vld [vmem:[%s2 + $0x260] sm:$0xff]
  %v704 = vld [vmem:[%s2 + $0x268] sm:$0xff]
  %v705 = vld [vmem:[%s2 + $0x270] sm:$0xff]
  %v706 = vld [vmem:[%s2 + $0x278] sm:$0xff]
  %v707 = vld [vmem:[%s2 + $0x280] sm:$0xff]
  %v708 = vld [vmem:[%s2 + $0x288] sm:$0xff]
  %v709 = vld [vmem:[%s2 + $0x290] sm:$0xff]
  %v710 = vld [vmem:[%s2 + $0x298] sm:$0xff]
  %v711 = vld [vmem:[%s2 + $0x2a0] sm:$0xff]
  %v712 = vld [vmem:[%s2 + $0x2a8] sm:$0xff]
  %v713 = vld [vmem:[%s2 + $0x2b0] sm:$0xff]
  %v714 = vld [vmem:[%s2 + $0x2b8] sm:$0xff]
  %v715 = vld [vmem:[%s2 + $0x2c0] sm:$0xff]
  %v716 = vld [vmem:[%s2 + $0x2c8] sm:$0xff]
  %v717 = vld [vmem:[%s2 + $0x2d0] sm:$0xff]
  %v718 = vld [vmem:[%s2 + $0x2d8] sm:$0xff]
  %v719 = vld [vmem:[%s2 + $0x2e0] sm:$0xff]
  %v720 = vld [vmem:[%s2 + $0x2e8] sm:$0xff]
  %v721 = vld [vmem:[%s2 + $0x2f0] sm:$0xff]
  %v722 = vld [vmem:[%s2 + $0x2f8] sm:$0xff]
  %v723 = vld [vmem:[%s2 + $0x300] sm:$0xff]
  %v724 = vld [vmem:[%s2 + $0x308] sm:$0xff]
  %v725 = vld [vmem:[%s2 + $0x310] sm:$0xff]
  %v726 = vld [vmem:[%s2 + $0x318] sm:$0xff]
  %v727 = vld [vmem:[%s2 + $0x320] sm:$0xff]
  %v728 = vld [vmem:[%s2 + $0x328] sm:$0xff]
  %v729 = vld [vmem:[%s2 + $0x330] sm:$0xff]
  %v730 = vld [vmem:[%s2 + $0x338] sm:$0xff]
  %v731 = vld [vmem:[%s2 + $0x340] sm:$0xff]
  %v732 = vld [vmem:[%s2 + $0x348] sm:$0xff]
  %v733 = vld [vmem:[%s2 + $0x350] sm:$0xff]
  %v734 = vld [vmem:[%s2 + $0x358] sm:$0xff]
  %v735 = vld [vmem:[%s2 + $0x360] sm:$0xff]
  %v736 = vld [vmem:[%s2 + $0x368] sm:$0xff]
  %v737 = vld [vmem:[%s2 + $0x370] sm:$0xff]
  %v738 = vld [vmem:[%s2 + $0x378] sm:$0xff]
  %v739 = vld [vmem:[%s2 + $0x380] sm:$0xff]
  %v740 = vld [vmem:[%s2 + $0x388] sm:$0xff]
  %v741 = vld [vmem:[%s2 + $0x390] sm:$0xff]
  %v742 = vld [vmem:[%s2 + $0x398] sm:$0xff]
  %v743 = vld [vmem:[%s2 + $0x3a0] sm:$0xff]
  %v744 = vld [vmem:[%s2 + $0x3a8] sm:$0xff]
  %v745 = vld [vmem:[%s2 + $0x3b0] sm:$0xff]
  %v746 = vld [vmem:[%s2 + $0x3b8] sm:$0xff]
  %v747 = vld [vmem:[%s2 + $0x3c0] sm:$0xff]
  %v748 = vld [vmem:[%s2 + $0x3c8] sm:$0xff]
  %v749 = vld [vmem:[%s2 + $0x3d0] sm:$0xff]
  %v750 = vld [vmem:[%s2 + $0x3d8] sm:$0xff]
  %v751 = vld [vmem:[%s2 + $0x3e0] sm:$0xff]
  %v752 = vld [vmem:[%s2 + $0x3e8] sm:$0xff]
  %v753 = vld [vmem:[%s2 + $0x3f0] sm:$0xff]
  %v754 = vld [vmem:[%s2 + $0x3f8] sm:$0xff]
  %v755 = vpack.c.bf16 %v376, %v373
  %v756 = vpack.c.bf16 %v384, %v381
  %v757 = vpack.c.bf16 %v392, %v389
  %v758 = vpack.c.bf16 %v400, %v397
  %v759 = vpack.c.bf16 %v408, %v405
  %v760 = vpack.c.bf16 %v416, %v413
  %v761 = vpack.c.bf16 %v424, %v421
  %v762 = vpack.c.bf16 %v432, %v429
  %v763 = vpack.c.bf16 %v440, %v437
  %v764 = vpack.c.bf16 %v448, %v445
  %v765 = vpack.c.bf16 %v456, %v453
  %v766 = vpack.c.bf16 %v464, %v461
  %v767 = vpack.c.bf16 %v472, %v469
  %v768 = vpack.c.bf16 %v480, %v477
  %v769 = vpack.c.bf16 %v488, %v485
  %v770 = vpack.c.bf16 %v496, %v493
  %v771 = vpack.c.bf16 %v504, %v501
  %v772 = vpack.c.bf16 %v512, %v509
  %v773 = vpack.c.bf16 %v520, %v517
  %v774 = vpack.c.bf16 %v528, %v525
  %v775 = vpack.c.bf16 %v536, %v533
  %v776 = vpack.c.bf16 %v544, %v541
  %v777 = vpack.c.bf16 %v552, %v549
  %v778 = vpack.c.bf16 %v560, %v557
  %v779 = vpack.c.bf16 %v568, %v565
  %v780 = vpack.c.bf16 %v576, %v573
  %v781 = vpack.c.bf16 %v584, %v581
  %v782 = vpack.c.bf16 %v592, %v589
  %v783 = vpack.c.bf16 %v600, %v597
  %v784 = vpack.c.bf16 %v608, %v605
  %v785 = vpack.c.bf16 %v616, %v613
  %v786 = vpack.c.bf16 %v624, %v621
  %v915 = vunpack.c.l.b16 %v627
  %v916 = vunpack.c.h.b16 %v627
  %v917 = vunpack.c.l.b16 %v628
  %v918 = vunpack.c.h.b16 %v628
  %v919 = vunpack.c.l.b16 %v629
  %v920 = vunpack.c.h.b16 %v629
  %v921 = vunpack.c.l.b16 %v630
  %v922 = vunpack.c.h.b16 %v630
  %v923 = vunpack.c.l.b16 %v631
  %v924 = vunpack.c.h.b16 %v631
  %v925 = vunpack.c.l.b16 %v632
  %v926 = vunpack.c.h.b16 %v632
  %v927 = vunpack.c.l.b16 %v633
  %v928 = vunpack.c.h.b16 %v633
  %v929 = vunpack.c.l.b16 %v634
  %v930 = vunpack.c.h.b16 %v634
  %v931 = vunpack.c.l.b16 %v635
  %v932 = vunpack.c.h.b16 %v635
  %v933 = vunpack.c.l.b16 %v636
  %v934 = vunpack.c.h.b16 %v636
  %v935 = vunpack.c.l.b16 %v637
  %v936 = vunpack.c.h.b16 %v637
  %v937 = vunpack.c.l.b16 %v638
  %v938 = vunpack.c.h.b16 %v638
  %v939 = vunpack.c.l.b16 %v639
  %v940 = vunpack.c.h.b16 %v639
  %v941 = vunpack.c.l.b16 %v640
  %v942 = vunpack.c.h.b16 %v640
  %v943 = vunpack.c.l.b16 %v641
  %v944 = vunpack.c.h.b16 %v641
  %v945 = vunpack.c.l.b16 %v642
  %v946 = vunpack.c.h.b16 %v642
  %v947 = vunpack.c.l.b16 %v643
  %v948 = vunpack.c.h.b16 %v643
  %v949 = vunpack.c.l.b16 %v644
  %v950 = vunpack.c.h.b16 %v644
  %v951 = vunpack.c.l.b16 %v645
  %v952 = vunpack.c.h.b16 %v645
  %v953 = vunpack.c.l.b16 %v646
  %v954 = vunpack.c.h.b16 %v646
  %v955 = vunpack.c.l.b16 %v647
  %v956 = vunpack.c.h.b16 %v647
  %v957 = vunpack.c.l.b16 %v648
  %v958 = vunpack.c.h.b16 %v648
  %v959 = vunpack.c.l.b16 %v649
  %v960 = vunpack.c.h.b16 %v649
  %v961 = vunpack.c.l.b16 %v650
  %v962 = vunpack.c.h.b16 %v650
  %v963 = vunpack.c.l.b16 %v651
  %v964 = vunpack.c.h.b16 %v651
  %v965 = vunpack.c.l.b16 %v652
  %v966 = vunpack.c.h.b16 %v652
  %v967 = vunpack.c.l.b16 %v653
  %v968 = vunpack.c.h.b16 %v653
  %v969 = vunpack.c.l.b16 %v654
  %v970 = vunpack.c.h.b16 %v654
  %v971 = vunpack.c.l.b16 %v655
  %v972 = vunpack.c.h.b16 %v655
  %v973 = vunpack.c.l.b16 %v656
  %v974 = vunpack.c.h.b16 %v656
  %v975 = vunpack.c.l.b16 %v657
  %v976 = vunpack.c.h.b16 %v657
  %v977 = vunpack.c.l.b16 %v658
  %v978 = vunpack.c.h.b16 %v658
  %v979 = vunpack.c.l.b16 %v659
  %v980 = vunpack.c.h.b16 %v659
  %v981 = vunpack.c.l.b16 %v660
  %v982 = vunpack.c.h.b16 %v660
  %v983 = vunpack.c.l.b16 %v661
  %v984 = vunpack.c.h.b16 %v661
  %v985 = vunpack.c.l.b16 %v662
  %v986 = vunpack.c.h.b16 %v662
  %v987 = vunpack.c.l.b16 %v663
  %v988 = vunpack.c.h.b16 %v663
  %v989 = vunpack.c.l.b16 %v664
  %v990 = vunpack.c.h.b16 %v664
  %v991 = vunpack.c.l.b16 %v665
  %v992 = vunpack.c.h.b16 %v665
  %v993 = vunpack.c.l.b16 %v666
  %v994 = vunpack.c.h.b16 %v666
  %v995 = vunpack.c.l.b16 %v667
  %v996 = vunpack.c.h.b16 %v667
  %v997 = vunpack.c.l.b16 %v668
  %v998 = vunpack.c.h.b16 %v668
  %v999 = vunpack.c.l.b16 %v669
  %v1000 = vunpack.c.h.b16 %v669
  %v1001 = vunpack.c.l.b16 %v670
  %v1002 = vunpack.c.h.b16 %v670
  %v1003 = vunpack.c.l.b16 %v671
  %v1004 = vunpack.c.h.b16 %v671
  %v1005 = vunpack.c.l.b16 %v672
  %v1006 = vunpack.c.h.b16 %v672
  %v1007 = vunpack.c.l.b16 %v673
  %v1008 = vunpack.c.h.b16 %v673
  %v1009 = vunpack.c.l.b16 %v674
  %v1010 = vunpack.c.h.b16 %v674
  %v1011 = vunpack.c.l.b16 %v675
  %v1012 = vunpack.c.h.b16 %v675
  %v1013 = vunpack.c.l.b16 %v676
  %v1014 = vunpack.c.h.b16 %v676
  %v1015 = vunpack.c.l.b16 %v677
  %v1016 = vunpack.c.h.b16 %v677
  %v1017 = vunpack.c.l.b16 %v678
  %v1018 = vunpack.c.h.b16 %v678
  %v1019 = vunpack.c.l.b16 %v679
  %v1020 = vunpack.c.h.b16 %v679
  %v1021 = vunpack.c.l.b16 %v680
  %v1022 = vunpack.c.h.b16 %v680
  %v1023 = vunpack.c.l.b16 %v681
  %v1024 = vunpack.c.h.b16 %v681
  %v1025 = vunpack.c.l.b16 %v682
  %v1026 = vunpack.c.h.b16 %v682
  %v1027 = vunpack.c.l.b16 %v683
  %v1028 = vunpack.c.h.b16 %v683
  %v1029 = vunpack.c.l.b16 %v684
  %v1030 = vunpack.c.h.b16 %v684
  %v1031 = vunpack.c.l.b16 %v685
  %v1032 = vunpack.c.h.b16 %v685
  %v1033 = vunpack.c.l.b16 %v686
  %v1034 = vunpack.c.h.b16 %v686
  %v1035 = vunpack.c.l.b16 %v687
  %v1036 = vunpack.c.h.b16 %v687
  %v1037 = vunpack.c.l.b16 %v688
  %v1038 = vunpack.c.h.b16 %v688
  %v1039 = vunpack.c.l.b16 %v689
  %v1040 = vunpack.c.h.b16 %v689
  %v1041 = vunpack.c.l.b16 %v690
  %v1042 = vunpack.c.h.b16 %v690
  %v1043 = vunpack.c.l.b16 %v691
  %v1044 = vunpack.c.h.b16 %v691
  %v1045 = vunpack.c.l.b16 %v692
  %v1046 = vunpack.c.h.b16 %v692
  %v1047 = vunpack.c.l.b16 %v693
  %v1048 = vunpack.c.h.b16 %v693
  %v1049 = vunpack.c.l.b16 %v694
  %v1050 = vunpack.c.h.b16 %v694
  %v1051 = vunpack.c.l.b16 %v695
  %v1052 = vunpack.c.h.b16 %v695
  %v1053 = vunpack.c.l.b16 %v696
  %v1054 = vunpack.c.h.b16 %v696
  %v1055 = vunpack.c.l.b16 %v697
  %v1056 = vunpack.c.h.b16 %v697
  %v1057 = vunpack.c.l.b16 %v698
  %v1058 = vunpack.c.h.b16 %v698
  %v1059 = vunpack.c.l.b16 %v699
  %v1060 = vunpack.c.h.b16 %v699
  %v1061 = vunpack.c.l.b16 %v700
  %v1062 = vunpack.c.h.b16 %v700
  %v1063 = vunpack.c.l.b16 %v701
  %v1064 = vunpack.c.h.b16 %v701
  %v1065 = vunpack.c.l.b16 %v702
  %v1066 = vunpack.c.h.b16 %v702
  %v1067 = vunpack.c.l.b16 %v703
  %v1068 = vunpack.c.h.b16 %v703
  %v1069 = vunpack.c.l.b16 %v704
  %v1070 = vunpack.c.h.b16 %v704
  %v1071 = vunpack.c.l.b16 %v705
  %v1072 = vunpack.c.h.b16 %v705
  %v1073 = vunpack.c.l.b16 %v706
  %v1074 = vunpack.c.h.b16 %v706
  %v1075 = vunpack.c.l.b16 %v707
  %v1076 = vunpack.c.h.b16 %v707
  %v1077 = vunpack.c.l.b16 %v708
  %v1078 = vunpack.c.h.b16 %v708
  %v1079 = vunpack.c.l.b16 %v709
  %v1080 = vunpack.c.h.b16 %v709
  %v1081 = vunpack.c.l.b16 %v710
  %v1082 = vunpack.c.h.b16 %v710
  %v1083 = vunpack.c.l.b16 %v711
  %v1084 = vunpack.c.h.b16 %v711
  %v1085 = vunpack.c.l.b16 %v712
  %v1086 = vunpack.c.h.b16 %v712
  %v1087 = vunpack.c.l.b16 %v713
  %v1088 = vunpack.c.h.b16 %v713
  %v1089 = vunpack.c.l.b16 %v714
  %v1090 = vunpack.c.h.b16 %v714
  %v1091 = vunpack.c.l.b16 %v715
  %v1092 = vunpack.c.h.b16 %v715
  %v1093 = vunpack.c.l.b16 %v716
  %v1094 = vunpack.c.h.b16 %v716
  %v1095 = vunpack.c.l.b16 %v717
  %v1096 = vunpack.c.h.b16 %v717
  %v1097 = vunpack.c.l.b16 %v718
  %v1098 = vunpack.c.h.b16 %v718
  %v1099 = vunpack.c.l.b16 %v719
  %v1100 = vunpack.c.h.b16 %v719
  %v1101 = vunpack.c.l.b16 %v720
  %v1102 = vunpack.c.h.b16 %v720
  %v1103 = vunpack.c.l.b16 %v721
  %v1104 = vunpack.c.h.b16 %v721
  %v1105 = vunpack.c.l.b16 %v722
  %v1106 = vunpack.c.h.b16 %v722
  %v1107 = vunpack.c.l.b16 %v723
  %v1108 = vunpack.c.h.b16 %v723
  %v1109 = vunpack.c.l.b16 %v724
  %v1110 = vunpack.c.h.b16 %v724
  %v1111 = vunpack.c.l.b16 %v725
  %v1112 = vunpack.c.h.b16 %v725
  %v1113 = vunpack.c.l.b16 %v726
  %v1114 = vunpack.c.h.b16 %v726
  %v1115 = vunpack.c.l.b16 %v727
  %v1116 = vunpack.c.h.b16 %v727
  %v1117 = vunpack.c.l.b16 %v728
  %v1118 = vunpack.c.h.b16 %v728
  %v1119 = vunpack.c.l.b16 %v729
  %v1120 = vunpack.c.h.b16 %v729
  %v1121 = vunpack.c.l.b16 %v730
  %v1122 = vunpack.c.h.b16 %v730
  %v1123 = vunpack.c.l.b16 %v731
  %v1124 = vunpack.c.h.b16 %v731
  %v1125 = vunpack.c.l.b16 %v732
  %v1126 = vunpack.c.h.b16 %v732
  %v1127 = vunpack.c.l.b16 %v733
  %v1128 = vunpack.c.h.b16 %v733
  %v1129 = vunpack.c.l.b16 %v734
  %v1130 = vunpack.c.h.b16 %v734
  %v1131 = vunpack.c.l.b16 %v735
  %v1132 = vunpack.c.h.b16 %v735
  %v1133 = vunpack.c.l.b16 %v736
  %v1134 = vunpack.c.h.b16 %v736
  %v1135 = vunpack.c.l.b16 %v737
  %v1136 = vunpack.c.h.b16 %v737
  %v1137 = vunpack.c.l.b16 %v738
  %v1138 = vunpack.c.h.b16 %v738
  %v1139 = vunpack.c.l.b16 %v739
  %v1140 = vunpack.c.h.b16 %v739
  %v1141 = vunpack.c.l.b16 %v740
  %v1142 = vunpack.c.h.b16 %v740
  %v1143 = vunpack.c.l.b16 %v741
  %v1144 = vunpack.c.h.b16 %v741
  %v1145 = vunpack.c.l.b16 %v742
  %v1146 = vunpack.c.h.b16 %v742
  %v1147 = vunpack.c.l.b16 %v743
  %v1148 = vunpack.c.h.b16 %v743
  %v1149 = vunpack.c.l.b16 %v744
  %v1150 = vunpack.c.h.b16 %v744
  %v1151 = vunpack.c.l.b16 %v745
  %v1152 = vunpack.c.h.b16 %v745
  %v1153 = vunpack.c.l.b16 %v746
  %v1154 = vunpack.c.h.b16 %v746
  %v1155 = vunpack.c.l.b16 %v747
  %v1156 = vunpack.c.h.b16 %v747
  %v1157 = vunpack.c.l.b16 %v748
  %v1158 = vunpack.c.h.b16 %v748
  %v1159 = vunpack.c.l.b16 %v749
  %v1160 = vunpack.c.h.b16 %v749
  %v1161 = vunpack.c.l.b16 %v750
  %v1162 = vunpack.c.h.b16 %v750
  %v1163 = vunpack.c.l.b16 %v751
  %v1164 = vunpack.c.h.b16 %v751
  %v1165 = vunpack.c.l.b16 %v752
  %v1166 = vunpack.c.h.b16 %v752
  %v1167 = vunpack.c.l.b16 %v753
  %v1168 = vunpack.c.h.b16 %v753
  %v1169 = vunpack.c.l.b16 %v754
  %v1170 = vunpack.c.h.b16 %v754
  %v1171 = vpack.c.b16 %v919, %v915
  %v1172 = vpack.c.b16 %v920, %v916
  %v1173 = vpack.c.b16 %v921, %v917
  %v1174 = vpack.c.b16 %v922, %v918
  %v1175 = vpack.c.b16 %v927, %v923
  %v1176 = vpack.c.b16 %v928, %v924
  %v1177 = vpack.c.b16 %v929, %v925
  %v1178 = vpack.c.b16 %v930, %v926
  %v1179 = vpack.c.b16 %v935, %v931
  %v1180 = vpack.c.b16 %v936, %v932
  %v1181 = vpack.c.b16 %v937, %v933
  %v1182 = vpack.c.b16 %v938, %v934
  %v1183 = vpack.c.b16 %v943, %v939
  %v1184 = vpack.c.b16 %v944, %v940
  %v1185 = vpack.c.b16 %v945, %v941
  %v1186 = vpack.c.b16 %v946, %v942
  %v1187 = vpack.c.b16 %v951, %v947
  %v1188 = vpack.c.b16 %v952, %v948
  %v1189 = vpack.c.b16 %v953, %v949
  %v1190 = vpack.c.b16 %v954, %v950
  %v1191 = vpack.c.b16 %v959, %v955
  %v1192 = vpack.c.b16 %v960, %v956
  %v1193 = vpack.c.b16 %v961, %v957
  %v1194 = vpack.c.b16 %v962, %v958
  %v1195 = vpack.c.b16 %v967, %v963
  %v1196 = vpack.c.b16 %v968, %v964
  %v1197 = vpack.c.b16 %v969, %v965
  %v1198 = vpack.c.b16 %v970, %v966
  %v1199 = vpack.c.b16 %v975, %v971
  %v1200 = vpack.c.b16 %v976, %v972
  %v1201 = vpack.c.b16 %v977, %v973
  %v1202 = vpack.c.b16 %v978, %v974
  %v1203 = vpack.c.b16 %v983, %v979
  %v1204 = vpack.c.b16 %v984, %v980
  %v1205 = vpack.c.b16 %v985, %v981
  %v1206 = vpack.c.b16 %v986, %v982
  %v1207 = vpack.c.b16 %v991, %v987
  %v1208 = vpack.c.b16 %v992, %v988
  %v1209 = vpack.c.b16 %v993, %v989
  %v1210 = vpack.c.b16 %v994, %v990
  %v1211 = vpack.c.b16 %v999, %v995
  %v1212 = vpack.c.b16 %v1000, %v996
  %v1213 = vpack.c.b16 %v1001, %v997
  %v1214 = vpack.c.b16 %v1002, %v998
  %v1215 = vpack.c.b16 %v1007, %v1003
  %v1216 = vpack.c.b16 %v1008, %v1004
  %v1217 = vpack.c.b16 %v1009, %v1005
  %v1218 = vpack.c.b16 %v1010, %v1006
  %v1219 = vpack.c.b16 %v1015, %v1011
  %v1220 = vpack.c.b16 %v1016, %v1012
  %v1221 = vpack.c.b16 %v1017, %v1013
  %v1222 = vpack.c.b16 %v1018, %v1014
  %v1223 = vpack.c.b16 %v1023, %v1019
  %v1224 = vpack.c.b16 %v1024, %v1020
  %v1225 = vpack.c.b16 %v1025, %v1021
  %v1226 = vpack.c.b16 %v1026, %v1022
  %v1227 = vpack.c.b16 %v1031, %v1027
  %v1228 = vpack.c.b16 %v1032, %v1028
  %v1229 = vpack.c.b16 %v1033, %v1029
  %v1230 = vpack.c.b16 %v1034, %v1030
  %v1231 = vpack.c.b16 %v1039, %v1035
  %v1232 = vpack.c.b16 %v1040, %v1036
  %v1233 = vpack.c.b16 %v1041, %v1037
  %v1234 = vpack.c.b16 %v1042, %v1038
  %v1235 = vpack.c.b16 %v1047, %v1043
  %v1236 = vpack.c.b16 %v1048, %v1044
  %v1237 = vpack.c.b16 %v1049, %v1045
  %v1238 = vpack.c.b16 %v1050, %v1046
  %v1239 = vpack.c.b16 %v1055, %v1051
  %v1240 = vpack.c.b16 %v1056, %v1052
  %v1241 = vpack.c.b16 %v1057, %v1053
  %v1242 = vpack.c.b16 %v1058, %v1054
  %v1243 = vpack.c.b16 %v1063, %v1059
  %v1244 = vpack.c.b16 %v1064, %v1060
  %v1245 = vpack.c.b16 %v1065, %v1061
  %v1246 = vpack.c.b16 %v1066, %v1062
  %v1247 = vpack.c.b16 %v1071, %v1067
  %v1248 = vpack.c.b16 %v1072, %v1068
  %v1249 = vpack.c.b16 %v1073, %v1069
  %v1250 = vpack.c.b16 %v1074, %v1070
  %v1251 = vpack.c.b16 %v1079, %v1075
  %v1252 = vpack.c.b16 %v1080, %v1076
  %v1253 = vpack.c.b16 %v1081, %v1077
  %v1254 = vpack.c.b16 %v1082, %v1078
  %v1255 = vpack.c.b16 %v1087, %v1083
  %v1256 = vpack.c.b16 %v1088, %v1084
  %v1257 = vpack.c.b16 %v1089, %v1085
  %v1258 = vpack.c.b16 %v1090, %v1086
  %v1259 = vpack.c.b16 %v1095, %v1091
  %v1260 = vpack.c.b16 %v1096, %v1092
  %v1261 = vpack.c.b16 %v1097, %v1093
  %v1262 = vpack.c.b16 %v1098, %v1094
  %v1263 = vpack.c.b16 %v1103, %v1099
  %v1264 = vpack.c.b16 %v1104, %v1100
  %v1265 = vpack.c.b16 %v1105, %v1101
  %v1266 = vpack.c.b16 %v1106, %v1102
  %v1267 = vpack.c.b16 %v1111, %v1107
  %v1268 = vpack.c.b16 %v1112, %v1108
  %v1269 = vpack.c.b16 %v1113, %v1109
  %v1270 = vpack.c.b16 %v1114, %v1110
  %v1271 = vpack.c.b16 %v1119, %v1115
  %v1272 = vpack.c.b16 %v1120, %v1116
  %v1273 = vpack.c.b16 %v1121, %v1117
  %v1274 = vpack.c.b16 %v1122, %v1118
  %v1275 = vpack.c.b16 %v1127, %v1123
  %v1276 = vpack.c.b16 %v1128, %v1124
  %v1277 = vpack.c.b16 %v1129, %v1125
  %v1278 = vpack.c.b16 %v1130, %v1126
  %v1279 = vpack.c.b16 %v1135, %v1131
  %v1280 = vpack.c.b16 %v1136, %v1132
  %v1281 = vpack.c.b16 %v1137, %v1133
  %v1282 = vpack.c.b16 %v1138, %v1134
  %v1283 = vpack.c.b16 %v1143, %v1139
  %v1284 = vpack.c.b16 %v1144, %v1140
  %v1285 = vpack.c.b16 %v1145, %v1141
  %v1286 = vpack.c.b16 %v1146, %v1142
  %v1287 = vpack.c.b16 %v1151, %v1147
  %v1288 = vpack.c.b16 %v1152, %v1148
  %v1289 = vpack.c.b16 %v1153, %v1149
  %v1290 = vpack.c.b16 %v1154, %v1150
  %v1291 = vpack.c.b16 %v1159, %v1155
  %v1292 = vpack.c.b16 %v1160, %v1156
  %v1293 = vpack.c.b16 %v1161, %v1157
  %v1294 = vpack.c.b16 %v1162, %v1158
  %v1295 = vpack.c.b16 %v1167, %v1163
  %v1296 = vpack.c.b16 %v1168, %v1164
  %v1297 = vpack.c.b16 %v1169, %v1165
  %v1298 = vpack.c.b16 %v1170, %v1166
  %1427 = vmatprep.subr.bf16.mxu0 0
  %1428 = vmatpush1.bf16.msra.mxu0 %v755
  %1429 = vmatprep.subr.bf16.mxu0 0
  %1430 = vmatpush1.bf16.msra.mxu0 %v756
  %1431 = vmatprep.subr.bf16.mxu0 0
  %1432 = vmatpush1.bf16.msra.mxu0 %v757
  %1433 = vmatprep.subr.bf16.mxu0 0
  %1434 = vmatpush1.bf16.msra.mxu0 %v758
  %1435 = vmatprep.subr.bf16.mxu0 0
  %1436 = vmatpush1.bf16.msra.mxu0 %v759
  %1437 = vmatprep.subr.bf16.mxu0 0
  %1438 = vmatpush1.bf16.msra.mxu0 %v760
  %1439 = vmatprep.subr.bf16.mxu0 0
  %1440 = vmatpush1.bf16.msra.mxu0 %v761
  %1441 = vmatprep.subr.bf16.mxu0 0
  %1442 = vmatpush1.bf16.msra.mxu0 %v762
  %1443 = vmatprep.subr.bf16.mxu0 0
  %1444 = vmatpush1.bf16.msra.mxu0 %v763
  %1445 = vmatprep.subr.bf16.mxu0 0
  %1446 = vmatpush1.bf16.msra.mxu0 %v764
  %1447 = vmatprep.subr.bf16.mxu0 0
  %1448 = vmatpush1.bf16.msra.mxu0 %v765
  %1449 = vmatprep.subr.bf16.mxu0 0
  %1450 = vmatpush1.bf16.msra.mxu0 %v766
  %1451 = vmatprep.subr.bf16.mxu0 0
  %1452 = vmatpush1.bf16.msra.mxu0 %v767
  %1453 = vmatprep.subr.bf16.mxu0 0
  %1454 = vmatpush1.bf16.msra.mxu0 %v768
  %1455 = vmatprep.subr.bf16.mxu0 0
  %1456 = vmatpush1.bf16.msra.mxu0 %v769
  %1457 = vmatprep.subr.bf16.mxu0 0
  %1458 = vmatpush1.bf16.msra.mxu0 %v770
  %1459 = vmatprep.mubr.bf16.mxu0 %v1172
  %1460 = vmatmul.mubr.bf16.gmra.mrb[0].mxu0 %v1171
  %v1461 = vpop.f32.mrb[0].mxu0
  %v1462 = vadd.f32 0.0, %v1461
  %v1463 = vpop.f32.mrb[0].mxu0
  %v1464 = vpop.f32.mrb[0].mxu0
  %v1465 = vadd.f32 0.0, %v1464
  %v1466 = vpop.f32.mrb[0].mxu0
  %1467 = vmatprep.mubr.bf16.mxu0 %v1176
  %1468 = vmatmul.mubr.bf16.gmra.mrb[0].mxu0 %v1175
  %v1469 = vpop.f32.mrb[0].mxu0
  %v1470 = vadd.f32 0.0, %v1469
  %v1471 = vpop.f32.mrb[0].mxu0
  %v1472 = vpop.f32.mrb[0].mxu0
  %v1473 = vadd.f32 0.0, %v1472
  %v1474 = vpop.f32.mrb[0].mxu0
  %1475 = vmatprep.mubr.bf16.mxu0 %v1180
  %1476 = vmatmul.mubr.bf16.gmra.mrb[0].mxu0 %v1179
  %v1477 = vpop.f32.mrb[0].mxu0
  %v1478 = vadd.f32 0.0, %v1477
  %v1479 = vpop.f32.mrb[0].mxu0
  %v1480 = vpop.f32.mrb[0].mxu0
  %v1481 = vadd.f32 0.0, %v1480
  %v1482 = vpop.f32.mrb[0].mxu0
  %1483 = vmatprep.mubr.bf16.mxu0 %v1184
  %1484 = vmatmul.mubr.bf16.gmra.mrb[0].mxu0 %v1183
  %v1485 = vpop.f32.mrb[0].mxu0
  %v1486 = vadd.f32 0.0, %v1485
  %v1487 = vpop.f32.mrb[0].mxu0
  %v1488 = vpop.f32.mrb[0].mxu0
  %v1489 = vadd.f32 0.0, %v1488
  %v1490 = vpop.f32.mrb[0].mxu0
  %1491 = vmatprep.mubr.bf16.mxu0 %v1188
  %1492 = vmatmul.mubr.bf16.gmra.mrb[0].mxu0 %v1187
  %v1493 = vpop.f32.mrb[0].mxu0
  %v1494 = vadd.f32 0.0, %v1493
  %v1495 = vpop.f32.mrb[0].mxu0
  %v1496 = vpop.f32.mrb[0].mxu0
  %v1497 = vadd.f32 0.0, %v1496
  %v1498 = vpop.f32.mrb[0].mxu0
  %1499 = vmatprep.mubr.bf16.mxu0 %v1192
  %1500 = vmatmul.mubr.bf16.gmra.mrb[0].mxu0 %v1191
  %v1501 = vpop.f32.mrb[0].mxu0
  %v1502 = vadd.f32 0.0, %v1501
  %v1503 = vpop.f32.mrb[0].mxu0
  %v1504 = vpop.f32.mrb[0].mxu0
  %v1505 = vadd.f32 0.0, %v1504
  %v1506 = vpop.f32.mrb[0].mxu0
  %1507 = vmatprep.mubr.bf16.mxu0 %v1196
  %1508 = vmatmul.mubr.bf16.gmra.mrb[0].mxu0 %v1195
  %v1509 = vpop.f32.mrb[0].mxu0
  %v1510 = vadd.f32 0.0, %v1509
  %v1511 = vpop.f32.mrb[0].mxu0
  %v1512 = vpop.f32.mrb[0].mxu0
  %v1513 = vadd.f32 0.0, %v1512
  %v1514 = vpop.f32.mrb[0].mxu0
  %1515 = vmatprep.mubr.bf16.mxu0 %v1200
  %1516 = vmatmul.mubr.bf16.gmra.mrb[0].mxu0 %v1199
  %v1517 = vpop.f32.mrb[0].mxu0
  %v1518 = vadd.f32 0.0, %v1517
  %v1519 = vpop.f32.mrb[0].mxu0
  %v1520 = vpop.f32.mrb[0].mxu0
  %v1521 = vadd.f32 0.0, %v1520
  %v1522 = vpop.f32.mrb[0].mxu0
  %1523 = vmatprep.mubr.bf16.mxu0 %v1204
  %1524 = vmatmul.mubr.bf16.gmra.mrb[0].mxu0 %v1203
  %v1525 = vpop.f32.mrb[0].mxu0
  %v1526 = vadd.f32 0.0, %v1525
  %v1527 = vpop.f32.mrb[0].mxu0
  %v1528 = vpop.f32.mrb[0].mxu0
  %v1529 = vadd.f32 0.0, %v1528
  %v1530 = vpop.f32.mrb[0].mxu0
  %1531 = vmatprep.mubr.bf16.mxu0 %v1208
  %1532 = vmatmul.mubr.bf16.gmra.mrb[0].mxu0 %v1207
  %v1533 = vpop.f32.mrb[0].mxu0
  %v1534 = vadd.f32 0.0, %v1533
  %v1535 = vpop.f32.mrb[0].mxu0
  %v1536 = vpop.f32.mrb[0].mxu0
  %v1537 = vadd.f32 0.0, %v1536
  %v1538 = vpop.f32.mrb[0].mxu0
  %1539 = vmatprep.mubr.bf16.mxu0 %v1212
  %1540 = vmatmul.mubr.bf16.gmra.mrb[0].mxu0 %v1211
  %v1541 = vpop.f32.mrb[0].mxu0
  %v1542 = vadd.f32 0.0, %v1541
  %v1543 = vpop.f32.mrb[0].mxu0
  %v1544 = vpop.f32.mrb[0].mxu0
  %v1545 = vadd.f32 0.0, %v1544
  %v1546 = vpop.f32.mrb[0].mxu0
  %1547 = vmatprep.mubr.bf16.mxu0 %v1216
  %1548 = vmatmul.mubr.bf16.gmra.mrb[0].mxu0 %v1215
  %v1549 = vpop.f32.mrb[0].mxu0
  %v1550 = vadd.f32 0.0, %v1549
  %v1551 = vpop.f32.mrb[0].mxu0
  %v1552 = vpop.f32.mrb[0].mxu0
  %v1553 = vadd.f32 0.0, %v1552
  %v1554 = vpop.f32.mrb[0].mxu0
  %1555 = vmatprep.mubr.bf16.mxu0 %v1220
  %1556 = vmatmul.mubr.bf16.gmra.mrb[0].mxu0 %v1219
  %v1557 = vpop.f32.mrb[0].mxu0
  %v1558 = vadd.f32 0.0, %v1557
  %v1559 = vpop.f32.mrb[0].mxu0
  %v1560 = vpop.f32.mrb[0].mxu0
  %v1561 = vadd.f32 0.0, %v1560
  %v1562 = vpop.f32.mrb[0].mxu0
  %1563 = vmatprep.mubr.bf16.mxu0 %v1224
  %1564 = vmatmul.mubr.bf16.gmra.mrb[0].mxu0 %v1223
  %v1565 = vpop.f32.mrb[0].mxu0
  %v1566 = vadd.f32 0.0, %v1565
  %v1567 = vpop.f32.mrb[0].mxu0
  %v1568 = vpop.f32.mrb[0].mxu0
  %v1569 = vadd.f32 0.0, %v1568
  %v1570 = vpop.f32.mrb[0].mxu0
  %1571 = vmatprep.mubr.bf16.mxu0 %v1228
  %1572 = vmatmul.mubr.bf16.gmra.mrb[0].mxu0 %v1227
  %v1573 = vpop.f32.mrb[0].mxu0
  %v1574 = vadd.f32 0.0, %v1573
  %v1575 = vpop.f32.mrb[0].mxu0
  %v1576 = vpop.f32.mrb[0].mxu0
  %v1577 = vadd.f32 0.0, %v1576
  %v1578 = vpop.f32.mrb[0].mxu0
  %1579 = vmatprep.mubr.bf16.mxu0 %v1232
  %1580 = vmatmul.mubr.bf16.gmra.mrb[0].mxu0 %v1231
  %v1581 = vpop.f32.mrb[0].mxu0
  %v1582 = vadd.f32 0.0, %v1581
  %v1583 = vpop.f32.mrb[0].mxu0
  %v1584 = vpop.f32.mrb[0].mxu0
  %v1585 = vadd.f32 0.0, %v1584
  %v1586 = vpop.f32.mrb[0].mxu0
  %1587 = vmatprep.mubr.bf16.mxu0 %v1236
  %1588 = vmatmul.mubr.bf16.gmra.mrb[0].mxu0 %v1235
  %v1589 = vpop.f32.mrb[0].mxu0
  %v1590 = vadd.f32 0.0, %v1589
  %v1591 = vpop.f32.mrb[0].mxu0
  %v1592 = vpop.f32.mrb[0].mxu0
  %v1593 = vadd.f32 0.0, %v1592
  %v1594 = vpop.f32.mrb[0].mxu0
  %1595 = vmatprep.mubr.bf16.mxu0 %v1240
  %1596 = vmatmul.mubr.bf16.gmra.mrb[0].mxu0 %v1239
  %v1597 = vpop.f32.mrb[0].mxu0
  %v1598 = vadd.f32 0.0, %v1597
  %v1599 = vpop.f32.mrb[0].mxu0
  %v1600 = vpop.f32.mrb[0].mxu0
  %v1601 = vadd.f32 0.0, %v1600
  %v1602 = vpop.f32.mrb[0].mxu0
  %1603 = vmatprep.mubr.bf16.mxu0 %v1244
  %1604 = vmatmul.mubr.bf16.gmra.mrb[0].mxu0 %v1243
  %v1605 = vpop.f32.mrb[0].mxu0
  %v1606 = vadd.f32 0.0, %v1605
  %v1607 = vpop.f32.mrb[0].mxu0
  %v1608 = vpop.f32.mrb[0].mxu0
  %v1609 = vadd.f32 0.0, %v1608
  %v1610 = vpop.f32.mrb[0].mxu0
  %1611 = vmatprep.mubr.bf16.mxu0 %v1248
  %1612 = vmatmul.mubr.bf16.gmra.mrb[0].mxu0 %v1247
  %v1613 = vpop.f32.mrb[0].mxu0
  %v1614 = vadd.f32 0.0, %v1613
  %v1615 = vpop.f32.mrb[0].mxu0
  %v1616 = vpop.f32.mrb[0].mxu0
  %v1617 = vadd.f32 0.0, %v1616
  %v1618 = vpop.f32.mrb[0].mxu0
  %1619 = vmatprep.mubr.bf16.mxu0 %v1252
  %1620 = vmatmul.mubr.bf16.gmra.mrb[0].mxu0 %v1251
  %v1621 = vpop.f32.mrb[0].mxu0
  %v1622 = vadd.f32 0.0, %v1621
  %v1623 = vpop.f32.mrb[0].mxu0
  %v1624 = vpop.f32.mrb[0].mxu0
  %v1625 = vadd.f32 0.0, %v1624
  %v1626 = vpop.f32.mrb[0].mxu0
  %1627 = vmatprep.mubr.bf16.mxu0 %v1256
  %1628 = vmatmul.mubr.bf16.gmra.mrb[0].mxu0 %v1255
  %v1629 = vpop.f32.mrb[0].mxu0
  %v1630 = vadd.f32 0.0, %v1629
  %v1631 = vpop.f32.mrb[0].mxu0
  %v1632 = vpop.f32.mrb[0].mxu0
  %v1633 = vadd.f32 0.0, %v1632
  %v1634 = vpop.f32.mrb[0].mxu0
  %1635 = vmatprep.mubr.bf16.mxu0 %v1260
  %1636 = vmatmul.mubr.bf16.gmra.mrb[0].mxu0 %v1259
  %v1637 = vpop.f32.mrb[0].mxu0
  %v1638 = vadd.f32 0.0, %v1637
  %v1639 = vpop.f32.mrb[0].mxu0
  %v1640 = vpop.f32.mrb[0].mxu0
  %v1641 = vadd.f32 0.0, %v1640
  %v1642 = vpop.f32.mrb[0].mxu0
  %1643 = vmatprep.mubr.bf16.mxu0 %v1264
  %1644 = vmatmul.mubr.bf16.gmra.mrb[0].mxu0 %v1263
  %v1645 = vpop.f32.mrb[0].mxu0
  %v1646 = vadd.f32 0.0, %v1645
  %v1647 = vpop.f32.mrb[0].mxu0
  %v1648 = vpop.f32.mrb[0].mxu0
  %v1649 = vadd.f32 0.0, %v1648
  %v1650 = vpop.f32.mrb[0].mxu0
  %1651 = vmatprep.mubr.bf16.mxu0 %v1268
  %1652 = vmatmul.mubr.bf16.gmra.mrb[0].mxu0 %v1267
  %v1653 = vpop.f32.mrb[0].mxu0
  %v1654 = vadd.f32 0.0, %v1653
  %v1655 = vpop.f32.mrb[0].mxu0
  %v1656 = vpop.f32.mrb[0].mxu0
  %v1657 = vadd.f32 0.0, %v1656
  %v1658 = vpop.f32.mrb[0].mxu0
  %1659 = vmatprep.mubr.bf16.mxu0 %v1272
  %1660 = vmatmul.mubr.bf16.gmra.mrb[0].mxu0 %v1271
  %v1661 = vpop.f32.mrb[0].mxu0
  %v1662 = vadd.f32 0.0, %v1661
  %v1663 = vpop.f32.mrb[0].mxu0
  %v1664 = vpop.f32.mrb[0].mxu0
  %v1665 = vadd.f32 0.0, %v1664
  %v1666 = vpop.f32.mrb[0].mxu0
  %1667 = vmatprep.mubr.bf16.mxu0 %v1276
  %1668 = vmatmul.mubr.bf16.gmra.mrb[0].mxu0 %v1275
  %v1669 = vpop.f32.mrb[0].mxu0
  %v1670 = vadd.f32 0.0, %v1669
  %v1671 = vpop.f32.mrb[0].mxu0
  %v1672 = vpop.f32.mrb[0].mxu0
  %v1673 = vadd.f32 0.0, %v1672
  %v1674 = vpop.f32.mrb[0].mxu0
  %1675 = vmatprep.mubr.bf16.mxu0 %v1280
  %1676 = vmatmul.mubr.bf16.gmra.mrb[0].mxu0 %v1279
  %v1677 = vpop.f32.mrb[0].mxu0
  %v1678 = vadd.f32 0.0, %v1677
  %v1679 = vpop.f32.mrb[0].mxu0
  %v1680 = vpop.f32.mrb[0].mxu0
  %v1681 = vadd.f32 0.0, %v1680
  %v1682 = vpop.f32.mrb[0].mxu0
  %1683 = vmatprep.mubr.bf16.mxu0 %v1284
  %1684 = vmatmul.mubr.bf16.gmra.mrb[0].mxu0 %v1283
  %v1685 = vpop.f32.mrb[0].mxu0
  %v1686 = vadd.f32 0.0, %v1685
  %v1687 = vpop.f32.mrb[0].mxu0
  %v1688 = vpop.f32.mrb[0].mxu0
  %v1689 = vadd.f32 0.0, %v1688
  %v1690 = vpop.f32.mrb[0].mxu0
  %1691 = vmatprep.mubr.bf16.mxu0 %v1288
  %1692 = vmatmul.mubr.bf16.gmra.mrb[0].mxu0 %v1287
  %v1693 = vpop.f32.mrb[0].mxu0
  %v1694 = vadd.f32 0.0, %v1693
  %v1695 = vpop.f32.mrb[0].mxu0
  %v1696 = vpop.f32.mrb[0].mxu0
  %v1697 = vadd.f32 0.0, %v1696
  %v1698 = vpop.f32.mrb[0].mxu0
  %1699 = vmatprep.mubr.bf16.mxu0 %v1292
  %1700 = vmatmul.mubr.bf16.gmra.mrb[0].mxu0 %v1291
  %v1701 = vpop.f32.mrb[0].mxu0
  %v1702 = vadd.f32 0.0, %v1701
  %v1703 = vpop.f32.mrb[0].mxu0
  %v1704 = vpop.f32.mrb[0].mxu0
  %v1705 = vadd.f32 0.0, %v1704
  %v1706 = vpop.f32.mrb[0].mxu0
  %1707 = vmatprep.mubr.bf16.mxu0 %v1296
  %1708 = vmatmul.mubr.bf16.gmra.mrb[0].mxu0 %v1295
  %v1709 = vpop.f32.mrb[0].mxu0
  %v1710 = vadd.f32 0.0, %v1709
  %v1711 = vpop.f32.mrb[0].mxu0
  %v1712 = vpop.f32.mrb[0].mxu0
  %v1713 = vadd.f32 0.0, %v1712
  %v1714 = vpop.f32.mrb[0].mxu0
  %1715 = vdwg.mxu0
  %1716 = vmatprep.subr.bf16.mxu0 0
  %1717 = vmatpush1.bf16.msra.mxu0 %v771
  %1718 = vmatprep.subr.bf16.mxu0 0
  %1719 = vmatpush1.bf16.msra.mxu0 %v772
  %1720 = vmatprep.subr.bf16.mxu0 0
  %1721 = vmatpush1.bf16.msra.mxu0 %v773
  %1722 = vmatprep.subr.bf16.mxu0 0
  %1723 = vmatpush1.bf16.msra.mxu0 %v774
  %1724 = vmatprep.subr.bf16.mxu0 0
  %1725 = vmatpush1.bf16.msra.mxu0 %v775
  %1726 = vmatprep.subr.bf16.mxu0 0
  %1727 = vmatpush1.bf16.msra.mxu0 %v776
  %1728 = vmatprep.subr.bf16.mxu0 0
  %1729 = vmatpush1.bf16.msra.mxu0 %v777
  %1730 = vmatprep.subr.bf16.mxu0 0
  %1731 = vmatpush1.bf16.msra.mxu0 %v778
  %1732 = vmatprep.subr.bf16.mxu0 0
  %1733 = vmatpush1.bf16.msra.mxu0 %v779
  %1734 = vmatprep.subr.bf16.mxu0 0
  %1735 = vmatpush1.bf16.msra.mxu0 %v780
  %1736 = vmatprep.subr.bf16.mxu0 0
  %1737 = vmatpush1.bf16.msra.mxu0 %v781
  %1738 = vmatprep.subr.bf16.mxu0 0
  %1739 = vmatpush1.bf16.msra.mxu0 %v782
  %1740 = vmatprep.subr.bf16.mxu0 0
  %1741 = vmatpush1.bf16.msra.mxu0 %v783
  %1742 = vmatprep.subr.bf16.mxu0 0
  %1743 = vmatpush1.bf16.msra.mxu0 %v784
  %1744 = vmatprep.subr.bf16.mxu0 0
  %1745 = vmatpush1.bf16.msra.mxu0 %v785
  %1746 = vmatprep.subr.bf16.mxu0 0
  %1747 = vmatpush1.bf16.msra.mxu0 %v786
  %1748 = vmatprep.mubr.bf16.mxu0 %v1174
  %1749 = vmatmul.mubr.bf16.gmra.mrb[0].mxu0 %v1173
  %v1750 = vpop.f32.mrb[0].mxu0
  %v1751 = vadd.f32 %v1462, %v1750
  %v1752 = vpop.f32.mrb[0].mxu0
  %v1753 = vpop.f32.mrb[0].mxu0
  %v1754 = vadd.f32 %v1465, %v1753
  %v1755 = vpop.f32.mrb[0].mxu0
  %1756 = vmatprep.mubr.bf16.mxu0 %v1178
  %1757 = vmatmul.mubr.bf16.gmra.mrb[0].mxu0 %v1177
  %v1758 = vpop.f32.mrb[0].mxu0
  %v1759 = vadd.f32 %v1470, %v1758
  %v1760 = vpop.f32.mrb[0].mxu0
  %v1761 = vpop.f32.mrb[0].mxu0
  %v1762 = vadd.f32 %v1473, %v1761
  %v1763 = vpop.f32.mrb[0].mxu0
  %1764 = vmatprep.mubr.bf16.mxu0 %v1182
  %1765 = vmatmul.mubr.bf16.gmra.mrb[0].mxu0 %v1181
  %v1766 = vpop.f32.mrb[0].mxu0
  %v1767 = vadd.f32 %v1478, %v1766
  %v1768 = vpop.f32.mrb[0].mxu0
  %v1769 = vpop.f32.mrb[0].mxu0
  %v1770 = vadd.f32 %v1481, %v1769
  %v1771 = vpop.f32.mrb[0].mxu0
  %1772 = vmatprep.mubr.bf16.mxu0 %v1186
  %1773 = vmatmul.mubr.bf16.gmra.mrb[0].mxu0 %v1185
  %v1774 = vpop.f32.mrb[0].mxu0
  %v1775 = vadd.f32 %v1486, %v1774
  %v1776 = vpop.f32.mrb[0].mxu0
  %v1777 = vpop.f32.mrb[0].mxu0
  %v1778 = vadd.f32 %v1489, %v1777
  %v1779 = vpop.f32.mrb[0].mxu0
  %1780 = vmatprep.mubr.bf16.mxu0 %v1190
  %1781 = vmatmul.mubr.bf16.gmra.mrb[0].mxu0 %v1189
  %v1782 = vpop.f32.mrb[0].mxu0
  %v1783 = vadd.f32 %v1494, %v1782
  %v1784 = vpop.f32.mrb[0].mxu0
  %v1785 = vpop.f32.mrb[0].mxu0
  %v1786 = vadd.f32 %v1497, %v1785
  %v1787 = vpop.f32.mrb[0].mxu0
  %1788 = vmatprep.mubr.bf16.mxu0 %v1194
  %1789 = vmatmul.mubr.bf16.gmra.mrb[0].mxu0 %v1193
  %v1790 = vpop.f32.mrb[0].mxu0
  %v1791 = vadd.f32 %v1502, %v1790
  %v1792 = vpop.f32.mrb[0].mxu0
  %v1793 = vpop.f32.mrb[0].mxu0
  %v1794 = vadd.f32 %v1505, %v1793
  %v1795 = vpop.f32.mrb[0].mxu0
  %1796 = vmatprep.mubr.bf16.mxu0 %v1198
  %1797 = vmatmul.mubr.bf16.gmra.mrb[0].mxu0 %v1197
  %v1798 = vpop.f32.mrb[0].mxu0
  %v1799 = vadd.f32 %v1510, %v1798
  %v1800 = vpop.f32.mrb[0].mxu0
  %v1801 = vpop.f32.mrb[0].mxu0
  %v1802 = vadd.f32 %v1513, %v1801
  %v1803 = vpop.f32.mrb[0].mxu0
  %1804 = vmatprep.mubr.bf16.mxu0 %v1202
  %1805 = vmatmul.mubr.bf16.gmra.mrb[0].mxu0 %v1201
  %v1806 = vpop.f32.mrb[0].mxu0
  %v1807 = vadd.f32 %v1518, %v1806
  %v1808 = vpop.f32.mrb[0].mxu0
  %v1809 = vpop.f32.mrb[0].mxu0
  %v1810 = vadd.f32 %v1521, %v1809
  %v1811 = vpop.f32.mrb[0].mxu0
  %1812 = vmatprep.mubr.bf16.mxu0 %v1206
  %1813 = vmatmul.mubr.bf16.gmra.mrb[0].mxu0 %v1205
  %v1814 = vpop.f32.mrb[0].mxu0
  %v1815 = vadd.f32 %v1526, %v1814
  %v1816 = vpop.f32.mrb[0].mxu0
  %v1817 = vpop.f32.mrb[0].mxu0
  %v1818 = vadd.f32 %v1529, %v1817
  %v1819 = vpop.f32.mrb[0].mxu0
  %1820 = vmatprep.mubr.bf16.mxu0 %v1210
  %1821 = vmatmul.mubr.bf16.gmra.mrb[0].mxu0 %v1209
  %v1822 = vpop.f32.mrb[0].mxu0
  %v1823 = vadd.f32 %v1534, %v1822
  %v1824 = vpop.f32.mrb[0].mxu0
  %v1825 = vpop.f32.mrb[0].mxu0
  %v1826 = vadd.f32 %v1537, %v1825
  %v1827 = vpop.f32.mrb[0].mxu0
  %1828 = vmatprep.mubr.bf16.mxu0 %v1214
  %1829 = vmatmul.mubr.bf16.gmra.mrb[0].mxu0 %v1213
  %v1830 = vpop.f32.mrb[0].mxu0
  %v1831 = vadd.f32 %v1542, %v1830
  %v1832 = vpop.f32.mrb[0].mxu0
  %v1833 = vpop.f32.mrb[0].mxu0
  %v1834 = vadd.f32 %v1545, %v1833
  %v1835 = vpop.f32.mrb[0].mxu0
  %1836 = vmatprep.mubr.bf16.mxu0 %v1218
  %1837 = vmatmul.mubr.bf16.gmra.mrb[0].mxu0 %v1217
  %v1838 = vpop.f32.mrb[0].mxu0
  %v1839 = vadd.f32 %v1550, %v1838
  %v1840 = vpop.f32.mrb[0].mxu0
  %v1841 = vpop.f32.mrb[0].mxu0
  %v1842 = vadd.f32 %v1553, %v1841
  %v1843 = vpop.f32.mrb[0].mxu0
  %1844 = vmatprep.mubr.bf16.mxu0 %v1222
  %1845 = vmatmul.mubr.bf16.gmra.mrb[0].mxu0 %v1221
  %v1846 = vpop.f32.mrb[0].mxu0
  %v1847 = vadd.f32 %v1558, %v1846
  %v1848 = vpop.f32.mrb[0].mxu0
  %v1849 = vpop.f32.mrb[0].mxu0
  %v1850 = vadd.f32 %v1561, %v1849
  %v1851 = vpop.f32.mrb[0].mxu0
  %1852 = vmatprep.mubr.bf16.mxu0 %v1226
  %1853 = vmatmul.mubr.bf16.gmra.mrb[0].mxu0 %v1225
  %v1854 = vpop.f32.mrb[0].mxu0
  %v1855 = vadd.f32 %v1566, %v1854
  %v1856 = vpop.f32.mrb[0].mxu0
  %v1857 = vpop.f32.mrb[0].mxu0
  %v1858 = vadd.f32 %v1569, %v1857
  %v1859 = vpop.f32.mrb[0].mxu0
  %1860 = vmatprep.mubr.bf16.mxu0 %v1230
  %1861 = vmatmul.mubr.bf16.gmra.mrb[0].mxu0 %v1229
  %v1862 = vpop.f32.mrb[0].mxu0
  %v1863 = vadd.f32 %v1574, %v1862
  %v1864 = vpop.f32.mrb[0].mxu0
  %v1865 = vpop.f32.mrb[0].mxu0
  %v1866 = vadd.f32 %v1577, %v1865
  %v1867 = vpop.f32.mrb[0].mxu0
  %1868 = vmatprep.mubr.bf16.mxu0 %v1234
  %1869 = vmatmul.mubr.bf16.gmra.mrb[0].mxu0 %v1233
  %v1870 = vpop.f32.mrb[0].mxu0
  %v1871 = vadd.f32 %v1582, %v1870
  %v1872 = vpop.f32.mrb[0].mxu0
  %v1873 = vpop.f32.mrb[0].mxu0
  %v1874 = vadd.f32 %v1585, %v1873
  %v1875 = vpop.f32.mrb[0].mxu0
  %1876 = vmatprep.mubr.bf16.mxu0 %v1238
  %1877 = vmatmul.mubr.bf16.gmra.mrb[0].mxu0 %v1237
  %v1878 = vpop.f32.mrb[0].mxu0
  %v1879 = vadd.f32 %v1590, %v1878
  %v1880 = vpop.f32.mrb[0].mxu0
  %v1881 = vpop.f32.mrb[0].mxu0
  %v1882 = vadd.f32 %v1593, %v1881
  %v1883 = vpop.f32.mrb[0].mxu0
  %1884 = vmatprep.mubr.bf16.mxu0 %v1242
  %1885 = vmatmul.mubr.bf16.gmra.mrb[0].mxu0 %v1241
  %v1886 = vpop.f32.mrb[0].mxu0
  %v1887 = vadd.f32 %v1598, %v1886
  %v1888 = vpop.f32.mrb[0].mxu0
  %v1889 = vpop.f32.mrb[0].mxu0
  %v1890 = vadd.f32 %v1601, %v1889
  %v1891 = vpop.f32.mrb[0].mxu0
  %1892 = vmatprep.mubr.bf16.mxu0 %v1246
  %1893 = vmatmul.mubr.bf16.gmra.mrb[0].mxu0 %v1245
  %v1894 = vpop.f32.mrb[0].mxu0
  %v1895 = vadd.f32 %v1606, %v1894
  %v1896 = vpop.f32.mrb[0].mxu0
  %v1897 = vpop.f32.mrb[0].mxu0
  %v1898 = vadd.f32 %v1609, %v1897
  %v1899 = vpop.f32.mrb[0].mxu0
  %1900 = vmatprep.mubr.bf16.mxu0 %v1250
  %1901 = vmatmul.mubr.bf16.gmra.mrb[0].mxu0 %v1249
  %v1902 = vpop.f32.mrb[0].mxu0
  %v1903 = vadd.f32 %v1614, %v1902
  %v1904 = vpop.f32.mrb[0].mxu0
  %v1905 = vpop.f32.mrb[0].mxu0
  %v1906 = vadd.f32 %v1617, %v1905
  %v1907 = vpop.f32.mrb[0].mxu0
  %1908 = vmatprep.mubr.bf16.mxu0 %v1254
  %1909 = vmatmul.mubr.bf16.gmra.mrb[0].mxu0 %v1253
  %v1910 = vpop.f32.mrb[0].mxu0
  %v1911 = vadd.f32 %v1622, %v1910
  %v1912 = vpop.f32.mrb[0].mxu0
  %v1913 = vpop.f32.mrb[0].mxu0
  %v1914 = vadd.f32 %v1625, %v1913
  %v1915 = vpop.f32.mrb[0].mxu0
  %1916 = vmatprep.mubr.bf16.mxu0 %v1258
  %1917 = vmatmul.mubr.bf16.gmra.mrb[0].mxu0 %v1257
  %v1918 = vpop.f32.mrb[0].mxu0
  %v1919 = vadd.f32 %v1630, %v1918
  %v1920 = vpop.f32.mrb[0].mxu0
  %v1921 = vpop.f32.mrb[0].mxu0
  %v1922 = vadd.f32 %v1633, %v1921
  %v1923 = vpop.f32.mrb[0].mxu0
  %1924 = vmatprep.mubr.bf16.mxu0 %v1262
  %1925 = vmatmul.mubr.bf16.gmra.mrb[0].mxu0 %v1261
  %v1926 = vpop.f32.mrb[0].mxu0
  %v1927 = vadd.f32 %v1638, %v1926
  %v1928 = vpop.f32.mrb[0].mxu0
  %v1929 = vpop.f32.mrb[0].mxu0
  %v1930 = vadd.f32 %v1641, %v1929
  %v1931 = vpop.f32.mrb[0].mxu0
  %1932 = vmatprep.mubr.bf16.mxu0 %v1266
  %1933 = vmatmul.mubr.bf16.gmra.mrb[0].mxu0 %v1265
  %v1934 = vpop.f32.mrb[0].mxu0
  %v1935 = vadd.f32 %v1646, %v1934
  %v1936 = vpop.f32.mrb[0].mxu0
  %v1937 = vpop.f32.mrb[0].mxu0
  %v1938 = vadd.f32 %v1649, %v1937
  %v1939 = vpop.f32.mrb[0].mxu0
  %1940 = vmatprep.mubr.bf16.mxu0 %v1270
  %1941 = vmatmul.mubr.bf16.gmra.mrb[0].mxu0 %v1269
  %v1942 = vpop.f32.mrb[0].mxu0
  %v1943 = vadd.f32 %v1654, %v1942
  %v1944 = vpop.f32.mrb[0].mxu0
  %v1945 = vpop.f32.mrb[0].mxu0
  %v1946 = vadd.f32 %v1657, %v1945
  %v1947 = vpop.f32.mrb[0].mxu0
  %1948 = vmatprep.mubr.bf16.mxu0 %v1274
  %1949 = vmatmul.mubr.bf16.gmra.mrb[0].mxu0 %v1273
  %v1950 = vpop.f32.mrb[0].mxu0
  %v1951 = vadd.f32 %v1662, %v1950
  %v1952 = vpop.f32.mrb[0].mxu0
  %v1953 = vpop.f32.mrb[0].mxu0
  %v1954 = vadd.f32 %v1665, %v1953
  %v1955 = vpop.f32.mrb[0].mxu0
  %1956 = vmatprep.mubr.bf16.mxu0 %v1278
  %1957 = vmatmul.mubr.bf16.gmra.mrb[0].mxu0 %v1277
  %v1958 = vpop.f32.mrb[0].mxu0
  %v1959 = vadd.f32 %v1670, %v1958
  %v1960 = vpop.f32.mrb[0].mxu0
  %v1961 = vpop.f32.mrb[0].mxu0
  %v1962 = vadd.f32 %v1673, %v1961
  %v1963 = vpop.f32.mrb[0].mxu0
  %1964 = vmatprep.mubr.bf16.mxu0 %v1282
  %1965 = vmatmul.mubr.bf16.gmra.mrb[0].mxu0 %v1281
  %v1966 = vpop.f32.mrb[0].mxu0
  %v1967 = vadd.f32 %v1678, %v1966
  %v1968 = vpop.f32.mrb[0].mxu0
  %v1969 = vpop.f32.mrb[0].mxu0
  %v1970 = vadd.f32 %v1681, %v1969
  %v1971 = vpop.f32.mrb[0].mxu0
  %1972 = vmatprep.mubr.bf16.mxu0 %v1286
  %1973 = vmatmul.mubr.bf16.gmra.mrb[0].mxu0 %v1285
  %v1974 = vpop.f32.mrb[0].mxu0
  %v1975 = vadd.f32 %v1686, %v1974
  %v1976 = vpop.f32.mrb[0].mxu0
  %v1977 = vpop.f32.mrb[0].mxu0
  %v1978 = vadd.f32 %v1689, %v1977
  %v1979 = vpop.f32.mrb[0].mxu0
  %1980 = vmatprep.mubr.bf16.mxu0 %v1290
  %1981 = vmatmul.mubr.bf16.gmra.mrb[0].mxu0 %v1289
  %v1982 = vpop.f32.mrb[0].mxu0
  %v1983 = vadd.f32 %v1694, %v1982
  %v1984 = vpop.f32.mrb[0].mxu0
  %v1985 = vpop.f32.mrb[0].mxu0
  %v1986 = vadd.f32 %v1697, %v1985
  %v1987 = vpop.f32.mrb[0].mxu0
  %1988 = vmatprep.mubr.bf16.mxu0 %v1294
  %1989 = vmatmul.mubr.bf16.gmra.mrb[0].mxu0 %v1293
  %v1990 = vpop.f32.mrb[0].mxu0
  %v1991 = vadd.f32 %v1702, %v1990
  %v1992 = vpop.f32.mrb[0].mxu0
  %v1993 = vpop.f32.mrb[0].mxu0
  %v1994 = vadd.f32 %v1705, %v1993
  %v1995 = vpop.f32.mrb[0].mxu0
  %1996 = vmatprep.mubr.bf16.mxu0 %v1298
  %1997 = vmatmul.mubr.bf16.gmra.mrb[0].mxu0 %v1297
  %v1998 = vpop.f32.mrb[0].mxu0
  %v1999 = vadd.f32 %v1710, %v1998
  %v2000 = vpop.f32.mrb[0].mxu0
  %v2001 = vpop.f32.mrb[0].mxu0
  %v2002 = vadd.f32 %v1713, %v2001
  %v2003 = vpop.f32.mrb[0].mxu0
  %2004 = vdwg.mxu0
  %v2005 = vpack.c.bf16 %v1754, %v1751
  %v2006 = vpack.c.bf16 %v1762, %v1759
  %v2007 = vpack.c.bf16 %v1770, %v1767
  %v2008 = vpack.c.bf16 %v1778, %v1775
  %v2009 = vpack.c.bf16 %v1786, %v1783
  %v2010 = vpack.c.bf16 %v1794, %v1791
  %v2011 = vpack.c.bf16 %v1802, %v1799
  %v2012 = vpack.c.bf16 %v1810, %v1807
  %v2013 = vpack.c.bf16 %v1818, %v1815
  %v2014 = vpack.c.bf16 %v1826, %v1823
  %v2015 = vpack.c.bf16 %v1834, %v1831
  %v2016 = vpack.c.bf16 %v1842, %v1839
  %v2017 = vpack.c.bf16 %v1850, %v1847
  %v2018 = vpack.c.bf16 %v1858, %v1855
  %v2019 = vpack.c.bf16 %v1866, %v1863
  %v2020 = vpack.c.bf16 %v1874, %v1871
  %v2021 = vpack.c.bf16 %v1882, %v1879
  %v2022 = vpack.c.bf16 %v1890, %v1887
  %v2023 = vpack.c.bf16 %v1898, %v1895
  %v2024 = vpack.c.bf16 %v1906, %v1903
  %v2025 = vpack.c.bf16 %v1914, %v1911
  %v2026 = vpack.c.bf16 %v1922, %v1919
  %v2027 = vpack.c.bf16 %v1930, %v1927
  %v2028 = vpack.c.bf16 %v1938, %v1935
  %v2029 = vpack.c.bf16 %v1946, %v1943
  %v2030 = vpack.c.bf16 %v1954, %v1951
  %v2031 = vpack.c.bf16 %v1962, %v1959
  %v2032 = vpack.c.bf16 %v1970, %v1967
  %v2033 = vpack.c.bf16 %v1978, %v1975
  %v2034 = vpack.c.bf16 %v1986, %v1983
  %v2035 = vpack.c.bf16 %v1994, %v1991
  %v2036 = vpack.c.bf16 %v2002, %v1999
  %v2037 = vld [vmem:[%s3] sm:$0x1]
  %v2039 = vlaneseq
  %v2040 = vshrl.u32 %v2039, 7
  %v2041 = vsub.s32 0, %v2040
  %v2042 = vrot.slane %v2037, %v2041
  %2044 = vmatprep.subr.bf16.mxu0 0
  %2045 = vmatpush1.bf16.msra.mxu0 %v2005
  %2046 = vmatprep.subr.bf16.mxu0 0
  %2047 = vmatpush1.bf16.msra.mxu0 %v2006
  %2048 = vmatprep.subr.bf16.mxu0 0
  %2049 = vmatpush1.bf16.msra.mxu0 %v2007
  %2050 = vmatprep.subr.bf16.mxu0 0
  %2051 = vmatpush1.bf16.msra.mxu0 %v2008
  %2052 = vmatprep.subr.bf16.mxu0 0
  %2053 = vmatpush1.bf16.msra.mxu0 %v2009
  %2054 = vmatprep.subr.bf16.mxu0 0
  %2055 = vmatpush1.bf16.msra.mxu0 %v2010
  %2056 = vmatprep.subr.bf16.mxu0 0
  %2057 = vmatpush1.bf16.msra.mxu0 %v2011
  %2058 = vmatprep.subr.bf16.mxu0 0
  %2059 = vmatpush1.bf16.msra.mxu0 %v2012
  %2060 = vmatprep.subr.bf16.mxu0 0
  %2061 = vmatpush1.bf16.msra.mxu0 %v2013
  %2062 = vmatprep.subr.bf16.mxu0 0
  %2063 = vmatpush1.bf16.msra.mxu0 %v2014
  %2064 = vmatprep.subr.bf16.mxu0 0
  %2065 = vmatpush1.bf16.msra.mxu0 %v2015
  %2066 = vmatprep.subr.bf16.mxu0 0
  %2067 = vmatpush1.bf16.msra.mxu0 %v2016
  %2068 = vmatprep.subr.bf16.mxu0 0
  %2069 = vmatpush1.bf16.msra.mxu0 %v2017
  %2070 = vmatprep.subr.bf16.mxu0 0
  %2071 = vmatpush1.bf16.msra.mxu0 %v2018
  %2072 = vmatprep.subr.bf16.mxu0 0
  %2073 = vmatpush1.bf16.msra.mxu0 %v2019
  %2074 = vmatprep.subr.bf16.mxu0 0
  %2075 = vmatpush1.bf16.msra.mxu0 %v2020
  %2076 = vmatprep.mubr.bf16.mxu0 %v1172
  %2077 = vmatmul.mubr.bf16.gmra.mrb[0].mxu0 %v1171
  %v2078 = vpop.f32.mrb[0].mxu0
  %v2079 = vadd.f32 %v2042, %v2078
  %v2080 = vpop.f32.mrb[0].mxu0
  %v2081 = vpop.f32.mrb[0].mxu0
  %v2082 = vadd.f32 %v2042, %v2081
  %v2083 = vpop.f32.mrb[0].mxu0
  %2084 = vmatprep.mubr.bf16.mxu0 %v1176
  %2085 = vmatmul.mubr.bf16.gmra.mrb[0].mxu0 %v1175
  %v2086 = vpop.f32.mrb[0].mxu0
  %v2087 = vadd.f32 %v2042, %v2086
  %v2088 = vpop.f32.mrb[0].mxu0
  %v2089 = vpop.f32.mrb[0].mxu0
  %v2090 = vadd.f32 %v2042, %v2089
  %v2091 = vpop.f32.mrb[0].mxu0
  %2092 = vmatprep.mubr.bf16.mxu0 %v1180
  %2093 = vmatmul.mubr.bf16.gmra.mrb[0].mxu0 %v1179
  %v2094 = vpop.f32.mrb[0].mxu0
  %v2095 = vadd.f32 %v2042, %v2094
  %v2096 = vpop.f32.mrb[0].mxu0
  %v2097 = vpop.f32.mrb[0].mxu0
  %v2098 = vadd.f32 %v2042, %v2097
  %v2099 = vpop.f32.mrb[0].mxu0
  %2100 = vmatprep.mubr.bf16.mxu0 %v1184
  %2101 = vmatmul.mubr.bf16.gmra.mrb[0].mxu0 %v1183
  %v2102 = vpop.f32.mrb[0].mxu0
  %v2103 = vadd.f32 %v2042, %v2102
  %v2104 = vpop.f32.mrb[0].mxu0
  %v2105 = vpop.f32.mrb[0].mxu0
  %v2106 = vadd.f32 %v2042, %v2105
  %v2107 = vpop.f32.mrb[0].mxu0
  %2108 = vmatprep.mubr.bf16.mxu0 %v1188
  %2109 = vmatmul.mubr.bf16.gmra.mrb[0].mxu0 %v1187
  %v2110 = vpop.f32.mrb[0].mxu0
  %v2111 = vadd.f32 %v2042, %v2110
  %v2112 = vpop.f32.mrb[0].mxu0
  %v2113 = vpop.f32.mrb[0].mxu0
  %v2114 = vadd.f32 %v2042, %v2113
  %v2115 = vpop.f32.mrb[0].mxu0
  %2116 = vmatprep.mubr.bf16.mxu0 %v1192
  %2117 = vmatmul.mubr.bf16.gmra.mrb[0].mxu0 %v1191
  %v2118 = vpop.f32.mrb[0].mxu0
  %v2119 = vadd.f32 %v2042, %v2118
  %v2120 = vpop.f32.mrb[0].mxu0
  %v2121 = vpop.f32.mrb[0].mxu0
  %v2122 = vadd.f32 %v2042, %v2121
  %v2123 = vpop.f32.mrb[0].mxu0
  %2124 = vmatprep.mubr.bf16.mxu0 %v1196
  %2125 = vmatmul.mubr.bf16.gmra.mrb[0].mxu0 %v1195
  %v2126 = vpop.f32.mrb[0].mxu0
  %v2127 = vadd.f32 %v2042, %v2126
  %v2128 = vpop.f32.mrb[0].mxu0
  %v2129 = vpop.f32.mrb[0].mxu0
  %v2130 = vadd.f32 %v2042, %v2129
  %v2131 = vpop.f32.mrb[0].mxu0
  %2132 = vmatprep.mubr.bf16.mxu0 %v1200
  %2133 = vmatmul.mubr.bf16.gmra.mrb[0].mxu0 %v1199
  %v2134 = vpop.f32.mrb[0].mxu0
  %v2135 = vadd.f32 %v2042, %v2134
  %v2136 = vpop.f32.mrb[0].mxu0
  %v2137 = vpop.f32.mrb[0].mxu0
  %v2138 = vadd.f32 %v2042, %v2137
  %v2139 = vpop.f32.mrb[0].mxu0
  %2140 = vmatprep.mubr.bf16.mxu0 %v1204
  %2141 = vmatmul.mubr.bf16.gmra.mrb[0].mxu0 %v1203
  %v2142 = vpop.f32.mrb[0].mxu0
  %v2143 = vadd.f32 %v2042, %v2142
  %v2144 = vpop.f32.mrb[0].mxu0
  %v2145 = vpop.f32.mrb[0].mxu0
  %v2146 = vadd.f32 %v2042, %v2145
  %v2147 = vpop.f32.mrb[0].mxu0
  %2148 = vmatprep.mubr.bf16.mxu0 %v1208
  %2149 = vmatmul.mubr.bf16.gmra.mrb[0].mxu0 %v1207
  %v2150 = vpop.f32.mrb[0].mxu0
  %v2151 = vadd.f32 %v2042, %v2150
  %v2152 = vpop.f32.mrb[0].mxu0
  %v2153 = vpop.f32.mrb[0].mxu0
  %v2154 = vadd.f32 %v2042, %v2153
  %v2155 = vpop.f32.mrb[0].mxu0
  %2156 = vmatprep.mubr.bf16.mxu0 %v1212
  %2157 = vmatmul.mubr.bf16.gmra.mrb[0].mxu0 %v1211
  %v2158 = vpop.f32.mrb[0].mxu0
  %v2159 = vadd.f32 %v2042, %v2158
  %v2160 = vpop.f32.mrb[0].mxu0
  %v2161 = vpop.f32.mrb[0].mxu0
  %v2162 = vadd.f32 %v2042, %v2161
  %v2163 = vpop.f32.mrb[0].mxu0
  %2164 = vmatprep.mubr.bf16.mxu0 %v1216
  %2165 = vmatmul.mubr.bf16.gmra.mrb[0].mxu0 %v1215
  %v2166 = vpop.f32.mrb[0].mxu0
  %v2167 = vadd.f32 %v2042, %v2166
  %v2168 = vpop.f32.mrb[0].mxu0
  %v2169 = vpop.f32.mrb[0].mxu0
  %v2170 = vadd.f32 %v2042, %v2169
  %v2171 = vpop.f32.mrb[0].mxu0
  %2172 = vmatprep.mubr.bf16.mxu0 %v1220
  %2173 = vmatmul.mubr.bf16.gmra.mrb[0].mxu0 %v1219
  %v2174 = vpop.f32.mrb[0].mxu0
  %v2175 = vadd.f32 %v2042, %v2174
  %v2176 = vpop.f32.mrb[0].mxu0
  %v2177 = vpop.f32.mrb[0].mxu0
  %v2178 = vadd.f32 %v2042, %v2177
  %v2179 = vpop.f32.mrb[0].mxu0
  %2180 = vmatprep.mubr.bf16.mxu0 %v1224
  %2181 = vmatmul.mubr.bf16.gmra.mrb[0].mxu0 %v1223
  %v2182 = vpop.f32.mrb[0].mxu0
  %v2183 = vadd.f32 %v2042, %v2182
  %v2184 = vpop.f32.mrb[0].mxu0
  %v2185 = vpop.f32.mrb[0].mxu0
  %v2186 = vadd.f32 %v2042, %v2185
  %v2187 = vpop.f32.mrb[0].mxu0
  %2188 = vmatprep.mubr.bf16.mxu0 %v1228
  %2189 = vmatmul.mubr.bf16.gmra.mrb[0].mxu0 %v1227
  %v2190 = vpop.f32.mrb[0].mxu0
  %v2191 = vadd.f32 %v2042, %v2190
  %v2192 = vpop.f32.mrb[0].mxu0
  %v2193 = vpop.f32.mrb[0].mxu0
  %v2194 = vadd.f32 %v2042, %v2193
  %v2195 = vpop.f32.mrb[0].mxu0
  %2196 = vmatprep.mubr.bf16.mxu0 %v1232
  %2197 = vmatmul.mubr.bf16.gmra.mrb[0].mxu0 %v1231
  %v2198 = vpop.f32.mrb[0].mxu0
  %v2199 = vadd.f32 %v2042, %v2198
  %v2200 = vpop.f32.mrb[0].mxu0
  %v2201 = vpop.f32.mrb[0].mxu0
  %v2202 = vadd.f32 %v2042, %v2201
  %v2203 = vpop.f32.mrb[0].mxu0
  %2204 = vmatprep.mubr.bf16.mxu0 %v1236
  %2205 = vmatmul.mubr.bf16.gmra.mrb[0].mxu0 %v1235
  %v2206 = vpop.f32.mrb[0].mxu0
  %v2207 = vadd.f32 %v2042, %v2206
  %v2208 = vpop.f32.mrb[0].mxu0
  %v2209 = vpop.f32.mrb[0].mxu0
  %v2210 = vadd.f32 %v2042, %v2209
  %v2211 = vpop.f32.mrb[0].mxu0
  %2212 = vmatprep.mubr.bf16.mxu0 %v1240
  %2213 = vmatmul.mubr.bf16.gmra.mrb[0].mxu0 %v1239
  %v2214 = vpop.f32.mrb[0].mxu0
  %v2215 = vadd.f32 %v2042, %v2214
  %v2216 = vpop.f32.mrb[0].mxu0
  %v2217 = vpop.f32.mrb[0].mxu0
  %v2218 = vadd.f32 %v2042, %v2217
  %v2219 = vpop.f32.mrb[0].mxu0
  %2220 = vmatprep.mubr.bf16.mxu0 %v1244
  %2221 = vmatmul.mubr.bf16.gmra.mrb[0].mxu0 %v1243
  %v2222 = vpop.f32.mrb[0].mxu0
  %v2223 = vadd.f32 %v2042, %v2222
  %v2224 = vpop.f32.mrb[0].mxu0
  %v2225 = vpop.f32.mrb[0].mxu0
  %v2226 = vadd.f32 %v2042, %v2225
  %v2227 = vpop.f32.mrb[0].mxu0
  %2228 = vmatprep.mubr.bf16.mxu0 %v1248
  %2229 = vmatmul.mubr.bf16.gmra.mrb[0].mxu0 %v1247
  %v2230 = vpop.f32.mrb[0].mxu0
  %v2231 = vadd.f32 %v2042, %v2230
  %v2232 = vpop.f32.mrb[0].mxu0
  %v2233 = vpop.f32.mrb[0].mxu0
  %v2234 = vadd.f32 %v2042, %v2233
  %v2235 = vpop.f32.mrb[0].mxu0
  %2236 = vmatprep.mubr.bf16.mxu0 %v1252
  %2237 = vmatmul.mubr.bf16.gmra.mrb[0].mxu0 %v1251
  %v2238 = vpop.f32.mrb[0].mxu0
  %v2239 = vadd.f32 %v2042, %v2238
  %v2240 = vpop.f32.mrb[0].mxu0
  %v2241 = vpop.f32.mrb[0].mxu0
  %v2242 = vadd.f32 %v2042, %v2241
  %v2243 = vpop.f32.mrb[0].mxu0
  %2244 = vmatprep.mubr.bf16.mxu0 %v1256
  %2245 = vmatmul.mubr.bf16.gmra.mrb[0].mxu0 %v1255
  %v2246 = vpop.f32.mrb[0].mxu0
  %v2247 = vadd.f32 %v2042, %v2246
  %v2248 = vpop.f32.mrb[0].mxu0
  %v2249 = vpop.f32.mrb[0].mxu0
  %v2250 = vadd.f32 %v2042, %v2249
  %v2251 = vpop.f32.mrb[0].mxu0
  %2252 = vmatprep.mubr.bf16.mxu0 %v1260
  %2253 = vmatmul.mubr.bf16.gmra.mrb[0].mxu0 %v1259
  %v2254 = vpop.f32.mrb[0].mxu0
  %v2255 = vadd.f32 %v2042, %v2254
  %v2256 = vpop.f32.mrb[0].mxu0
  %v2257 = vpop.f32.mrb[0].mxu0
  %v2258 = vadd.f32 %v2042, %v2257
  %v2259 = vpop.f32.mrb[0].mxu0
  %2260 = vmatprep.mubr.bf16.mxu0 %v1264
  %2261 = vmatmul.mubr.bf16.gmra.mrb[0].mxu0 %v1263
  %v2262 = vpop.f32.mrb[0].mxu0
  %v2263 = vadd.f32 %v2042, %v2262
  %v2264 = vpop.f32.mrb[0].mxu0
  %v2265 = vpop.f32.mrb[0].mxu0
  %v2266 = vadd.f32 %v2042, %v2265
  %v2267 = vpop.f32.mrb[0].mxu0
  %2268 = vmatprep.mubr.bf16.mxu0 %v1268
  %2269 = vmatmul.mubr.bf16.gmra.mrb[0].mxu0 %v1267
  %v2270 = vpop.f32.mrb[0].mxu0
  %v2271 = vadd.f32 %v2042, %v2270
  %v2272 = vpop.f32.mrb[0].mxu0
  %v2273 = vpop.f32.mrb[0].mxu0
  %v2274 = vadd.f32 %v2042, %v2273
  %v2275 = vpop.f32.mrb[0].mxu0
  %2276 = vmatprep.mubr.bf16.mxu0 %v1272
  %2277 = vmatmul.mubr.bf16.gmra.mrb[0].mxu0 %v1271
  %v2278 = vpop.f32.mrb[0].mxu0
  %v2279 = vadd.f32 %v2042, %v2278
  %v2280 = vpop.f32.mrb[0].mxu0
  %v2281 = vpop.f32.mrb[0].mxu0
  %v2282 = vadd.f32 %v2042, %v2281
  %v2283 = vpop.f32.mrb[0].mxu0
  %2284 = vmatprep.mubr.bf16.mxu0 %v1276
  %2285 = vmatmul.mubr.bf16.gmra.mrb[0].mxu0 %v1275
  %v2286 = vpop.f32.mrb[0].mxu0
  %v2287 = vadd.f32 %v2042, %v2286
  %v2288 = vpop.f32.mrb[0].mxu0
  %v2289 = vpop.f32.mrb[0].mxu0
  %v2290 = vadd.f32 %v2042, %v2289
  %v2291 = vpop.f32.mrb[0].mxu0
  %2292 = vmatprep.mubr.bf16.mxu0 %v1280
  %2293 = vmatmul.mubr.bf16.gmra.mrb[0].mxu0 %v1279
  %v2294 = vpop.f32.mrb[0].mxu0
  %v2295 = vadd.f32 %v2042, %v2294
  %v2296 = vpop.f32.mrb[0].mxu0
  %v2297 = vpop.f32.mrb[0].mxu0
  %v2298 = vadd.f32 %v2042, %v2297
  %v2299 = vpop.f32.mrb[0].mxu0
  %2300 = vmatprep.mubr.bf16.mxu0 %v1284
  %2301 = vmatmul.mubr.bf16.gmra.mrb[0].mxu0 %v1283
  %v2302 = vpop.f32.mrb[0].mxu0
  %v2303 = vadd.f32 %v2042, %v2302
  %v2304 = vpop.f32.mrb[0].mxu0
  %v2305 = vpop.f32.mrb[0].mxu0
  %v2306 = vadd.f32 %v2042, %v2305
  %v2307 = vpop.f32.mrb[0].mxu0
  %2308 = vmatprep.mubr.bf16.mxu0 %v1288
  %2309 = vmatmul.mubr.bf16.gmra.mrb[0].mxu0 %v1287
  %v2310 = vpop.f32.mrb[0].mxu0
  %v2311 = vadd.f32 %v2042, %v2310
  %v2312 = vpop.f32.mrb[0].mxu0
  %v2313 = vpop.f32.mrb[0].mxu0
  %v2314 = vadd.f32 %v2042, %v2313
  %v2315 = vpop.f32.mrb[0].mxu0
  %2316 = vmatprep.mubr.bf16.mxu0 %v1292
  %2317 = vmatmul.mubr.bf16.gmra.mrb[0].mxu0 %v1291
  %v2318 = vpop.f32.mrb[0].mxu0
  %v2319 = vadd.f32 %v2042, %v2318
  %v2320 = vpop.f32.mrb[0].mxu0
  %v2321 = vpop.f32.mrb[0].mxu0
  %v2322 = vadd.f32 %v2042, %v2321
  %v2323 = vpop.f32.mrb[0].mxu0
  %2324 = vmatprep.mubr.bf16.mxu0 %v1296
  %2325 = vmatmul.mubr.bf16.gmra.mrb[0].mxu0 %v1295
  %v2326 = vpop.f32.mrb[0].mxu0
  %v2327 = vadd.f32 %v2042, %v2326
  %v2328 = vpop.f32.mrb[0].mxu0
  %v2329 = vpop.f32.mrb[0].mxu0
  %v2330 = vadd.f32 %v2042, %v2329
  %v2331 = vpop.f32.mrb[0].mxu0
  %2332 = vdwg.mxu0
  %2333 = vmatprep.subr.bf16.mxu0 0
  %2334 = vmatpush1.bf16.msra.mxu0 %v2021
  %2335 = vmatprep.subr.bf16.mxu0 0
  %2336 = vmatpush1.bf16.msra.mxu0 %v2022
  %2337 = vmatprep.subr.bf16.mxu0 0
  %2338 = vmatpush1.bf16.msra.mxu0 %v2023
  %2339 = vmatprep.subr.bf16.mxu0 0
  %2340 = vmatpush1.bf16.msra.mxu0 %v2024
  %2341 = vmatprep.subr.bf16.mxu0 0
  %2342 = vmatpush1.bf16.msra.mxu0 %v2025
  %2343 = vmatprep.subr.bf16.mxu0 0
  %2344 = vmatpush1.bf16.msra.mxu0 %v2026
  %2345 = vmatprep.subr.bf16.mxu0 0
  %2346 = vmatpush1.bf16.msra.mxu0 %v2027
  %2347 = vmatprep.subr.bf16.mxu0 0
  %2348 = vmatpush1.bf16.msra.mxu0 %v2028
  %2349 = vmatprep.subr.bf16.mxu0 0
  %2350 = vmatpush1.bf16.msra.mxu0 %v2029
  %2351 = vmatprep.subr.bf16.mxu0 0
  %2352 = vmatpush1.bf16.msra.mxu0 %v2030
  %2353 = vmatprep.subr.bf16.mxu0 0
  %2354 = vmatpush1.bf16.msra.mxu0 %v2031
  %2355 = vmatprep.subr.bf16.mxu0 0
  %2356 = vmatpush1.bf16.msra.mxu0 %v2032
  %2357 = vmatprep.subr.bf16.mxu0 0
  %2358 = vmatpush1.bf16.msra.mxu0 %v2033
  %2359 = vmatprep.subr.bf16.mxu0 0
  %2360 = vmatpush1.bf16.msra.mxu0 %v2034
  %2361 = vmatprep.subr.bf16.mxu0 0
  %2362 = vmatpush1.bf16.msra.mxu0 %v2035
  %2363 = vmatprep.subr.bf16.mxu0 0
  %2364 = vmatpush1.bf16.msra.mxu0 %v2036
  %2365 = vmatprep.mubr.bf16.mxu0 %v1174
  %2366 = vmatmul.mubr.bf16.gmra.mrb[0].mxu0 %v1173
  %v2367 = vpop.f32.mrb[0].mxu0
  %v2368 = vadd.f32 %v2079, %v2367
  %v2369 = vpop.f32.mrb[0].mxu0
  %v2370 = vpop.f32.mrb[0].mxu0
  %v2371 = vadd.f32 %v2082, %v2370
  %v2372 = vpop.f32.mrb[0].mxu0
  %2373 = vmatprep.mubr.bf16.mxu0 %v1178
  %2374 = vmatmul.mubr.bf16.gmra.mrb[0].mxu0 %v1177
  %v2375 = vpop.f32.mrb[0].mxu0
  %v2376 = vadd.f32 %v2087, %v2375
  %v2377 = vpop.f32.mrb[0].mxu0
  %v2378 = vpop.f32.mrb[0].mxu0
  %v2379 = vadd.f32 %v2090, %v2378
  %v2380 = vpop.f32.mrb[0].mxu0
  %2381 = vmatprep.mubr.bf16.mxu0 %v1182
  %2382 = vmatmul.mubr.bf16.gmra.mrb[0].mxu0 %v1181
  %v2383 = vpop.f32.mrb[0].mxu0
  %v2384 = vadd.f32 %v2095, %v2383
  %v2385 = vpop.f32.mrb[0].mxu0
  %v2386 = vpop.f32.mrb[0].mxu0
  %v2387 = vadd.f32 %v2098, %v2386
  %v2388 = vpop.f32.mrb[0].mxu0
  %2389 = vmatprep.mubr.bf16.mxu0 %v1186
  %2390 = vmatmul.mubr.bf16.gmra.mrb[0].mxu0 %v1185
  %v2391 = vpop.f32.mrb[0].mxu0
  %v2392 = vadd.f32 %v2103, %v2391
  %v2393 = vpop.f32.mrb[0].mxu0
  %v2394 = vpop.f32.mrb[0].mxu0
  %v2395 = vadd.f32 %v2106, %v2394
  %v2396 = vpop.f32.mrb[0].mxu0
  %2397 = vmatprep.mubr.bf16.mxu0 %v1190
  %2398 = vmatmul.mubr.bf16.gmra.mrb[0].mxu0 %v1189
  %v2399 = vpop.f32.mrb[0].mxu0
  %v2400 = vadd.f32 %v2111, %v2399
  %v2401 = vpop.f32.mrb[0].mxu0
  %v2402 = vpop.f32.mrb[0].mxu0
  %v2403 = vadd.f32 %v2114, %v2402
  %v2404 = vpop.f32.mrb[0].mxu0
  %2405 = vmatprep.mubr.bf16.mxu0 %v1194
  %2406 = vmatmul.mubr.bf16.gmra.mrb[0].mxu0 %v1193
  %v2407 = vpop.f32.mrb[0].mxu0
  %v2408 = vadd.f32 %v2119, %v2407
  %v2409 = vpop.f32.mrb[0].mxu0
  %v2410 = vpop.f32.mrb[0].mxu0
  %v2411 = vadd.f32 %v2122, %v2410
  %v2412 = vpop.f32.mrb[0].mxu0
  %2413 = vmatprep.mubr.bf16.mxu0 %v1198
  %2414 = vmatmul.mubr.bf16.gmra.mrb[0].mxu0 %v1197
  %v2415 = vpop.f32.mrb[0].mxu0
  %v2416 = vadd.f32 %v2127, %v2415
  %v2417 = vpop.f32.mrb[0].mxu0
  %v2418 = vpop.f32.mrb[0].mxu0
  %v2419 = vadd.f32 %v2130, %v2418
  %v2420 = vpop.f32.mrb[0].mxu0
  %2421 = vmatprep.mubr.bf16.mxu0 %v1202
  %2422 = vmatmul.mubr.bf16.gmra.mrb[0].mxu0 %v1201
  %v2423 = vpop.f32.mrb[0].mxu0
  %v2424 = vadd.f32 %v2135, %v2423
  %v2425 = vpop.f32.mrb[0].mxu0
  %v2426 = vpop.f32.mrb[0].mxu0
  %v2427 = vadd.f32 %v2138, %v2426
  %v2428 = vpop.f32.mrb[0].mxu0
  %2429 = vmatprep.mubr.bf16.mxu0 %v1206
  %2430 = vmatmul.mubr.bf16.gmra.mrb[0].mxu0 %v1205
  %v2431 = vpop.f32.mrb[0].mxu0
  %v2432 = vadd.f32 %v2143, %v2431
  %v2433 = vpop.f32.mrb[0].mxu0
  %v2434 = vpop.f32.mrb[0].mxu0
  %v2435 = vadd.f32 %v2146, %v2434
  %v2436 = vpop.f32.mrb[0].mxu0
  %2437 = vmatprep.mubr.bf16.mxu0 %v1210
  %2438 = vmatmul.mubr.bf16.gmra.mrb[0].mxu0 %v1209
  %v2439 = vpop.f32.mrb[0].mxu0
  %v2440 = vadd.f32 %v2151, %v2439
  %v2441 = vpop.f32.mrb[0].mxu0
  %v2442 = vpop.f32.mrb[0].mxu0
  %v2443 = vadd.f32 %v2154, %v2442
  %v2444 = vpop.f32.mrb[0].mxu0
  %2445 = vmatprep.mubr.bf16.mxu0 %v1214
  %2446 = vmatmul.mubr.bf16.gmra.mrb[0].mxu0 %v1213
  %v2447 = vpop.f32.mrb[0].mxu0
  %v2448 = vadd.f32 %v2159, %v2447
  %v2449 = vpop.f32.mrb[0].mxu0
  %v2450 = vpop.f32.mrb[0].mxu0
  %v2451 = vadd.f32 %v2162, %v2450
  %v2452 = vpop.f32.mrb[0].mxu0
  %2453 = vmatprep.mubr.bf16.mxu0 %v1218
  %2454 = vmatmul.mubr.bf16.gmra.mrb[0].mxu0 %v1217
  %v2455 = vpop.f32.mrb[0].mxu0
  %v2456 = vadd.f32 %v2167, %v2455
  %v2457 = vpop.f32.mrb[0].mxu0
  %v2458 = vpop.f32.mrb[0].mxu0
  %v2459 = vadd.f32 %v2170, %v2458
  %v2460 = vpop.f32.mrb[0].mxu0
  %2461 = vmatprep.mubr.bf16.mxu0 %v1222
  %2462 = vmatmul.mubr.bf16.gmra.mrb[0].mxu0 %v1221
  %v2463 = vpop.f32.mrb[0].mxu0
  %v2464 = vadd.f32 %v2175, %v2463
  %v2465 = vpop.f32.mrb[0].mxu0
  %v2466 = vpop.f32.mrb[0].mxu0
  %v2467 = vadd.f32 %v2178, %v2466
  %v2468 = vpop.f32.mrb[0].mxu0
  %2469 = vmatprep.mubr.bf16.mxu0 %v1226
  %2470 = vmatmul.mubr.bf16.gmra.mrb[0].mxu0 %v1225
  %v2471 = vpop.f32.mrb[0].mxu0
  %v2472 = vadd.f32 %v2183, %v2471
  %v2473 = vpop.f32.mrb[0].mxu0
  %v2474 = vpop.f32.mrb[0].mxu0
  %v2475 = vadd.f32 %v2186, %v2474
  %v2476 = vpop.f32.mrb[0].mxu0
  %2477 = vmatprep.mubr.bf16.mxu0 %v1230
  %2478 = vmatmul.mubr.bf16.gmra.mrb[0].mxu0 %v1229
  %v2479 = vpop.f32.mrb[0].mxu0
  %v2480 = vadd.f32 %v2191, %v2479
  %v2481 = vpop.f32.mrb[0].mxu0
  %v2482 = vpop.f32.mrb[0].mxu0
  %v2483 = vadd.f32 %v2194, %v2482
  %v2484 = vpop.f32.mrb[0].mxu0
  %2485 = vmatprep.mubr.bf16.mxu0 %v1234
  %2486 = vmatmul.mubr.bf16.gmra.mrb[0].mxu0 %v1233
  %v2487 = vpop.f32.mrb[0].mxu0
  %v2488 = vadd.f32 %v2199, %v2487
  %v2489 = vpop.f32.mrb[0].mxu0
  %v2490 = vpop.f32.mrb[0].mxu0
  %v2491 = vadd.f32 %v2202, %v2490
  %v2492 = vpop.f32.mrb[0].mxu0
  %2493 = vmatprep.mubr.bf16.mxu0 %v1238
  %2494 = vmatmul.mubr.bf16.gmra.mrb[0].mxu0 %v1237
  %v2495 = vpop.f32.mrb[0].mxu0
  %v2496 = vadd.f32 %v2207, %v2495
  %v2497 = vpop.f32.mrb[0].mxu0
  %v2498 = vpop.f32.mrb[0].mxu0
  %v2499 = vadd.f32 %v2210, %v2498
  %v2500 = vpop.f32.mrb[0].mxu0
  %2501 = vmatprep.mubr.bf16.mxu0 %v1242
  %2502 = vmatmul.mubr.bf16.gmra.mrb[0].mxu0 %v1241
  %v2503 = vpop.f32.mrb[0].mxu0
  %v2504 = vadd.f32 %v2215, %v2503
  %v2505 = vpop.f32.mrb[0].mxu0
  %v2506 = vpop.f32.mrb[0].mxu0
  %v2507 = vadd.f32 %v2218, %v2506
  %v2508 = vpop.f32.mrb[0].mxu0
  %2509 = vmatprep.mubr.bf16.mxu0 %v1246
  %2510 = vmatmul.mubr.bf16.gmra.mrb[0].mxu0 %v1245
  %v2511 = vpop.f32.mrb[0].mxu0
  %v2512 = vadd.f32 %v2223, %v2511
  %v2513 = vpop.f32.mrb[0].mxu0
  %v2514 = vpop.f32.mrb[0].mxu0
  %v2515 = vadd.f32 %v2226, %v2514
  %v2516 = vpop.f32.mrb[0].mxu0
  %2517 = vmatprep.mubr.bf16.mxu0 %v1250
  %2518 = vmatmul.mubr.bf16.gmra.mrb[0].mxu0 %v1249
  %v2519 = vpop.f32.mrb[0].mxu0
  %v2520 = vadd.f32 %v2231, %v2519
  %v2521 = vpop.f32.mrb[0].mxu0
  %v2522 = vpop.f32.mrb[0].mxu0
  %v2523 = vadd.f32 %v2234, %v2522
  %v2524 = vpop.f32.mrb[0].mxu0
  %2525 = vmatprep.mubr.bf16.mxu0 %v1254
  %2526 = vmatmul.mubr.bf16.gmra.mrb[0].mxu0 %v1253
  %v2527 = vpop.f32.mrb[0].mxu0
  %v2528 = vadd.f32 %v2239, %v2527
  %v2529 = vpop.f32.mrb[0].mxu0
  %v2530 = vpop.f32.mrb[0].mxu0
  %v2531 = vadd.f32 %v2242, %v2530
  %v2532 = vpop.f32.mrb[0].mxu0
  %2533 = vmatprep.mubr.bf16.mxu0 %v1258
  %2534 = vmatmul.mubr.bf16.gmra.mrb[0].mxu0 %v1257
  %v2535 = vpop.f32.mrb[0].mxu0
  %v2536 = vadd.f32 %v2247, %v2535
  %v2537 = vpop.f32.mrb[0].mxu0
  %v2538 = vpop.f32.mrb[0].mxu0
  %v2539 = vadd.f32 %v2250, %v2538
  %v2540 = vpop.f32.mrb[0].mxu0
  %2541 = vmatprep.mubr.bf16.mxu0 %v1262
  %2542 = vmatmul.mubr.bf16.gmra.mrb[0].mxu0 %v1261
  %v2543 = vpop.f32.mrb[0].mxu0
  %v2544 = vadd.f32 %v2255, %v2543
  %v2545 = vpop.f32.mrb[0].mxu0
  %v2546 = vpop.f32.mrb[0].mxu0
  %v2547 = vadd.f32 %v2258, %v2546
  %v2548 = vpop.f32.mrb[0].mxu0
  %2549 = vmatprep.mubr.bf16.mxu0 %v1266
  %2550 = vmatmul.mubr.bf16.gmra.mrb[0].mxu0 %v1265
  %v2551 = vpop.f32.mrb[0].mxu0
  %v2552 = vadd.f32 %v2263, %v2551
  %v2553 = vpop.f32.mrb[0].mxu0
  %v2554 = vpop.f32.mrb[0].mxu0
  %v2555 = vadd.f32 %v2266, %v2554
  %v2556 = vpop.f32.mrb[0].mxu0
  %2557 = vmatprep.mubr.bf16.mxu0 %v1270
  %2558 = vmatmul.mubr.bf16.gmra.mrb[0].mxu0 %v1269
  %v2559 = vpop.f32.mrb[0].mxu0
  %v2560 = vadd.f32 %v2271, %v2559
  %v2561 = vpop.f32.mrb[0].mxu0
  %v2562 = vpop.f32.mrb[0].mxu0
  %v2563 = vadd.f32 %v2274, %v2562
  %v2564 = vpop.f32.mrb[0].mxu0
  %2565 = vmatprep.mubr.bf16.mxu0 %v1274
  %2566 = vmatmul.mubr.bf16.gmra.mrb[0].mxu0 %v1273
  %v2567 = vpop.f32.mrb[0].mxu0
  %v2568 = vadd.f32 %v2279, %v2567
  %v2569 = vpop.f32.mrb[0].mxu0
  %v2570 = vpop.f32.mrb[0].mxu0
  %v2571 = vadd.f32 %v2282, %v2570
  %v2572 = vpop.f32.mrb[0].mxu0
  %2573 = vmatprep.mubr.bf16.mxu0 %v1278
  %2574 = vmatmul.mubr.bf16.gmra.mrb[0].mxu0 %v1277
  %v2575 = vpop.f32.mrb[0].mxu0
  %v2576 = vadd.f32 %v2287, %v2575
  %v2577 = vpop.f32.mrb[0].mxu0
  %v2578 = vpop.f32.mrb[0].mxu0
  %v2579 = vadd.f32 %v2290, %v2578
  %v2580 = vpop.f32.mrb[0].mxu0
  %2581 = vmatprep.mubr.bf16.mxu0 %v1282
  %2582 = vmatmul.mubr.bf16.gmra.mrb[0].mxu0 %v1281
  %v2583 = vpop.f32.mrb[0].mxu0
  %v2584 = vadd.f32 %v2295, %v2583
  %v2585 = vpop.f32.mrb[0].mxu0
  %v2586 = vpop.f32.mrb[0].mxu0
  %v2587 = vadd.f32 %v2298, %v2586
  %v2588 = vpop.f32.mrb[0].mxu0
  %2589 = vmatprep.mubr.bf16.mxu0 %v1286
  %2590 = vmatmul.mubr.bf16.gmra.mrb[0].mxu0 %v1285
  %v2591 = vpop.f32.mrb[0].mxu0
  %v2592 = vadd.f32 %v2303, %v2591
  %v2593 = vpop.f32.mrb[0].mxu0
  %v2594 = vpop.f32.mrb[0].mxu0
  %v2595 = vadd.f32 %v2306, %v2594
  %v2596 = vpop.f32.mrb[0].mxu0
  %2597 = vmatprep.mubr.bf16.mxu0 %v1290
  %2598 = vmatmul.mubr.bf16.gmra.mrb[0].mxu0 %v1289
  %v2599 = vpop.f32.mrb[0].mxu0
  %v2600 = vadd.f32 %v2311, %v2599
  %v2601 = vpop.f32.mrb[0].mxu0
  %v2602 = vpop.f32.mrb[0].mxu0
  %v2603 = vadd.f32 %v2314, %v2602
  %v2604 = vpop.f32.mrb[0].mxu0
  %2605 = vmatprep.mubr.bf16.mxu0 %v1294
  %2606 = vmatmul.mubr.bf16.gmra.mrb[0].mxu0 %v1293
  %v2607 = vpop.f32.mrb[0].mxu0
  %v2608 = vadd.f32 %v2319, %v2607
  %v2609 = vpop.f32.mrb[0].mxu0
  %v2610 = vpop.f32.mrb[0].mxu0
  %v2611 = vadd.f32 %v2322, %v2610
  %v2612 = vpop.f32.mrb[0].mxu0
  %2613 = vmatprep.mubr.bf16.mxu0 %v1298
  %2614 = vmatmul.mubr.bf16.gmra.mrb[0].mxu0 %v1297
  %v2615 = vpop.f32.mrb[0].mxu0
  %v2616 = vadd.f32 %v2327, %v2615
  %v2617 = vpop.f32.mrb[0].mxu0
  %v2618 = vpop.f32.mrb[0].mxu0
  %v2619 = vadd.f32 %v2330, %v2618
  %v2620 = vpop.f32.mrb[0].mxu0
  %2621 = vdwg.mxu0
  %v2622 = vlaneseq
  %v2623 = vand.u32 %v2622, 127
  %vm2624 = vcmp.lt.s32.totalorder %v2623, 10
  %v2625 = vsel %vm2624, %v2368, -inf
  %v2626 = vsel %vm2624, %v2371, -inf
  %v2627 = vsel %vm2624, %v2376, -inf
  %v2628 = vsel %vm2624, %v2379, -inf
  %v2629 = vsel %vm2624, %v2384, -inf
  %v2630 = vsel %vm2624, %v2387, -inf
  %v2631 = vsel %vm2624, %v2392, -inf
  %v2632 = vsel %vm2624, %v2395, -inf
  %v2633 = vsel %vm2624, %v2400, -inf
  %v2634 = vsel %vm2624, %v2403, -inf
  %v2635 = vsel %vm2624, %v2408, -inf
  %v2636 = vsel %vm2624, %v2411, -inf
  %v2637 = vsel %vm2624, %v2416, -inf
  %v2638 = vsel %vm2624, %v2419, -inf
  %v2639 = vsel %vm2624, %v2424, -inf
  %v2640 = vsel %vm2624, %v2427, -inf
  %v2641 = vsel %vm2624, %v2432, -inf
  %v2642 = vsel %vm2624, %v2435, -inf
  %v2643 = vsel %vm2624, %v2440, -inf
  %v2644 = vsel %vm2624, %v2443, -inf
  %v2645 = vsel %vm2624, %v2448, -inf
  %v2646 = vsel %vm2624, %v2451, -inf
  %v2647 = vsel %vm2624, %v2456, -inf
  %v2648 = vsel %vm2624, %v2459, -inf
  %v2649 = vsel %vm2624, %v2464, -inf
  %v2650 = vsel %vm2624, %v2467, -inf
  %v2651 = vsel %vm2624, %v2472, -inf
  %v2652 = vsel %vm2624, %v2475, -inf
  %v2653 = vsel %vm2624, %v2480, -inf
  %v2654 = vsel %vm2624, %v2483, -inf
  %v2655 = vsel %vm2624, %v2488, -inf
  %v2656 = vsel %vm2624, %v2491, -inf
  %v2657 = vsel %vm2624, %v2496, -inf
  %v2658 = vsel %vm2624, %v2499, -inf
  %v2659 = vsel %vm2624, %v2504, -inf
  %v2660 = vsel %vm2624, %v2507, -inf
  %v2661 = vsel %vm2624, %v2512, -inf
  %v2662 = vsel %vm2624, %v2515, -inf
  %v2663 = vsel %vm2624, %v2520, -inf
  %v2664 = vsel %vm2624, %v2523, -inf
  %v2665 = vsel %vm2624, %v2528, -inf
  %v2666 = vsel %vm2624, %v2531, -inf
  %v2667 = vsel %vm2624, %v2536, -inf
  %v2668 = vsel %vm2624, %v2539, -inf
  %v2669 = vsel %vm2624, %v2544, -inf
  %v2670 = vsel %vm2624, %v2547, -inf
  %v2671 = vsel %vm2624, %v2552, -inf
  %v2672 = vsel %vm2624, %v2555, -inf
  %v2673 = vsel %vm2624, %v2560, -inf
  %v2674 = vsel %vm2624, %v2563, -inf
  %v2675 = vsel %vm2624, %v2568, -inf
  %v2676 = vsel %vm2624, %v2571, -inf
  %v2677 = vsel %vm2624, %v2576, -inf
  %v2678 = vsel %vm2624, %v2579, -inf
  %v2679 = vsel %vm2624, %v2584, -inf
  %v2680 = vsel %vm2624, %v2587, -inf
  %v2681 = vsel %vm2624, %v2592, -inf
  %v2682 = vsel %vm2624, %v2595, -inf
  %v2683 = vsel %vm2624, %v2600, -inf
  %v2684 = vsel %vm2624, %v2603, -inf
  %v2685 = vsel %vm2624, %v2608, -inf
  %v2686 = vsel %vm2624, %v2611, -inf
  %v2687 = vsel %vm2624, %v2616, -inf
  %v2688 = vsel %vm2624, %v2619, -inf
  %2689 = vmax.xlane.f32.xlu0 %v2625
  %v2690 = vpop.xlane.xlu0 %2689
  %2691 = vmax.xlane.f32.xlu0 %v2626
  %v2692 = vpop.xlane.xlu0 %2691
  %2693 = vmax.xlane.f32.xlu0 %v2627
  %v2694 = vpop.xlane.xlu0 %2693
  %2695 = vmax.xlane.f32.xlu0 %v2628
  %v2696 = vpop.xlane.xlu0 %2695
  %2697 = vmax.xlane.f32.xlu0 %v2629
  %v2698 = vpop.xlane.xlu0 %2697
  %2699 = vmax.xlane.f32.xlu0 %v2630
  %v2700 = vpop.xlane.xlu0 %2699
  %2701 = vmax.xlane.f32.xlu0 %v2631
  %v2702 = vpop.xlane.xlu0 %2701
  %2703 = vmax.xlane.f32.xlu0 %v2632
  %v2704 = vpop.xlane.xlu0 %2703
  %2705 = vmax.xlane.f32.xlu0 %v2633
  %v2706 = vpop.xlane.xlu0 %2705
  %2707 = vmax.xlane.f32.xlu0 %v2634
  %v2708 = vpop.xlane.xlu0 %2707
  %2709 = vmax.xlane.f32.xlu0 %v2635
  %v2710 = vpop.xlane.xlu0 %2709
  %2711 = vmax.xlane.f32.xlu0 %v2636
  %v2712 = vpop.xlane.xlu0 %2711
  %2713 = vmax.xlane.f32.xlu0 %v2637
  %v2714 = vpop.xlane.xlu0 %2713
  %2715 = vmax.xlane.f32.xlu0 %v2638
  %v2716 = vpop.xlane.xlu0 %2715
  %2717 = vmax.xlane.f32.xlu0 %v2639
  %v2718 = vpop.xlane.xlu0 %2717
  %2719 = vmax.xlane.f32.xlu0 %v2640
  %v2720 = vpop.xlane.xlu0 %2719
  %2721 = vmax.xlane.f32.xlu0 %v2641
  %v2722 = vpop.xlane.xlu0 %2721
  %2723 = vmax.xlane.f32.xlu0 %v2642
  %v2724 = vpop.xlane.xlu0 %2723
  %2725 = vmax.xlane.f32.xlu0 %v2643
  %v2726 = vpop.xlane.xlu0 %2725
  %2727 = vmax.xlane.f32.xlu0 %v2644
  %v2728 = vpop.xlane.xlu0 %2727
  %2729 = vmax.xlane.f32.xlu0 %v2645
  %v2730 = vpop.xlane.xlu0 %2729
  %2731 = vmax.xlane.f32.xlu0 %v2646
  %v2732 = vpop.xlane.xlu0 %2731
  %2733 = vmax.xlane.f32.xlu0 %v2647
  %v2734 = vpop.xlane.xlu0 %2733
  %2735 = vmax.xlane.f32.xlu0 %v2648
  %v2736 = vpop.xlane.xlu0 %2735
  %2737 = vmax.xlane.f32.xlu0 %v2649
  %v2738 = vpop.xlane.xlu0 %2737
  %2739 = vmax.xlane.f32.xlu0 %v2650
  %v2740 = vpop.xlane.xlu0 %2739
  %2741 = vmax.xlane.f32.xlu0 %v2651
  %v2742 = vpop.xlane.xlu0 %2741
  %2743 = vmax.xlane.f32.xlu0 %v2652
  %v2744 = vpop.xlane.xlu0 %2743
  %2745 = vmax.xlane.f32.xlu0 %v2653
  %v2746 = vpop.xlane.xlu0 %2745
  %2747 = vmax.xlane.f32.xlu0 %v2654
  %v2748 = vpop.xlane.xlu0 %2747
  %2749 = vmax.xlane.f32.xlu0 %v2655
  %v2750 = vpop.xlane.xlu0 %2749
  %2751 = vmax.xlane.f32.xlu0 %v2656
  %v2752 = vpop.xlane.xlu0 %2751
  %2753 = vmax.xlane.f32.xlu0 %v2657
  %v2754 = vpop.xlane.xlu0 %2753
  %2755 = vmax.xlane.f32.xlu0 %v2658
  %v2756 = vpop.xlane.xlu0 %2755
  %2757 = vmax.xlane.f32.xlu0 %v2659
  %v2758 = vpop.xlane.xlu0 %2757
  %2759 = vmax.xlane.f32.xlu0 %v2660
  %v2760 = vpop.xlane.xlu0 %2759
  %2761 = vmax.xlane.f32.xlu0 %v2661
  %v2762 = vpop.xlane.xlu0 %2761
  %2763 = vmax.xlane.f32.xlu0 %v2662
  %v2764 = vpop.xlane.xlu0 %2763
  %2765 = vmax.xlane.f32.xlu0 %v2663
  %v2766 = vpop.xlane.xlu0 %2765
  %2767 = vmax.xlane.f32.xlu0 %v2664
  %v2768 = vpop.xlane.xlu0 %2767
  %2769 = vmax.xlane.f32.xlu0 %v2665
  %v2770 = vpop.xlane.xlu0 %2769
  %2771 = vmax.xlane.f32.xlu0 %v2666
  %v2772 = vpop.xlane.xlu0 %2771
  %2773 = vmax.xlane.f32.xlu0 %v2667
  %v2774 = vpop.xlane.xlu0 %2773
  %2775 = vmax.xlane.f32.xlu0 %v2668
  %v2776 = vpop.xlane.xlu0 %2775
  %2777 = vmax.xlane.f32.xlu0 %v2669
  %v2778 = vpop.xlane.xlu0 %2777
  %2779 = vmax.xlane.f32.xlu0 %v2670
  %v2780 = vpop.xlane.xlu0 %2779
  %2781 = vmax.xlane.f32.xlu0 %v2671
  %v2782 = vpop.xlane.xlu0 %2781
  %2783 = vmax.xlane.f32.xlu0 %v2672
  %v2784 = vpop.xlane.xlu0 %2783
  %2785 = vmax.xlane.f32.xlu0 %v2673
  %v2786 = vpop.xlane.xlu0 %2785
  %2787 = vmax.xlane.f32.xlu0 %v2674
  %v2788 = vpop.xlane.xlu0 %2787
  %2789 = vmax.xlane.f32.xlu0 %v2675
  %v2790 = vpop.xlane.xlu0 %2789
  %2791 = vmax.xlane.f32.xlu0 %v2676
  %v2792 = vpop.xlane.xlu0 %2791
  %2793 = vmax.xlane.f32.xlu0 %v2677
  %v2794 = vpop.xlane.xlu0 %2793
  %2795 = vmax.xlane.f32.xlu0 %v2678
  %v2796 = vpop.xlane.xlu0 %2795
  %2797 = vmax.xlane.f32.xlu0 %v2679
  %v2798 = vpop.xlane.xlu0 %2797
  %2799 = vmax.xlane.f32.xlu0 %v2680
  %v2800 = vpop.xlane.xlu0 %2799
  %2801 = vmax.xlane.f32.xlu0 %v2681
  %v2802 = vpop.xlane.xlu0 %2801
  %2803 = vmax.xlane.f32.xlu0 %v2682
  %v2804 = vpop.xlane.xlu0 %2803
  %2805 = vmax.xlane.f32.xlu0 %v2683
  %v2806 = vpop.xlane.xlu0 %2805
  %2807 = vmax.xlane.f32.xlu0 %v2684
  %v2808 = vpop.xlane.xlu0 %2807
  %2809 = vmax.xlane.f32.xlu0 %v2685
  %v2810 = vpop.xlane.xlu0 %2809
  %2811 = vmax.xlane.f32.xlu0 %v2686
  %v2812 = vpop.xlane.xlu0 %2811
  %2813 = vmax.xlane.f32.xlu0 %v2687
  %v2814 = vpop.xlane.xlu0 %2813
  %2815 = vmax.xlane.f32.xlu0 %v2688
  %v2816 = vpop.xlane.xlu0 %2815
  %v2817 = vsub.f32 %v2625, %v2690
  %v2818 = vsub.f32 %v2626, %v2692
  %v2819 = vsub.f32 %v2627, %v2694
  %v2820 = vsub.f32 %v2628, %v2696
  %v2821 = vsub.f32 %v2629, %v2698
  %v2822 = vsub.f32 %v2630, %v2700
  %v2823 = vsub.f32 %v2631, %v2702
  %v2824 = vsub.f32 %v2632, %v2704
  %v2825 = vsub.f32 %v2633, %v2706
  %v2826 = vsub.f32 %v2634, %v2708
  %v2827 = vsub.f32 %v2635, %v2710
  %v2828 = vsub.f32 %v2636, %v2712
  %v2829 = vsub.f32 %v2637, %v2714
  %v2830 = vsub.f32 %v2638, %v2716
  %v2831 = vsub.f32 %v2639, %v2718
  %v2832 = vsub.f32 %v2640, %v2720
  %v2833 = vsub.f32 %v2641, %v2722
  %v2834 = vsub.f32 %v2642, %v2724
  %v2835 = vsub.f32 %v2643, %v2726
  %v2836 = vsub.f32 %v2644, %v2728
  %v2837 = vsub.f32 %v2645, %v2730
  %v2838 = vsub.f32 %v2646, %v2732
  %v2839 = vsub.f32 %v2647, %v2734
  %v2840 = vsub.f32 %v2648, %v2736
  %v2841 = vsub.f32 %v2649, %v2738
  %v2842 = vsub.f32 %v2650, %v2740
  %v2843 = vsub.f32 %v2651, %v2742
  %v2844 = vsub.f32 %v2652, %v2744
  %v2845 = vsub.f32 %v2653, %v2746
  %v2846 = vsub.f32 %v2654, %v2748
  %v2847 = vsub.f32 %v2655, %v2750
  %v2848 = vsub.f32 %v2656, %v2752
  %v2849 = vsub.f32 %v2657, %v2754
  %v2850 = vsub.f32 %v2658, %v2756
  %v2851 = vsub.f32 %v2659, %v2758
  %v2852 = vsub.f32 %v2660, %v2760
  %v2853 = vsub.f32 %v2661, %v2762
  %v2854 = vsub.f32 %v2662, %v2764
  %v2855 = vsub.f32 %v2663, %v2766
  %v2856 = vsub.f32 %v2664, %v2768
  %v2857 = vsub.f32 %v2665, %v2770
  %v2858 = vsub.f32 %v2666, %v2772
  %v2859 = vsub.f32 %v2667, %v2774
  %v2860 = vsub.f32 %v2668, %v2776
  %v2861 = vsub.f32 %v2669, %v2778
  %v2862 = vsub.f32 %v2670, %v2780
  %v2863 = vsub.f32 %v2671, %v2782
  %v2864 = vsub.f32 %v2672, %v2784
  %v2865 = vsub.f32 %v2673, %v2786
  %v2866 = vsub.f32 %v2674, %v2788
  %v2867 = vsub.f32 %v2675, %v2790
  %v2868 = vsub.f32 %v2676, %v2792
  %v2869 = vsub.f32 %v2677, %v2794
  %v2870 = vsub.f32 %v2678, %v2796
  %v2871 = vsub.f32 %v2679, %v2798
  %v2872 = vsub.f32 %v2680, %v2800
  %v2873 = vsub.f32 %v2681, %v2802
  %v2874 = vsub.f32 %v2682, %v2804
  %v2875 = vsub.f32 %v2683, %v2806
  %v2876 = vsub.f32 %v2684, %v2808
  %v2877 = vsub.f32 %v2685, %v2810
  %v2878 = vsub.f32 %v2686, %v2812
  %v2879 = vsub.f32 %v2687, %v2814
  %v2880 = vsub.f32 %v2688, %v2816
  %v2881 = vmul.f32 %v2817, 1.442695
  %v2882 = vpow.pop %v2881
  %v2883 = vmul.f32 %v2818, 1.442695
  %v2884 = vpow.pop %v2883
  %v2885 = vmul.f32 %v2819, 1.442695
  %v2886 = vpow.pop %v2885
  %v2887 = vmul.f32 %v2820, 1.442695
  %v2888 = vpow.pop %v2887
  %v2889 = vmul.f32 %v2821, 1.442695
  %v2890 = vpow.pop %v2889
  %v2891 = vmul.f32 %v2822, 1.442695
  %v2892 = vpow.pop %v2891
  %v2893 = vmul.f32 %v2823, 1.442695
  %v2894 = vpow.pop %v2893
  %v2895 = vmul.f32 %v2824, 1.442695
  %v2896 = vpow.pop %v2895
  %v2897 = vmul.f32 %v2825, 1.442695
  %v2898 = vpow.pop %v2897
  %v2899 = vmul.f32 %v2826, 1.442695
  %v2900 = vpow.pop %v2899
  %v2901 = vmul.f32 %v2827, 1.442695
  %v2902 = vpow.pop %v2901
  %v2903 = vmul.f32 %v2828, 1.442695
  %v2904 = vpow.pop %v2903
  %v2905 = vmul.f32 %v2829, 1.442695
  %v2906 = vpow.pop %v2905
  %v2907 = vmul.f32 %v2830, 1.442695
  %v2908 = vpow.pop %v2907
  %v2909 = vmul.f32 %v2831, 1.442695
  %v2910 = vpow.pop %v2909
  %v2911 = vmul.f32 %v2832, 1.442695
  %v2912 = vpow.pop %v2911
  %v2913 = vmul.f32 %v2833, 1.442695
  %v2914 = vpow.pop %v2913
  %v2915 = vmul.f32 %v2834, 1.442695
  %v2916 = vpow.pop %v2915
  %v2917 = vmul.f32 %v2835, 1.442695
  %v2918 = vpow.pop %v2917
  %v2919 = vmul.f32 %v2836, 1.442695
  %v2920 = vpow.pop %v2919
  %v2921 = vmul.f32 %v2837, 1.442695
  %v2922 = vpow.pop %v2921
  %v2923 = vmul.f32 %v2838, 1.442695
  %v2924 = vpow.pop %v2923
  %v2925 = vmul.f32 %v2839, 1.442695
  %v2926 = vpow.pop %v2925
  %v2927 = vmul.f32 %v2840, 1.442695
  %v2928 = vpow.pop %v2927
  %v2929 = vmul.f32 %v2841, 1.442695
  %v2930 = vpow.pop %v2929
  %v2931 = vmul.f32 %v2842, 1.442695
  %v2932 = vpow.pop %v2931
  %v2933 = vmul.f32 %v2843, 1.442695
  %v2934 = vpow.pop %v2933
  %v2935 = vmul.f32 %v2844, 1.442695
  %v2936 = vpow.pop %v2935
  %v2937 = vmul.f32 %v2845, 1.442695
  %v2938 = vpow.pop %v2937
  %v2939 = vmul.f32 %v2846, 1.442695
  %v2940 = vpow.pop %v2939
  %v2941 = vmul.f32 %v2847, 1.442695
  %v2942 = vpow.pop %v2941
  %v2943 = vmul.f32 %v2848, 1.442695
  %v2944 = vpow.pop %v2943
  %v2945 = vmul.f32 %v2849, 1.442695
  %v2946 = vpow.pop %v2945
  %v2947 = vmul.f32 %v2850, 1.442695
  %v2948 = vpow.pop %v2947
  %v2949 = vmul.f32 %v2851, 1.442695
  %v2950 = vpow.pop %v2949
  %v2951 = vmul.f32 %v2852, 1.442695
  %v2952 = vpow.pop %v2951
  %v2953 = vmul.f32 %v2853, 1.442695
  %v2954 = vpow.pop %v2953
  %v2955 = vmul.f32 %v2854, 1.442695
  %v2956 = vpow.pop %v2955
  %v2957 = vmul.f32 %v2855, 1.442695
  %v2958 = vpow.pop %v2957
  %v2959 = vmul.f32 %v2856, 1.442695
  %v2960 = vpow.pop %v2959
  %v2961 = vmul.f32 %v2857, 1.442695
  %v2962 = vpow.pop %v2961
  %v2963 = vmul.f32 %v2858, 1.442695
  %v2964 = vpow.pop %v2963
  %v2965 = vmul.f32 %v2859, 1.442695
  %v2966 = vpow.pop %v2965
  %v2967 = vmul.f32 %v2860, 1.442695
  %v2968 = vpow.pop %v2967
  %v2969 = vmul.f32 %v2861, 1.442695
  %v2970 = vpow.pop %v2969
  %v2971 = vmul.f32 %v2862, 1.442695
  %v2972 = vpow.pop %v2971
  %v2973 = vmul.f32 %v2863, 1.442695
  %v2974 = vpow.pop %v2973
  %v2975 = vmul.f32 %v2864, 1.442695
  %v2976 = vpow.pop %v2975
  %v2977 = vmul.f32 %v2865, 1.442695
  %v2978 = vpow.pop %v2977
  %v2979 = vmul.f32 %v2866, 1.442695
  %v2980 = vpow.pop %v2979
  %v2981 = vmul.f32 %v2867, 1.442695
  %v2982 = vpow.pop %v2981
  %v2983 = vmul.f32 %v2868, 1.442695
  %v2984 = vpow.pop %v2983
  %v2985 = vmul.f32 %v2869, 1.442695
  %v2986 = vpow.pop %v2985
  %v2987 = vmul.f32 %v2870, 1.442695
  %v2988 = vpow.pop %v2987
  %v2989 = vmul.f32 %v2871, 1.442695
  %v2990 = vpow.pop %v2989
  %v2991 = vmul.f32 %v2872, 1.442695
  %v2992 = vpow.pop %v2991
  %v2993 = vmul.f32 %v2873, 1.442695
  %v2994 = vpow.pop %v2993
  %v2995 = vmul.f32 %v2874, 1.442695
  %v2996 = vpow.pop %v2995
  %v2997 = vmul.f32 %v2875, 1.442695
  %v2998 = vpow.pop %v2997
  %v2999 = vmul.f32 %v2876, 1.442695
  %v3000 = vpow.pop %v2999
  %v3001 = vmul.f32 %v2877, 1.442695
  %v3002 = vpow.pop %v3001
  %v3003 = vmul.f32 %v2878, 1.442695
  %v3004 = vpow.pop %v3003
  %v3005 = vmul.f32 %v2879, 1.442695
  %v3006 = vpow.pop %v3005
  %v3007 = vmul.f32 %v2880, 1.442695
  %v3008 = vpow.pop %v3007
  %3009 = vadd.xlane.f32.xlu0 %v2882
  %v3010 = vpop.xlane.xlu0 %3009
  %3011 = vadd.xlane.f32.xlu0 %v2884
  %v3012 = vpop.xlane.xlu0 %3011
  %3013 = vadd.xlane.f32.xlu0 %v2886
  %v3014 = vpop.xlane.xlu0 %3013
  %3015 = vadd.xlane.f32.xlu0 %v2888
  %v3016 = vpop.xlane.xlu0 %3015
  %3017 = vadd.xlane.f32.xlu0 %v2890
  %v3018 = vpop.xlane.xlu0 %3017
  %3019 = vadd.xlane.f32.xlu0 %v2892
  %v3020 = vpop.xlane.xlu0 %3019
  %3021 = vadd.xlane.f32.xlu0 %v2894
  %v3022 = vpop.xlane.xlu0 %3021
  %3023 = vadd.xlane.f32.xlu0 %v2896
  %v3024 = vpop.xlane.xlu0 %3023
  %3025 = vadd.xlane.f32.xlu0 %v2898
  %v3026 = vpop.xlane.xlu0 %3025
  %3027 = vadd.xlane.f32.xlu0 %v2900
  %v3028 = vpop.xlane.xlu0 %3027
  %3029 = vadd.xlane.f32.xlu0 %v2902
  %v3030 = vpop.xlane.xlu0 %3029
  %3031 = vadd.xlane.f32.xlu0 %v2904
  %v3032 = vpop.xlane.xlu0 %3031
  %3033 = vadd.xlane.f32.xlu0 %v2906
  %v3034 = vpop.xlane.xlu0 %3033
  %3035 = vadd.xlane.f32.xlu0 %v2908
  %v3036 = vpop.xlane.xlu0 %3035
  %3037 = vadd.xlane.f32.xlu0 %v2910
  %v3038 = vpop.xlane.xlu0 %3037
  %3039 = vadd.xlane.f32.xlu0 %v2912
  %v3040 = vpop.xlane.xlu0 %3039
  %3041 = vadd.xlane.f32.xlu0 %v2914
  %v3042 = vpop.xlane.xlu0 %3041
  %3043 = vadd.xlane.f32.xlu0 %v2916
  %v3044 = vpop.xlane.xlu0 %3043
  %3045 = vadd.xlane.f32.xlu0 %v2918
  %v3046 = vpop.xlane.xlu0 %3045
  %3047 = vadd.xlane.f32.xlu0 %v2920
  %v3048 = vpop.xlane.xlu0 %3047
  %3049 = vadd.xlane.f32.xlu0 %v2922
  %v3050 = vpop.xlane.xlu0 %3049
  %3051 = vadd.xlane.f32.xlu0 %v2924
  %v3052 = vpop.xlane.xlu0 %3051
  %3053 = vadd.xlane.f32.xlu0 %v2926
  %v3054 = vpop.xlane.xlu0 %3053
  %3055 = vadd.xlane.f32.xlu0 %v2928
  %v3056 = vpop.xlane.xlu0 %3055
  %3057 = vadd.xlane.f32.xlu0 %v2930
  %v3058 = vpop.xlane.xlu0 %3057
  %3059 = vadd.xlane.f32.xlu0 %v2932
  %v3060 = vpop.xlane.xlu0 %3059
  %3061 = vadd.xlane.f32.xlu0 %v2934
  %v3062 = vpop.xlane.xlu0 %3061
  %3063 = vadd.xlane.f32.xlu0 %v2936
  %v3064 = vpop.xlane.xlu0 %3063
  %3065 = vadd.xlane.f32.xlu0 %v2938
  %v3066 = vpop.xlane.xlu0 %3065
  %3067 = vadd.xlane.f32.xlu0 %v2940
  %v3068 = vpop.xlane.xlu0 %3067
  %3069 = vadd.xlane.f32.xlu0 %v2942
  %v3070 = vpop.xlane.xlu0 %3069
  %3071 = vadd.xlane.f32.xlu0 %v2944
  %v3072 = vpop.xlane.xlu0 %3071
  %3073 = vadd.xlane.f32.xlu0 %v2946
  %v3074 = vpop.xlane.xlu0 %3073
  %3075 = vadd.xlane.f32.xlu0 %v2948
  %v3076 = vpop.xlane.xlu0 %3075
  %3077 = vadd.xlane.f32.xlu0 %v2950
  %v3078 = vpop.xlane.xlu0 %3077
  %3079 = vadd.xlane.f32.xlu0 %v2952
  %v3080 = vpop.xlane.xlu0 %3079
  %3081 = vadd.xlane.f32.xlu0 %v2954
  %v3082 = vpop.xlane.xlu0 %3081
  %3083 = vadd.xlane.f32.xlu0 %v2956
  %v3084 = vpop.xlane.xlu0 %3083
  %3085 = vadd.xlane.f32.xlu0 %v2958
  %v3086 = vpop.xlane.xlu0 %3085
  %3087 = vadd.xlane.f32.xlu0 %v2960
  %v3088 = vpop.xlane.xlu0 %3087
  %3089 = vadd.xlane.f32.xlu0 %v2962
  %v3090 = vpop.xlane.xlu0 %3089
  %3091 = vadd.xlane.f32.xlu0 %v2964
  %v3092 = vpop.xlane.xlu0 %3091
  %3093 = vadd.xlane.f32.xlu0 %v2966
  %v3094 = vpop.xlane.xlu0 %3093
  %3095 = vadd.xlane.f32.xlu0 %v2968
  %v3096 = vpop.xlane.xlu0 %3095
  %3097 = vadd.xlane.f32.xlu0 %v2970
  %v3098 = vpop.xlane.xlu0 %3097
  %3099 = vadd.xlane.f32.xlu0 %v2972
  %v3100 = vpop.xlane.xlu0 %3099
  %3101 = vadd.xlane.f32.xlu0 %v2974
  %v3102 = vpop.xlane.xlu0 %3101
  %3103 = vadd.xlane.f32.xlu0 %v2976
  %v3104 = vpop.xlane.xlu0 %3103
  %3105 = vadd.xlane.f32.xlu0 %v2978
  %v3106 = vpop.xlane.xlu0 %3105
  %3107 = vadd.xlane.f32.xlu0 %v2980
  %v3108 = vpop.xlane.xlu0 %3107
  %3109 = vadd.xlane.f32.xlu0 %v2982
  %v3110 = vpop.xlane.xlu0 %3109
  %3111 = vadd.xlane.f32.xlu0 %v2984
  %v3112 = vpop.xlane.xlu0 %3111
  %3113 = vadd.xlane.f32.xlu0 %v2986
  %v3114 = vpop.xlane.xlu0 %3113
  %3115 = vadd.xlane.f32.xlu0 %v2988
  %v3116 = vpop.xlane.xlu0 %3115
  %3117 = vadd.xlane.f32.xlu0 %v2990
  %v3118 = vpop.xlane.xlu0 %3117
  %3119 = vadd.xlane.f32.xlu0 %v2992
  %v3120 = vpop.xlane.xlu0 %3119
  %3121 = vadd.xlane.f32.xlu0 %v2994
  %v3122 = vpop.xlane.xlu0 %3121
  %3123 = vadd.xlane.f32.xlu0 %v2996
  %v3124 = vpop.xlane.xlu0 %3123
  %3125 = vadd.xlane.f32.xlu0 %v2998
  %v3126 = vpop.xlane.xlu0 %3125
  %3127 = vadd.xlane.f32.xlu0 %v3000
  %v3128 = vpop.xlane.xlu0 %3127
  %3129 = vadd.xlane.f32.xlu0 %v3002
  %v3130 = vpop.xlane.xlu0 %3129
  %3131 = vadd.xlane.f32.xlu0 %v3004
  %v3132 = vpop.xlane.xlu0 %3131
  %3133 = vadd.xlane.f32.xlu0 %v3006
  %v3134 = vpop.xlane.xlu0 %3133
  %3135 = vadd.xlane.f32.xlu0 %v3008
  %v3136 = vpop.xlane.xlu0 %3135
  %v3137 = vlog2.pop %v3010
  %v3138 = vmul.f32 %v3137, 0.6931472
  %v3139 = vlog2.pop %v3012
  %v3140 = vmul.f32 %v3139, 0.6931472
  %v3141 = vlog2.pop %v3014
  %v3142 = vmul.f32 %v3141, 0.6931472
  %v3143 = vlog2.pop %v3016
  %v3144 = vmul.f32 %v3143, 0.6931472
  %v3145 = vlog2.pop %v3018
  %v3146 = vmul.f32 %v3145, 0.6931472
  %v3147 = vlog2.pop %v3020
  %v3148 = vmul.f32 %v3147, 0.6931472
  %v3149 = vlog2.pop %v3022
  %v3150 = vmul.f32 %v3149, 0.6931472
  %v3151 = vlog2.pop %v3024
  %v3152 = vmul.f32 %v3151, 0.6931472
  %v3153 = vlog2.pop %v3026
  %v3154 = vmul.f32 %v3153, 0.6931472
  %v3155 = vlog2.pop %v3028
  %v3156 = vmul.f32 %v3155, 0.6931472
  %v3157 = vlog2.pop %v3030
  %v3158 = vmul.f32 %v3157, 0.6931472
  %v3159 = vlog2.pop %v3032
  %v3160 = vmul.f32 %v3159, 0.6931472
  %v3161 = vlog2.pop %v3034
  %v3162 = vmul.f32 %v3161, 0.6931472
  %v3163 = vlog2.pop %v3036
  %v3164 = vmul.f32 %v3163, 0.6931472
  %v3165 = vlog2.pop %v3038
  %v3166 = vmul.f32 %v3165, 0.6931472
  %v3167 = vlog2.pop %v3040
  %v3168 = vmul.f32 %v3167, 0.6931472
  %v3169 = vlog2.pop %v3042
  %v3170 = vmul.f32 %v3169, 0.6931472
  %v3171 = vlog2.pop %v3044
  %v3172 = vmul.f32 %v3171, 0.6931472
  %v3173 = vlog2.pop %v3046
  %v3174 = vmul.f32 %v3173, 0.6931472
  %v3175 = vlog2.pop %v3048
  %v3176 = vmul.f32 %v3175, 0.6931472
  %v3177 = vlog2.pop %v3050
  %v3178 = vmul.f32 %v3177, 0.6931472
  %v3179 = vlog2.pop %v3052
  %v3180 = vmul.f32 %v3179, 0.6931472
  %v3181 = vlog2.pop %v3054
  %v3182 = vmul.f32 %v3181, 0.6931472
  %v3183 = vlog2.pop %v3056
  %v3184 = vmul.f32 %v3183, 0.6931472
  %v3185 = vlog2.pop %v3058
  %v3186 = vmul.f32 %v3185, 0.6931472
  %v3187 = vlog2.pop %v3060
  %v3188 = vmul.f32 %v3187, 0.6931472
  %v3189 = vlog2.pop %v3062
  %v3190 = vmul.f32 %v3189, 0.6931472
  %v3191 = vlog2.pop %v3064
  %v3192 = vmul.f32 %v3191, 0.6931472
  %v3193 = vlog2.pop %v3066
  %v3194 = vmul.f32 %v3193, 0.6931472
  %v3195 = vlog2.pop %v3068
  %v3196 = vmul.f32 %v3195, 0.6931472
  %v3197 = vlog2.pop %v3070
  %v3198 = vmul.f32 %v3197, 0.6931472
  %v3199 = vlog2.pop %v3072
  %v3200 = vmul.f32 %v3199, 0.6931472
  %v3201 = vlog2.pop %v3074
  %v3202 = vmul.f32 %v3201, 0.6931472
  %v3203 = vlog2.pop %v3076
  %v3204 = vmul.f32 %v3203, 0.6931472
  %v3205 = vlog2.pop %v3078
  %v3206 = vmul.f32 %v3205, 0.6931472
  %v3207 = vlog2.pop %v3080
  %v3208 = vmul.f32 %v3207, 0.6931472
  %v3209 = vlog2.pop %v3082
  %v3210 = vmul.f32 %v3209, 0.6931472
  %v3211 = vlog2.pop %v3084
  %v3212 = vmul.f32 %v3211, 0.6931472
  %v3213 = vlog2.pop %v3086
  %v3214 = vmul.f32 %v3213, 0.6931472
  %v3215 = vlog2.pop %v3088
  %v3216 = vmul.f32 %v3215, 0.6931472
  %v3217 = vlog2.pop %v3090
  %v3218 = vmul.f32 %v3217, 0.6931472
  %v3219 = vlog2.pop %v3092
  %v3220 = vmul.f32 %v3219, 0.6931472
  %v3221 = vlog2.pop %v3094
  %v3222 = vmul.f32 %v3221, 0.6931472
  %v3223 = vlog2.pop %v3096
  %v3224 = vmul.f32 %v3223, 0.6931472
  %v3225 = vlog2.pop %v3098
  %v3226 = vmul.f32 %v3225, 0.6931472
  %v3227 = vlog2.pop %v3100
  %v3228 = vmul.f32 %v3227, 0.6931472
  %v3229 = vlog2.pop %v3102
  %v3230 = vmul.f32 %v3229, 0.6931472
  %v3231 = vlog2.pop %v3104
  %v3232 = vmul.f32 %v3231, 0.6931472
  %v3233 = vlog2.pop %v3106
  %v3234 = vmul.f32 %v3233, 0.6931472
  %v3235 = vlog2.pop %v3108
  %v3236 = vmul.f32 %v3235, 0.6931472
  %v3237 = vlog2.pop %v3110
  %v3238 = vmul.f32 %v3237, 0.6931472
  %v3239 = vlog2.pop %v3112
  %v3240 = vmul.f32 %v3239, 0.6931472
  %v3241 = vlog2.pop %v3114
  %v3242 = vmul.f32 %v3241, 0.6931472
  %v3243 = vlog2.pop %v3116
  %v3244 = vmul.f32 %v3243, 0.6931472
  %v3245 = vlog2.pop %v3118
  %v3246 = vmul.f32 %v3245, 0.6931472
  %v3247 = vlog2.pop %v3120
  %v3248 = vmul.f32 %v3247, 0.6931472
  %v3249 = vlog2.pop %v3122
  %v3250 = vmul.f32 %v3249, 0.6931472
  %v3251 = vlog2.pop %v3124
  %v3252 = vmul.f32 %v3251, 0.6931472
  %v3253 = vlog2.pop %v3126
  %v3254 = vmul.f32 %v3253, 0.6931472
  %v3255 = vlog2.pop %v3128
  %v3256 = vmul.f32 %v3255, 0.6931472
  %v3257 = vlog2.pop %v3130
  %v3258 = vmul.f32 %v3257, 0.6931472
  %v3259 = vlog2.pop %v3132
  %v3260 = vmul.f32 %v3259, 0.6931472
  %v3261 = vlog2.pop %v3134
  %v3262 = vmul.f32 %v3261, 0.6931472
  %v3263 = vlog2.pop %v3136
  %v3264 = vmul.f32 %v3263, 0.6931472
  %v3265 = vsub.f32 %v2817, %v3138
  %v3266 = vsub.f32 %v2818, %v3140
  %v3267 = vsub.f32 %v2819, %v3142
  %v3268 = vsub.f32 %v2820, %v3144
  %v3269 = vsub.f32 %v2821, %v3146
  %v3270 = vsub.f32 %v2822, %v3148
  %v3271 = vsub.f32 %v2823, %v3150
  %v3272 = vsub.f32 %v2824, %v3152
  %v3273 = vsub.f32 %v2825, %v3154
  %v3274 = vsub.f32 %v2826, %v3156
  %v3275 = vsub.f32 %v2827, %v3158
  %v3276 = vsub.f32 %v2828, %v3160
  %v3277 = vsub.f32 %v2829, %v3162
  %v3278 = vsub.f32 %v2830, %v3164
  %v3279 = vsub.f32 %v2831, %v3166
  %v3280 = vsub.f32 %v2832, %v3168
  %v3281 = vsub.f32 %v2833, %v3170
  %v3282 = vsub.f32 %v2834, %v3172
  %v3283 = vsub.f32 %v2835, %v3174
  %v3284 = vsub.f32 %v2836, %v3176
  %v3285 = vsub.f32 %v2837, %v3178
  %v3286 = vsub.f32 %v2838, %v3180
  %v3287 = vsub.f32 %v2839, %v3182
  %v3288 = vsub.f32 %v2840, %v3184
  %v3289 = vsub.f32 %v2841, %v3186
  %v3290 = vsub.f32 %v2842, %v3188
  %v3291 = vsub.f32 %v2843, %v3190
  %v3292 = vsub.f32 %v2844, %v3192
  %v3293 = vsub.f32 %v2845, %v3194
  %v3294 = vsub.f32 %v2846, %v3196
  %v3295 = vsub.f32 %v2847, %v3198
  %v3296 = vsub.f32 %v2848, %v3200
  %v3297 = vsub.f32 %v2849, %v3202
  %v3298 = vsub.f32 %v2850, %v3204
  %v3299 = vsub.f32 %v2851, %v3206
  %v3300 = vsub.f32 %v2852, %v3208
  %v3301 = vsub.f32 %v2853, %v3210
  %v3302 = vsub.f32 %v2854, %v3212
  %v3303 = vsub.f32 %v2855, %v3214
  %v3304 = vsub.f32 %v2856, %v3216
  %v3305 = vsub.f32 %v2857, %v3218
  %v3306 = vsub.f32 %v2858, %v3220
  %v3307 = vsub.f32 %v2859, %v3222
  %v3308 = vsub.f32 %v2860, %v3224
  %v3309 = vsub.f32 %v2861, %v3226
  %v3310 = vsub.f32 %v2862, %v3228
  %v3311 = vsub.f32 %v2863, %v3230
  %v3312 = vsub.f32 %v2864, %v3232
  %v3313 = vsub.f32 %v2865, %v3234
  %v3314 = vsub.f32 %v2866, %v3236
  %v3315 = vsub.f32 %v2867, %v3238
  %v3316 = vsub.f32 %v2868, %v3240
  %v3317 = vsub.f32 %v2869, %v3242
  %v3318 = vsub.f32 %v2870, %v3244
  %v3319 = vsub.f32 %v2871, %v3246
  %v3320 = vsub.f32 %v2872, %v3248
  %v3321 = vsub.f32 %v2873, %v3250
  %v3322 = vsub.f32 %v2874, %v3252
  %v3323 = vsub.f32 %v2875, %v3254
  %v3324 = vsub.f32 %v2876, %v3256
  %v3325 = vsub.f32 %v2877, %v3258
  %v3326 = vsub.f32 %v2878, %v3260
  %v3327 = vsub.f32 %v2879, %v3262
  %v3328 = vsub.f32 %v2880, %v3264
  %v3329 = vsel %vm2624, %v3265, 0.0
  %v3330 = vsel %vm2624, %v3266, 0.0
  %v3331 = vsel %vm2624, %v3267, 0.0
  %v3332 = vsel %vm2624, %v3268, 0.0
  %v3333 = vsel %vm2624, %v3269, 0.0
  %v3334 = vsel %vm2624, %v3270, 0.0
  %v3335 = vsel %vm2624, %v3271, 0.0
  %v3336 = vsel %vm2624, %v3272, 0.0
  %v3337 = vsel %vm2624, %v3273, 0.0
  %v3338 = vsel %vm2624, %v3274, 0.0
  %v3339 = vsel %vm2624, %v3275, 0.0
  %v3340 = vsel %vm2624, %v3276, 0.0
  %v3341 = vsel %vm2624, %v3277, 0.0
  %v3342 = vsel %vm2624, %v3278, 0.0
  %v3343 = vsel %vm2624, %v3279, 0.0
  %v3344 = vsel %vm2624, %v3280, 0.0
  %v3345 = vsel %vm2624, %v3281, 0.0
  %v3346 = vsel %vm2624, %v3282, 0.0
  %v3347 = vsel %vm2624, %v3283, 0.0
  %v3348 = vsel %vm2624, %v3284, 0.0
  %v3349 = vsel %vm2624, %v3285, 0.0
  %v3350 = vsel %vm2624, %v3286, 0.0
  %v3351 = vsel %vm2624, %v3287, 0.0
  %v3352 = vsel %vm2624, %v3288, 0.0
  %v3353 = vsel %vm2624, %v3289, 0.0
  %v3354 = vsel %vm2624, %v3290, 0.0
  %v3355 = vsel %vm2624, %v3291, 0.0
  %v3356 = vsel %vm2624, %v3292, 0.0
  %v3357 = vsel %vm2624, %v3293, 0.0
  %v3358 = vsel %vm2624, %v3294, 0.0
  %v3359 = vsel %vm2624, %v3295, 0.0
  %v3360 = vsel %vm2624, %v3296, 0.0
  %v3361 = vsel %vm2624, %v3297, 0.0
  %v3362 = vsel %vm2624, %v3298, 0.0
  %v3363 = vsel %vm2624, %v3299, 0.0
  %v3364 = vsel %vm2624, %v3300, 0.0
  %v3365 = vsel %vm2624, %v3301, 0.0
  %v3366 = vsel %vm2624, %v3302, 0.0
  %v3367 = vsel %vm2624, %v3303, 0.0
  %v3368 = vsel %vm2624, %v3304, 0.0
  %v3369 = vsel %vm2624, %v3305, 0.0
  %v3370 = vsel %vm2624, %v3306, 0.0
  %v3371 = vsel %vm2624, %v3307, 0.0
  %v3372 = vsel %vm2624, %v3308, 0.0
  %v3373 = vsel %vm2624, %v3309, 0.0
  %v3374 = vsel %vm2624, %v3310, 0.0
  %v3375 = vsel %vm2624, %v3311, 0.0
  %v3376 = vsel %vm2624, %v3312, 0.0
  %v3377 = vsel %vm2624, %v3313, 0.0
  %v3378 = vsel %vm2624, %v3314, 0.0
  %v3379 = vsel %vm2624, %v3315, 0.0
  %v3380 = vsel %vm2624, %v3316, 0.0
  %v3381 = vsel %vm2624, %v3317, 0.0
  %v3382 = vsel %vm2624, %v3318, 0.0
  %v3383 = vsel %vm2624, %v3319, 0.0
  %v3384 = vsel %vm2624, %v3320, 0.0
  %v3385 = vsel %vm2624, %v3321, 0.0
  %v3386 = vsel %vm2624, %v3322, 0.0
  %v3387 = vsel %vm2624, %v3323, 0.0
  %v3388 = vsel %vm2624, %v3324, 0.0
  %v3389 = vsel %vm2624, %v3325, 0.0
  %v3390 = vsel %vm2624, %v3326, 0.0
  %v3391 = vsel %vm2624, %v3327, 0.0
  %v3392 = vsel %vm2624, %v3328, 0.0
  %3393 = vst [vmem:[%s4] sm:$0xff] %v3329
  %3394 = vst [vmem:[%s4 + $0x8] sm:$0xff] %v3330
  %3395 = vst [vmem:[%s4 + $0x10] sm:$0xff] %v3331
  %3396 = vst [vmem:[%s4 + $0x18] sm:$0xff] %v3332
  %3397 = vst [vmem:[%s4 + $0x20] sm:$0xff] %v3333
  %3398 = vst [vmem:[%s4 + $0x28] sm:$0xff] %v3334
  %3399 = vst [vmem:[%s4 + $0x30] sm:$0xff] %v3335
  %3400 = vst [vmem:[%s4 + $0x38] sm:$0xff] %v3336
  %3401 = vst [vmem:[%s4 + $0x40] sm:$0xff] %v3337
  %3402 = vst [vmem:[%s4 + $0x48] sm:$0xff] %v3338
  %3403 = vst [vmem:[%s4 + $0x50] sm:$0xff] %v3339
  %3404 = vst [vmem:[%s4 + $0x58] sm:$0xff] %v3340
  %3405 = vst [vmem:[%s4 + $0x60] sm:$0xff] %v3341
  %3406 = vst [vmem:[%s4 + $0x68] sm:$0xff] %v3342
  %3407 = vst [vmem:[%s4 + $0x70] sm:$0xff] %v3343
  %3408 = vst [vmem:[%s4 + $0x78] sm:$0xff] %v3344
  %3409 = vst [vmem:[%s4 + $0x80] sm:$0xff] %v3345
  %3410 = vst [vmem:[%s4 + $0x88] sm:$0xff] %v3346
  %3411 = vst [vmem:[%s4 + $0x90] sm:$0xff] %v3347
  %3412 = vst [vmem:[%s4 + $0x98] sm:$0xff] %v3348
  %3413 = vst [vmem:[%s4 + $0xa0] sm:$0xff] %v3349
  %3414 = vst [vmem:[%s4 + $0xa8] sm:$0xff] %v3350
  %3415 = vst [vmem:[%s4 + $0xb0] sm:$0xff] %v3351
  %3416 = vst [vmem:[%s4 + $0xb8] sm:$0xff] %v3352
  %3417 = vst [vmem:[%s4 + $0xc0] sm:$0xff] %v3353
  %3418 = vst [vmem:[%s4 + $0xc8] sm:$0xff] %v3354
  %3419 = vst [vmem:[%s4 + $0xd0] sm:$0xff] %v3355
  %3420 = vst [vmem:[%s4 + $0xd8] sm:$0xff] %v3356
  %3421 = vst [vmem:[%s4 + $0xe0] sm:$0xff] %v3357
  %3422 = vst [vmem:[%s4 + $0xe8] sm:$0xff] %v3358
  %3423 = vst [vmem:[%s4 + $0xf0] sm:$0xff] %v3359
  %3424 = vst [vmem:[%s4 + $0xf8] sm:$0xff] %v3360
  %3425 = vst [vmem:[%s4 + $0x100] sm:$0xff] %v3361
  %3426 = vst [vmem:[%s4 + $0x108] sm:$0xff] %v3362
  %3427 = vst [vmem:[%s4 + $0x110] sm:$0xff] %v3363
  %3428 = vst [vmem:[%s4 + $0x118] sm:$0xff] %v3364
  %3429 = vst [vmem:[%s4 + $0x120] sm:$0xff] %v3365
  %3430 = vst [vmem:[%s4 + $0x128] sm:$0xff] %v3366
  %3431 = vst [vmem:[%s4 + $0x130] sm:$0xff] %v3367
  %3432 = vst [vmem:[%s4 + $0x138] sm:$0xff] %v3368
  %3433 = vst [vmem:[%s4 + $0x140] sm:$0xff] %v3369
  %3434 = vst [vmem:[%s4 + $0x148] sm:$0xff] %v3370
  %3435 = vst [vmem:[%s4 + $0x150] sm:$0xff] %v3371
  %3436 = vst [vmem:[%s4 + $0x158] sm:$0xff] %v3372
  %3437 = vst [vmem:[%s4 + $0x160] sm:$0xff] %v3373
  %3438 = vst [vmem:[%s4 + $0x168] sm:$0xff] %v3374
  %3439 = vst [vmem:[%s4 + $0x170] sm:$0xff] %v3375
  %3440 = vst [vmem:[%s4 + $0x178] sm:$0xff] %v3376
  %3441 = vst [vmem:[%s4 + $0x180] sm:$0xff] %v3377
  %3442 = vst [vmem:[%s4 + $0x188] sm:$0xff] %v3378
  %3443 = vst [vmem:[%s4 + $0x190] sm:$0xff] %v3379
  %3444 = vst [vmem:[%s4 + $0x198] sm:$0xff] %v3380
  %3445 = vst [vmem:[%s4 + $0x1a0] sm:$0xff] %v3381
  %3446 = vst [vmem:[%s4 + $0x1a8] sm:$0xff] %v3382
  %3447 = vst [vmem:[%s4 + $0x1b0] sm:$0xff] %v3383
  %3448 = vst [vmem:[%s4 + $0x1b8] sm:$0xff] %v3384
  %3449 = vst [vmem:[%s4 + $0x1c0] sm:$0xff] %v3385
  %3450 = vst [vmem:[%s4 + $0x1c8] sm:$0xff] %v3386
  %3451 = vst [vmem:[%s4 + $0x1d0] sm:$0xff] %v3387
  %3452 = vst [vmem:[%s4 + $0x1d8] sm:$0xff] %v3388
  %3453 = vst [vmem:[%s4 + $0x1e0] sm:$0xff] %v3389
  %3454 = vst [vmem:[%s4 + $0x1e8] sm:$0xff] %v3390
  %3455 = vst [vmem:[%s4 + $0x1f0] sm:$0xff] %v3391
  %3456 = vst [vmem:[%s4 + $0x1f8] sm:$0xff] %v3392
  // Predicated region
  $region18: #{sgc_forward.1} parent=0 // pred_check
    _
  $region19: #{sgc_forward.1} parent=0 // pred_check_branch
    %3458 = sbr.rel (0) target = $region21
  $region20: #{sgc_forward.1} parent=0 // pred_region
    _
  $region21: #{sgc_forward.1} parent=0 // pred_fallthru
    _
  // Predicated region
  $region22: #{sgc_forward.1} parent=0 // pred_check
    _
  $region23: #{sgc_forward.1} parent=0 // pred_check_branch
    %3460 = sbr.rel (0) target = $region25
  $region24: #{sgc_forward.1} parent=0 // pred_region
    _
  $region25: #{sgc_forward.1} parent=0 // pred_fallthru
    _

</llo_original>
